<compile_context>
chip_gen: v7x
topology: tpu7x:2x2x1
jax: 0.10.0
libtpu: 0.0.40
codegen_flags: <defaults>
</compile_context>

<pallas_src>
import math

import jax
import jax.numpy as jnp
from jax.experimental import pallas as pl
from jax.experimental.pallas import tpu as pltpu

NUM_FTRS = 2048   # resnet101 fc.in_features
HIDDEN = 512      # replaced fc: Linear(2048, 512) + ReLU
N_PAD = 128       # lane-dense padded classifier width (n_output <= 128)


def _round_up(x, m):
    return (x + m - 1) // m * m


def _choose_tiling(B, HW, dtype):
    """Pick the batch tile, padded batch and a VMEM limit for the feature stream."""
    kind = jax.devices()[0].device_kind.lower()
    is_v7x = "v7" in kind
    itemsize = jnp.dtype(dtype).itemsize
    sub = 16 if itemsize < 4 else 8                      # sublane packing of a (TILE_B, C) slab
    # VMEM budget for the double-buffered feature stream; weights/bias/output need ~7 MB more.
    budget = (36 << 20) if is_v7x else (80 << 20)        # v7x: 64 MiB VMEM per TC; v5e/v6e: 128 MiB
    max_tile = int(max(sub, min(256, (budget // (2 * HW * NUM_FTRS * itemsize)) // sub * sub)))

    steps = -(-B // max_tile)
    if is_v7x and steps == 1 and B >= 2 * sub:
        steps = 2                                        # >= 2 grid steps -> both v7x TensorCores busy
    if steps == 1:
        tile_b, b_pad = B, B                             # single step: block == full dims, zero padding
    else:
        tile_b = min(max_tile, _round_up(-(-B // steps), sub))
        b_pad = _round_up(B, tile_b)                     # minimal padding for a whole number of tiles

    vmem = (2 * HW * tile_b * NUM_FTRS * itemsize                # streamed features, double-buffered
            + 2 * (NUM_FTRS * HIDDEN + HIDDEN * N_PAD) * 2       # bf16 weights, double-buffered
            + 2 * (HIDDEN + N_PAD) * 4                           # biases
            + 2 * tile_b * N_PAD * 4                             # f32 output, double-buffered
            + tile_b * NUM_FTRS * 4                              # f32 pooled accumulator
            + (8 << 20))                                         # Mosaic scratch headroom
    vmem = int(min(vmem, (56 << 20) if is_v7x else (110 << 20)))
    return tile_b, b_pad, vmem


def _head_kernel(x_ref, w1_ref, b1_ref, w2_ref, b2_ref, o_ref):
    # x_ref : (HW, TILE_B, C)  backbone features (bf16 or f32), spatial-major channels-last
    # w1_ref: (C, HIDDEN)      bf16, pre-transposed, pre-scaled by 1/HW (folds the avg-pool mean)
    # b1_ref: (1, HIDDEN)      f32
    # w2_ref: (HIDDEN, N_PAD)  bf16, pre-transposed, zero-padded to lane width 128
    # b2_ref: (1, N_PAD)       f32, zero-padded
    # o_ref : (TILE_B, N_PAD)  f32
    hw = x_ref.shape[0]
    # Global avg-pool: sum spatial slabs one (TILE_B, C) slab at a time with f32
    # accumulation -- never materializes an upcast copy of the whole feature block.
    pooled = x_ref[0].astype(jnp.float32)
    for j in range(1, hw):
        pooled = pooled + x_ref[j].astype(jnp.float32)
    h = jnp.dot(pooled.astype(jnp.bfloat16), w1_ref[...],
                preferred_element_type=jnp.float32)               # MXU, f32 accumulate
    h = jnp.maximum(h + b1_ref[...], 0.0)                         # bias + ReLU in f32
    out = jnp.dot(h.astype(jnp.bfloat16), w2_ref[...],
                  preferred_element_type=jnp.float32)             # MXU, f32 accumulate
    o_ref[...] = out + b2_ref[...]


def init_params(key, n_output):
    """Deterministic parameter init (uniform(-1/sqrt(fan_in), 1/sqrt(fan_in)), matching the
    PyTorch Linear / ClassifierLayerAVH reset_parameters convention). Kept in torch
    (out, in) layout; converted once by prepare_params."""
    k1, k2, k3, k4 = jax.random.split(key, 4)
    s1 = 1.0 / math.sqrt(NUM_FTRS)
    s2 = 1.0 / math.sqrt(HIDDEN)
    return dict(
        w1=jax.random.uniform(k1, (HIDDEN, NUM_FTRS), jnp.float32, -s1, s1),
        b1=jax.random.uniform(k2, (HIDDEN,), jnp.float32, -s1, s1),
        w2=jax.random.uniform(k3, (n_output, HIDDEN), jnp.float32, -s2, s2),
        b2=jax.random.uniform(k4, (n_output,), jnp.float32, -s2, s2),
    )


def prepare_params(params, hw):
    """One-time conversion to kernel layout: transpose, fold the 1/HW avg-pool scale into
    w1, cast MXU operands to bf16, zero-pad the classifier to lane width N_PAD.  Records
    `hw` so a mismatched spatial size cannot silently produce wrong results."""
    n_output = params["w2"].shape[0]
    assert n_output <= N_PAD
    w1t = (params["w1"].T / float(hw)).astype(jnp.bfloat16)                       # (2048, 512)
    b1 = params["b1"].reshape(1, HIDDEN).astype(jnp.float32)                      # (1, 512)
    w2t = jnp.zeros((HIDDEN, N_PAD), jnp.bfloat16).at[:, :n_output].set(
        params["w2"].T.astype(jnp.bfloat16))                                      # (512, 128)
    b2 = jnp.zeros((1, N_PAD), jnp.float32).at[0, :n_output].set(
        params["b2"].astype(jnp.float32))                                         # (1, 128)
    return dict(w1t=w1t, b1=b1, w2t=w2t, b2=b2, hw=int(hw), n_output=int(n_output))


def alpha_vis_forward(x_feat, y_s, r, prepared, *, n_output):
    """Forward pass of alpha_vis.  x_feat is the backbone feature map in spatial-major
    channels-last layout (HW, B, C), bf16 or f32.  y_s / r only affect
    ClassifierLayerAVH's backward (gradient re-weighting by the density ratio), not the
    forward output.  (In production this runs under the model's outer jit.)"""
    del y_s, r
    assert x_feat.ndim == 3
    HW, B, C = x_feat.shape
    assert C == NUM_FTRS
    assert int(prepared["hw"]) == HW, "prepared params were folded for a different HW"
    assert int(prepared["n_output"]) == n_output

    tile_b, b_pad, vmem_limit = _choose_tiling(B, HW, x_feat.dtype)
    x = x_feat
    if b_pad != B:  # only for multi-step grids with non-divisible batch (minimal rows)
        x = jnp.pad(x, ((0, 0), (0, b_pad - B), (0, 0)))

    itemsize = jnp.dtype(x.dtype).itemsize
    cost = pl.CostEstimate(
        flops=2 * b_pad * (NUM_FTRS * HIDDEN + HIDDEN * N_PAD)    # two matmuls
              + b_pad * HW * NUM_FTRS,                            # pooling adds
        transcendentals=0,
        bytes_accessed=(b_pad * HW * NUM_FTRS * itemsize          # feature stream (native dtype)
                        + NUM_FTRS * HIDDEN * 2                   # w1 (VMEM-resident)
                        + HIDDEN * N_PAD * 2                      # w2 (VMEM-resident)
                        + (HIDDEN + N_PAD) * 4                    # biases
                        + b_pad * N_PAD * 4),                     # f32 output
    )

    out = pl.pallas_call(
        _head_kernel,
        out_shape=jax.ShapeDtypeStruct((b_pad, N_PAD), jnp.float32),
        grid=(b_pad // tile_b,),
        in_specs=[
            pl.BlockSpec((HW, tile_b, NUM_FTRS), lambda i: (0, i, 0)),   # streamed batch tiles
            pl.BlockSpec((NUM_FTRS, HIDDEN), lambda i: (0, 0)),          # VMEM-resident weights
            pl.BlockSpec((1, HIDDEN), lambda i: (0, 0)),
            pl.BlockSpec((HIDDEN, N_PAD), lambda i: (0, 0)),
            pl.BlockSpec((1, N_PAD), lambda i: (0, 0)),
        ],
        out_specs=pl.BlockSpec((tile_b, N_PAD), lambda i: (i, 0)),
        compiler_params=pltpu.CompilerParams(
            dimension_semantics=("parallel",),     # batch grid shards across v7x's 2 TCs
            vmem_limit_bytes=vmem_limit,           # derived from the actual tile, per generation
        ),
        cost_estimate=cost,
    )(x, prepared["w1t"], prepared["b1"], prepared["w2t"], prepared["b2"])

    return out[:B, :n_output]


if __name__ == "__main__":
    key = jax.random.PRNGKey(0)
    kx, ky, kr, kp = jax.random.split(key, 4)

    B = 2            # batch
    HW = 4           # 2x2 spatial extent of the layer4 feature map
    n_output = 12    # VisDA-style class count

    # Backbone features, spatial-major channels-last (HW, B, C), bf16 straight from upstream
    # (no wrapper-side cast or pad anywhere on this path).
    x_feat = jax.random.normal(kx, (HW, B, NUM_FTRS), jnp.float32).astype(jnp.bfloat16)
    y_s = jax.nn.one_hot(jax.random.randint(ky, (B,), 0, n_output), n_output)  # source labels (one-hot)
    r = jax.random.uniform(kr, (B, 1), jnp.float32)                            # density ratio

    params = init_params(kp, n_output)
    prepared = prepare_params(params, hw=HW)            # one-time layout conversion (records hw)

    out = alpha_vis_forward(x_feat, y_s, r, prepared, n_output=n_output)
    out = jax.block_until_ready(out)
    assert out.shape == (B, n_output) and out.dtype == jnp.float32

    # sanity check against a plain-JAX f32 reference of the same head
    # (kernel uses bf16 MXU inputs with f32 accumulation -> loosened tolerance)
    feat_ref = jnp.mean(x_feat.astype(jnp.float32), axis=0)                    # avg-pool -> (B, C)
    h_ref = jnp.maximum(feat_ref @ params["w1"].T + params["b1"], 0.0)
    ref = h_ref @ params["w2"].T + params["b2"]
    assert jnp.allclose(out, ref, atol=3e-2, rtol=3e-2), float(jnp.max(jnp.abs(out - ref)))

    print("KERNEL_OK")
</pallas_src>

<mosaic_0001>
module attributes {stable_mosaic.version = 11 : i64} {
  func.func @_head_kernel(%arg0: i32, %arg1: memref<4x2x2048xbf16, #tpu.memory_space<vmem>>, %arg2: memref<2048x512xbf16, #tpu.memory_space<vmem>>, %arg3: memref<1x512xf32, #tpu.memory_space<vmem>>, %arg4: memref<512x128xbf16, #tpu.memory_space<vmem>>, %arg5: memref<1x128xf32, #tpu.memory_space<vmem>>, %arg6: memref<2x128xf32, #tpu.memory_space<vmem>>) attributes {dimension_semantics = [#tpu.dimension_semantics<parallel>], iteration_bounds = array<i64: 1>, scalar_prefetch = 0 : i64, scratch_operands = 0 : i64, tpu.core_type = #tpu.core_type<tc>, window_params = [{transform_indices = @transform_0, window_bounds = array<i64: 4, 2, 2048>}, {pipeline_mode = #tpu.pipeline_mode<synchronous>, transform_indices = @transform_1, window_bounds = array<i64: 2048, 512>}, {pipeline_mode = #tpu.pipeline_mode<synchronous>, transform_indices = @transform_2, window_bounds = array<i64: 1, 512>}, {pipeline_mode = #tpu.pipeline_mode<synchronous>, transform_indices = @transform_3, window_bounds = array<i64: 512, 128>}, {pipeline_mode = #tpu.pipeline_mode<synchronous>, transform_indices = @transform_4, window_bounds = array<i64: 1, 128>}, {transform_indices = @transform_5, window_bounds = array<i64: 2, 128>}]} {
    %c0 = arith.constant 0 : index
    %c0_0 = arith.constant 0 : index
    %c0_1 = arith.constant 0 : index
    %0 = vector.load %arg1[%c0, %c0_0, %c0_1] : memref<4x2x2048xbf16, #tpu.memory_space<vmem>>, vector<1x2x2048xbf16>
    %1 = vector.shape_cast %0 : vector<1x2x2048xbf16> to vector<2x2048xbf16>
    %2 = arith.extf %1 : vector<2x2048xbf16> to vector<2x2048xf32>
    %c1 = arith.constant 1 : index
    %c0_2 = arith.constant 0 : index
    %c0_3 = arith.constant 0 : index
    %3 = vector.load %arg1[%c1, %c0_2, %c0_3] : memref<4x2x2048xbf16, #tpu.memory_space<vmem>>, vector<1x2x2048xbf16>
    %4 = vector.shape_cast %3 : vector<1x2x2048xbf16> to vector<2x2048xbf16>
    %5 = arith.extf %4 : vector<2x2048xbf16> to vector<2x2048xf32>
    %6 = arith.addf %2, %5 : vector<2x2048xf32>
    %c2 = arith.constant 2 : index
    %c0_4 = arith.constant 0 : index
    %c0_5 = arith.constant 0 : index
    %7 = vector.load %arg1[%c2, %c0_4, %c0_5] : memref<4x2x2048xbf16, #tpu.memory_space<vmem>>, vector<1x2x2048xbf16>
    %8 = vector.shape_cast %7 : vector<1x2x2048xbf16> to vector<2x2048xbf16>
    %9 = arith.extf %8 : vector<2x2048xbf16> to vector<2x2048xf32>
    %10 = arith.addf %6, %9 : vector<2x2048xf32>
    %c3 = arith.constant 3 : index
    %c0_6 = arith.constant 0 : index
    %c0_7 = arith.constant 0 : index
    %11 = vector.load %arg1[%c3, %c0_6, %c0_7] : memref<4x2x2048xbf16, #tpu.memory_space<vmem>>, vector<1x2x2048xbf16>
    %12 = vector.shape_cast %11 : vector<1x2x2048xbf16> to vector<2x2048xbf16>
    %13 = arith.extf %12 : vector<2x2048xbf16> to vector<2x2048xf32>
    %14 = arith.addf %10, %13 : vector<2x2048xf32>
    %15 = arith.truncf %14 : vector<2x2048xf32> to vector<2x2048xbf16>
    %c0_8 = arith.constant 0 : index
    %c0_9 = arith.constant 0 : index
    %16 = vector.load %arg2[%c0_8, %c0_9] : memref<2048x512xbf16, #tpu.memory_space<vmem>>, vector<2048x512xbf16>
    %cst = arith.constant dense<0.000000e+00> : vector<2x512xf32>
    %17 = tpu.matmul %15, %16, %cst {dimension_numbers = #tpu.dot_dimension_numbers<[1], [0], [0], [1], [0, 0, 1, 1], [], []>} : vector<2x2048xbf16>, vector<2048x512xbf16>, vector<2x512xf32> -> vector<2x512xf32>
    %c0_10 = arith.constant 0 : index
    %c0_11 = arith.constant 0 : index
    %18 = vector.load %arg3[%c0_10, %c0_11] : memref<1x512xf32, #tpu.memory_space<vmem>>, vector<1x512xf32>
    %19 = vector.broadcast %18 : vector<1x512xf32> to vector<2x512xf32>
    %20 = arith.addf %17, %19 : vector<2x512xf32>
    %cst_12 = arith.constant 0.000000e+00 : f32
    %21 = vector.broadcast %cst_12 : f32 to vector<2x512xf32>
    %22 = arith.maximumf %20, %21 : vector<2x512xf32>
    %23 = arith.truncf %22 : vector<2x512xf32> to vector<2x512xbf16>
    %c0_13 = arith.constant 0 : index
    %c0_14 = arith.constant 0 : index
    %24 = vector.load %arg4[%c0_13, %c0_14] : memref<512x128xbf16, #tpu.memory_space<vmem>>, vector<512x128xbf16>
    %cst_15 = arith.constant dense<0.000000e+00> : vector<2x128xf32>
    %25 = tpu.matmul %23, %24, %cst_15 {dimension_numbers = #tpu.dot_dimension_numbers<[1], [0], [0], [1], [0, 0, 1, 1], [], []>} : vector<2x512xbf16>, vector<512x128xbf16>, vector<2x128xf32> -> vector<2x128xf32>
    %c0_16 = arith.constant 0 : index
    %c0_17 = arith.constant 0 : index
    %26 = vector.load %arg5[%c0_16, %c0_17] : memref<1x128xf32, #tpu.memory_space<vmem>>, vector<1x128xf32>
    %27 = vector.broadcast %26 : vector<1x128xf32> to vector<2x128xf32>
    %28 = arith.addf %25, %27 : vector<2x128xf32>
    %c0_18 = arith.constant 0 : index
    %c0_19 = arith.constant 0 : index
    %29 = vector.load %arg6[%c0_18, %c0_19] : memref<2x128xf32, #tpu.memory_space<vmem>>, vector<2x128xf32>
    tpu.vector_store %arg6[%c0_18, %c0_19], %28 {strides = array<i32>} : memref<2x128xf32, #tpu.memory_space<vmem>>, vector<2x128xf32>,
    return
  }
  func.func @transform_0(%arg0: i32) -> (i32, i32, i32) {
    %c0_i32 = arith.constant 0 : i32
    %c0_i32_0 = arith.constant 0 : i32
    %c0_i32_1 = arith.constant 0 : i32
    return %c0_i32, %arg0, %c0_i32_0 : i32, i32, i32
  }
  func.func @transform_1(%arg0: i32) -> (i32, i32) {
    %c0_i32 = arith.constant 0 : i32
    %c0_i32_0 = arith.constant 0 : i32
    %c0_i32_1 = arith.constant 0 : i32
    return %c0_i32, %c0_i32_0 : i32, i32
  }
  func.func @transform_2(%arg0: i32) -> (i32, i32) {
    %c0_i32 = arith.constant 0 : i32
    %c0_i32_0 = arith.constant 0 : i32
    %c0_i32_1 = arith.constant 0 : i32
    return %c0_i32, %c0_i32_0 : i32, i32
  }
  func.func @transform_3(%arg0: i32) -> (i32, i32) {
    %c0_i32 = arith.constant 0 : i32
    %c0_i32_0 = arith.constant 0 : i32
    %c0_i32_1 = arith.constant 0 : i32
    return %c0_i32, %c0_i32_0 : i32, i32
  }
  func.func @transform_4(%arg0: i32) -> (i32, i32) {
    %c0_i32 = arith.constant 0 : i32
    %c0_i32_0 = arith.constant 0 : i32
    %c0_i32_1 = arith.constant 0 : i32
    return %c0_i32, %c0_i32_0 : i32, i32
  }
  func.func @transform_5(%arg0: i32) -> (i32, i32) {
    %c0_i32 = arith.constant 0 : i32
    %c0_i32_0 = arith.constant 0 : i32
    return %arg0, %c0_i32 : i32, i32
  }
}

</mosaic_0001>

<llo_original>
// kernel: tpu_custom_call.1
$region0: #{tpu_custom_call.1}
  #allocation0 [shape = 'u32[]', space=smem, size = 0x4, offset = 0x4, fixed_abs, tag = 'smem constant byte address 0x4 - core index']
  #allocation1 [shape = 'u32[144,128]{1,0:T(1,128)}', space=vmem, size = 0x12000, scoped, tag = 'internal scratch']
  %s0 = inlined_call_operand.hbm [shape: bf16[4,2,2048], index: 0, kind: input, shape index: {}]
  %s1 = inlined_call_operand.hbm [shape: bf16[2048,512], index: 1, kind: input, shape index: {}]
  %s2 = inlined_call_operand.hbm [shape: f32[1,512], index: 2, kind: input, shape index: {}]
  %s3 = inlined_call_operand.hbm [shape: bf16[512,128], index: 3, kind: input, shape index: {}]
  %s4 = inlined_call_operand.hbm [shape: f32[1,128], index: 4, kind: input, shape index: {}]
  %s5 = inlined_call_operand.hbm [shape: f32[2,128], index: 5, kind: output, shape index: {}]
  %s6 = sld [smem:[#allocation0]]
  $region50: #{tpu_custom_call.1} parent=0
    _
  %s8 = ssub.s32 1, %s6
  %s9 = scalar_select 0, %s8, %s6
  $region1: #{tpu_custom_call.1} parent=0
    #allocation2 [shape = 'u8[32768]{0}', space=vmem, size = 0x8000, scoped, tag = 'input window, operand 0, single buffered']
    #allocation3 [shape = 's32[1]{0}', space=sflag, size = 0x4, scoped, tag = 'scoped memory for tpu_custom_call.1']
    #allocation4 [shape = 's32[1]{0}', space=sflag, size = 0x4, scoped, tag = 'scoped memory for tpu_custom_call.1']
    #allocation5 [shape = 'u8[2097152]{0}', space=vmem, size = 0x200000, scoped, tag = 'input window, operand 1, single buffered']
    #allocation6 [shape = 's32[1]{0}', space=sflag, size = 0x4, scoped, tag = 'scoped memory for tpu_custom_call.1']
    #allocation7 [shape = 'u8[2048]{0}', space=vmem, size = 0x800, scoped, tag = 'input window, operand 2, single buffered']
    #allocation8 [shape = 'u8[131072]{0}', space=vmem, size = 0x20000, scoped, tag = 'input window, operand 3, single buffered']
    #allocation9 [shape = 's32[1]{0}', space=sflag, size = 0x4, scoped, tag = 'scoped memory for tpu_custom_call.1']
    #allocation10 [shape = 'u8[512]{0}', space=vmem, size = 0x400, scoped, tag = 'input window, operand 4, single buffered']
    #allocation11 [shape = 'u8[1024]{0}', space=vmem, size = 0x400, scoped, tag = 'output window, operand 0, single buffered']
    %10 = vsyncpa [#allocation3], 0
    %11 = vsyncpa [#allocation6], 0
    %12 = vsyncpa [#allocation9], 0
    %13 = vsyncpa [#allocation4], 0
    // Predicated region
    $region2: #{tpu_custom_call.1} parent=1 // pred_check
      _
    $region3: #{tpu_custom_call.1} parent=1 // pred_check_branch
      %15 = sbr.rel (0) target = $region5
    $region4: #{tpu_custom_call.1} parent=1 // pred_region
      %s17 = ssub.s32 1024, 1024
      %18 = vsyncadd [#allocation3], %s17
      %s19 = sshll.u32 [#allocation2], 4
      %s20 = int_to_ptr.vmem [resolvable:$true] %s19
      %25 = dma.hbm_to_vmem [thread:$0]  %s0, 1024, %s20, [#allocation3], 256, 256, 16
    $region5: #{tpu_custom_call.1} parent=1 // pred_fallthru
      _
    // Predicated region
    $region6: #{tpu_custom_call.1} parent=1 // pred_check
      _
    $region7: #{tpu_custom_call.1} parent=1 // pred_check_branch
      %27 = sbr.rel (0) target = $region9
    $region8: #{tpu_custom_call.1} parent=1 // pred_region
      %s29 = ssub.s32 65536, 65536
      %30 = vsyncadd [#allocation6], %s29
      %s31 = sshll.u32 [#allocation5], 4
      %s32 = int_to_ptr.vmem [resolvable:$true] %s31
      %37 = dma.hbm_to_vmem [thread:$0]  %s1, 65536, %s32, [#allocation6], 256, 256, 16
    $region9: #{tpu_custom_call.1} parent=1 // pred_fallthru
      _
    // Predicated region
    $region10: #{tpu_custom_call.1} parent=1 // pred_check
      _
    $region11: #{tpu_custom_call.1} parent=1 // pred_check_branch
      %39 = sbr.rel (0) target = $region13
    $region12: #{tpu_custom_call.1} parent=1 // pred_region
      %s41 = ssub.s32 64, 64
      %42 = vsyncadd [#allocation6], %s41
      %s44 = sshll.u32 [#allocation7], 4
      %s45 = int_to_ptr.vmem [resolvable:$true] %s44
      %47 = dma.hbm_to_vmem [thread:$0]  %s2, 64, %s45, [#allocation6]
    $region13: #{tpu_custom_call.1} parent=1 // pred_fallthru
      _
    // Predicated region
    $region14: #{tpu_custom_call.1} parent=1 // pred_check
      _
    $region15: #{tpu_custom_call.1} parent=1 // pred_check_branch
      %49 = sbr.rel (0) target = $region17
    $region16: #{tpu_custom_call.1} parent=1 // pred_region
      %s51 = ssub.s32 4096, 4096
      %52 = vsyncadd [#allocation9], %s51
      %s53 = sshll.u32 [#allocation8], 4
      %s54 = int_to_ptr.vmem [resolvable:$true] %s53
      %59 = dma.hbm_to_vmem [thread:$0]  %s3, 4096, %s54, [#allocation9], 64, 64, 4
    $region17: #{tpu_custom_call.1} parent=1 // pred_fallthru
      _
    // Predicated region
    $region18: #{tpu_custom_call.1} parent=1 // pred_check
      _
    $region19: #{tpu_custom_call.1} parent=1 // pred_check_branch
      %61 = sbr.rel (0) target = $region21
    $region20: #{tpu_custom_call.1} parent=1 // pred_region
      %s63 = ssub.s32 16, 16
      %64 = vsyncadd [#allocation9], %s63
      %s66 = sshll.u32 [#allocation10], 4
      %s67 = int_to_ptr.vmem [resolvable:$true] %s66
      %69 = dma.hbm_to_vmem [thread:$0]  %s4, 16, %s67, [#allocation9]
    $region21: #{tpu_custom_call.1} parent=1 // pred_fallthru
      _
    // Predicated region
    $region22: #{tpu_custom_call.1} parent=1 // pred_check
      _
    $region23: #{tpu_custom_call.1} parent=1 // pred_check_branch
      %71 = sbr.rel (0) target = $region25
    $region24: #{tpu_custom_call.1} parent=1 // pred_region
      %72 = dma.done [#allocation3], 1024
    $region25: #{tpu_custom_call.1} parent=1 // pred_fallthru
      _
    // Predicated region
    $region26: #{tpu_custom_call.1} parent=1 // pred_check
      _
    $region27: #{tpu_custom_call.1} parent=1 // pred_check_branch
      %74 = sbr.rel (0) target = $region29
    $region28: #{tpu_custom_call.1} parent=1 // pred_region
      %75 = dma.done [#allocation6], 65536
    $region29: #{tpu_custom_call.1} parent=1 // pred_fallthru
      _
    // Predicated region
    $region30: #{tpu_custom_call.1} parent=1 // pred_check
      _
    $region31: #{tpu_custom_call.1} parent=1 // pred_check_branch
      %77 = sbr.rel (0) target = $region33
    $region32: #{tpu_custom_call.1} parent=1 // pred_region
      %78 = dma.done [#allocation6], 64
    $region33: #{tpu_custom_call.1} parent=1 // pred_fallthru
      _
    // Predicated region
    $region34: #{tpu_custom_call.1} parent=1 // pred_check
      _
    $region35: #{tpu_custom_call.1} parent=1 // pred_check_branch
      %80 = sbr.rel (0) target = $region37
    $region36: #{tpu_custom_call.1} parent=1 // pred_region
      %81 = dma.done [#allocation9], 4096
    $region37: #{tpu_custom_call.1} parent=1 // pred_fallthru
      _
    // Predicated region
    $region38: #{tpu_custom_call.1} parent=1 // pred_check
      _
    $region39: #{tpu_custom_call.1} parent=1 // pred_check_branch
      %83 = sbr.rel (0) target = $region41
    $region40: #{tpu_custom_call.1} parent=1 // pred_region
      %84 = dma.done [#allocation9], 16
    $region41: #{tpu_custom_call.1} parent=1 // pred_fallthru
      _
    %v86 = vld [vmem:[#allocation2] sm:$0xff]
    %v87 = vld [vmem:[#allocation2 + $0x8] sm:$0xff]
    %v88 = vunpack.c.l.bf16 %v86
    %v89 = vunpack.c.h.bf16 %v86
    %v90 = vunpack.c.l.bf16 %v87
    %v91 = vunpack.c.h.bf16 %v87
    %s92 = scalar_lea.vmem [#allocation2], 16
    %v93 = vld [vmem:[%s92] sm:$0xff]
    %v94 = vld [vmem:[%s92 + $0x8] sm:$0xff]
    %v95 = vunpack.c.l.bf16 %v93
    %v96 = vunpack.c.h.bf16 %v93
    %v97 = vunpack.c.l.bf16 %v94
    %v98 = vunpack.c.h.bf16 %v94
    %v99 = vadd.f32 %v88, %v95
    %v100 = vadd.f32 %v89, %v96
    %v101 = vadd.f32 %v90, %v97
    %v102 = vadd.f32 %v91, %v98
    %s103 = scalar_lea.vmem [#allocation2], 32
    %v104 = vld [vmem:[%s103] sm:$0xff]
    %v105 = vld [vmem:[%s103 + $0x8] sm:$0xff]
    %v106 = vunpack.c.l.bf16 %v104
    %v107 = vunpack.c.h.bf16 %v104
    %v108 = vunpack.c.l.bf16 %v105
    %v109 = vunpack.c.h.bf16 %v105
    %v110 = vadd.f32 %v99, %v106
    %v111 = vadd.f32 %v100, %v107
    %v112 = vadd.f32 %v101, %v108
    %v113 = vadd.f32 %v102, %v109
    %s114 = scalar_lea.vmem [#allocation2], 48
    %v115 = vld [vmem:[%s114] sm:$0xff]
    %v116 = vld [vmem:[%s114 + $0x8] sm:$0xff]
    %v117 = vunpack.c.l.bf16 %v115
    %v118 = vunpack.c.h.bf16 %v115
    %v119 = vunpack.c.l.bf16 %v116
    %v120 = vunpack.c.h.bf16 %v116
    %v121 = vadd.f32 %v110, %v117
    %v122 = vadd.f32 %v111, %v118
    %v123 = vadd.f32 %v112, %v119
    %v124 = vadd.f32 %v113, %v120
    %v129 = vcombine.high %v121, %v121
    %v131 = vunpack.c.l.s4 1983009808
    %v132 = vunpack.c.0.s8 %v131
    %v133 = vlaneseq
    %v134 = vshrl.u32 %v133, 7
    %v135 = vsub.s32 %v132, %v134
    %v136 = vrot.slane %v121, %v135
    %v138 = vunpack.c.l.s4 1983009808
    %v139 = vunpack.c.0.s8 %v138
    %v140 = vlaneseq
    %v141 = vshrl.u32 %v140, 7
    %v142 = vsub.s32 %v139, %v141
    %v143 = vrot.slane %v129, %v142
    %v144 = vcombine.high %v136, %v136
    %v145 = vcombine.high %v143, %v143
    %v146 = vcombine.high %v122, %v122
    %v148 = vunpack.c.l.s4 1983009808
    %v149 = vunpack.c.0.s8 %v148
    %v150 = vlaneseq
    %v151 = vshrl.u32 %v150, 7
    %v152 = vsub.s32 %v149, %v151
    %v153 = vrot.slane %v122, %v152
    %v155 = vunpack.c.l.s4 1983009808
    %v156 = vunpack.c.0.s8 %v155
    %v157 = vlaneseq
    %v158 = vshrl.u32 %v157, 7
    %v159 = vsub.s32 %v156, %v158
    %v160 = vrot.slane %v146, %v159
    %v161 = vcombine.high %v153, %v153
    %v162 = vcombine.high %v160, %v160
    %v163 = vcombine.high %v123, %v123
    %v165 = vunpack.c.l.s4 1983009808
    %v166 = vunpack.c.0.s8 %v165
    %v167 = vlaneseq
    %v168 = vshrl.u32 %v167, 7
    %v169 = vsub.s32 %v166, %v168
    %v170 = vrot.slane %v123, %v169
    %v172 = vunpack.c.l.s4 1983009808
    %v173 = vunpack.c.0.s8 %v172
    %v174 = vlaneseq
    %v175 = vshrl.u32 %v174, 7
    %v176 = vsub.s32 %v173, %v175
    %v177 = vrot.slane %v163, %v176
    %v178 = vcombine.high %v170, %v170
    %v179 = vcombine.high %v177, %v177
    %v180 = vcombine.high %v124, %v124
    %v182 = vunpack.c.l.s4 1983009808
    %v183 = vunpack.c.0.s8 %v182
    %v184 = vlaneseq
    %v185 = vshrl.u32 %v184, 7
    %v186 = vsub.s32 %v183, %v185
    %v187 = vrot.slane %v124, %v186
    %v189 = vunpack.c.l.s4 1983009808
    %v190 = vunpack.c.0.s8 %v189
    %v191 = vlaneseq
    %v192 = vshrl.u32 %v191, 7
    %v193 = vsub.s32 %v190, %v192
    %v194 = vrot.slane %v180, %v193
    %v195 = vcombine.high %v187, %v187
    %v196 = vcombine.high %v194, %v194
    %v213 = vpack.c.bf16 %v136, %v136
    %v214 = vpack.c.bf16 %v144, %v144
    %v215 = vpack.c.bf16 %v143, %v143
    %v216 = vpack.c.bf16 %v145, %v145
    %v217 = vpack.c.bf16 %v153, %v153
    %v218 = vpack.c.bf16 %v161, %v161
    %v219 = vpack.c.bf16 %v160, %v160
    %v220 = vpack.c.bf16 %v162, %v162
    %v221 = vpack.c.bf16 %v170, %v170
    %v222 = vpack.c.bf16 %v178, %v178
    %v223 = vpack.c.bf16 %v177, %v177
    %v224 = vpack.c.bf16 %v179, %v179
    %v225 = vpack.c.bf16 %v187, %v187
    %v226 = vpack.c.bf16 %v195, %v195
    %v227 = vpack.c.bf16 %v194, %v194
    %v228 = vpack.c.bf16 %v196, %v196
    %v229 = vld [vmem:[#allocation5] sm:$0xff]
    %v230 = vld [vmem:[#allocation5 + $0x8] sm:$0xff]
    %v231 = vld [vmem:[#allocation5 + $0x10] sm:$0xff]
    %v232 = vld [vmem:[#allocation5 + $0x18] sm:$0xff]
    %v233 = vld [vmem:[#allocation5 + $0x20] sm:$0xff]
    %v234 = vld [vmem:[#allocation5 + $0x28] sm:$0xff]
    %v235 = vld [vmem:[#allocation5 + $0x30] sm:$0xff]
    %v236 = vld [vmem:[#allocation5 + $0x38] sm:$0xff]
    %v237 = vld [vmem:[#allocation5 + $0x40] sm:$0xff]
    %v238 = vld [vmem:[#allocation5 + $0x48] sm:$0xff]
    %v239 = vld [vmem:[#allocation5 + $0x50] sm:$0xff]
    %v240 = vld [vmem:[#allocation5 + $0x58] sm:$0xff]
    %v241 = vld [vmem:[#allocation5 + $0x60] sm:$0xff]
    %v242 = vld [vmem:[#allocation5 + $0x68] sm:$0xff]
    %v243 = vld [vmem:[#allocation5 + $0x70] sm:$0xff]
    %v244 = vld [vmem:[#allocation5 + $0x78] sm:$0xff]
    %v245 = vld [vmem:[#allocation5 + $0x80] sm:$0xff]
    %v246 = vld [vmem:[#allocation5 + $0x88] sm:$0xff]
    %v247 = vld [vmem:[#allocation5 + $0x90] sm:$0xff]
    %v248 = vld [vmem:[#allocation5 + $0x98] sm:$0xff]
    %v249 = vld [vmem:[#allocation5 + $0xa0] sm:$0xff]
    %v250 = vld [vmem:[#allocation5 + $0xa8] sm:$0xff]
    %v251 = vld [vmem:[#allocation5 + $0xb0] sm:$0xff]
    %v252 = vld [vmem:[#allocation5 + $0xb8] sm:$0xff]
    %v253 = vld [vmem:[#allocation5 + $0xc0] sm:$0xff]
    %v254 = vld [vmem:[#allocation5 + $0xc8] sm:$0xff]
    %v255 = vld [vmem:[#allocation5 + $0xd0] sm:$0xff]
    %v256 = vld [vmem:[#allocation5 + $0xd8] sm:$0xff]
    %v257 = vld [vmem:[#allocation5 + $0xe0] sm:$0xff]
    %v258 = vld [vmem:[#allocation5 + $0xe8] sm:$0xff]
    %v259 = vld [vmem:[#allocation5 + $0xf0] sm:$0xff]
    %v260 = vld [vmem:[#allocation5 + $0xf8] sm:$0xff]
    %v261 = vld [vmem:[#allocation5 + $0x100] sm:$0xff]
    %v262 = vld [vmem:[#allocation5 + $0x108] sm:$0xff]
    %v263 = vld [vmem:[#allocation5 + $0x110] sm:$0xff]
    %v264 = vld [vmem:[#allocation5 + $0x118] sm:$0xff]
    %v265 = vld [vmem:[#allocation5 + $0x120] sm:$0xff]
    %v266 = vld [vmem:[#allocation5 + $0x128] sm:$0xff]
    %v267 = vld [vmem:[#allocation5 + $0x130] sm:$0xff]
    %v268 = vld [vmem:[#allocation5 + $0x138] sm:$0xff]
    %v269 = vld [vmem:[#allocation5 + $0x140] sm:$0xff]
    %v270 = vld [vmem:[#allocation5 + $0x148] sm:$0xff]
    %v271 = vld [vmem:[#allocation5 + $0x150] sm:$0xff]
    %v272 = vld [vmem:[#allocation5 + $0x158] sm:$0xff]
    %v273 = vld [vmem:[#allocation5 + $0x160] sm:$0xff]
    %v274 = vld [vmem:[#allocation5 + $0x168] sm:$0xff]
    %v275 = vld [vmem:[#allocation5 + $0x170] sm:$0xff]
    %v276 = vld [vmem:[#allocation5 + $0x178] sm:$0xff]
    %v277 = vld [vmem:[#allocation5 + $0x180] sm:$0xff]
    %v278 = vld [vmem:[#allocation5 + $0x188] sm:$0xff]
    %v279 = vld [vmem:[#allocation5 + $0x190] sm:$0xff]
    %v280 = vld [vmem:[#allocation5 + $0x198] sm:$0xff]
    %v281 = vld [vmem:[#allocation5 + $0x1a0] sm:$0xff]
    %v282 = vld [vmem:[#allocation5 + $0x1a8] sm:$0xff]
    %v283 = vld [vmem:[#allocation5 + $0x1b0] sm:$0xff]
    %v284 = vld [vmem:[#allocation5 + $0x1b8] sm:$0xff]
    %v285 = vld [vmem:[#allocation5 + $0x1c0] sm:$0xff]
    %v286 = vld [vmem:[#allocation5 + $0x1c8] sm:$0xff]
    %v287 = vld [vmem:[#allocation5 + $0x1d0] sm:$0xff]
    %v288 = vld [vmem:[#allocation5 + $0x1d8] sm:$0xff]
    %v289 = vld [vmem:[#allocation5 + $0x1e0] sm:$0xff]
    %v290 = vld [vmem:[#allocation5 + $0x1e8] sm:$0xff]
    %v291 = vld [vmem:[#allocation5 + $0x1f0] sm:$0xff]
    %v292 = vld [vmem:[#allocation5 + $0x1f8] sm:$0xff]
    %v293 = vld [vmem:[#allocation5 + $0x200] sm:$0xff]
    %v294 = vld [vmem:[#allocation5 + $0x208] sm:$0xff]
    %v295 = vld [vmem:[#allocation5 + $0x210] sm:$0xff]
    %v296 = vld [vmem:[#allocation5 + $0x218] sm:$0xff]
    %v297 = vld [vmem:[#allocation5 + $0x220] sm:$0xff]
    %v298 = vld [vmem:[#allocation5 + $0x228] sm:$0xff]
    %v299 = vld [vmem:[#allocation5 + $0x230] sm:$0xff]
    %v300 = vld [vmem:[#allocation5 + $0x238] sm:$0xff]
    %v301 = vld [vmem:[#allocation5 + $0x240] sm:$0xff]
    %v302 = vld [vmem:[#allocation5 + $0x248] sm:$0xff]
    %v303 = vld [vmem:[#allocation5 + $0x250] sm:$0xff]
    %v304 = vld [vmem:[#allocation5 + $0x258] sm:$0xff]
    %v305 = vld [vmem:[#allocation5 + $0x260] sm:$0xff]
    %v306 = vld [vmem:[#allocation5 + $0x268] sm:$0xff]
    %v307 = vld [vmem:[#allocation5 + $0x270] sm:$0xff]
    %v308 = vld [vmem:[#allocation5 + $0x278] sm:$0xff]
    %v309 = vld [vmem:[#allocation5 + $0x280] sm:$0xff]
    %v310 = vld [vmem:[#allocation5 + $0x288] sm:$0xff]
    %v311 = vld [vmem:[#allocation5 + $0x290] sm:$0xff]
    %v312 = vld [vmem:[#allocation5 + $0x298] sm:$0xff]
    %v313 = vld [vmem:[#allocation5 + $0x2a0] sm:$0xff]
    %v314 = vld [vmem:[#allocation5 + $0x2a8] sm:$0xff]
    %v315 = vld [vmem:[#allocation5 + $0x2b0] sm:$0xff]
    %v316 = vld [vmem:[#allocation5 + $0x2b8] sm:$0xff]
    %v317 = vld [vmem:[#allocation5 + $0x2c0] sm:$0xff]
    %v318 = vld [vmem:[#allocation5 + $0x2c8] sm:$0xff]
    %v319 = vld [vmem:[#allocation5 + $0x2d0] sm:$0xff]
    %v320 = vld [vmem:[#allocation5 + $0x2d8] sm:$0xff]
    %v321 = vld [vmem:[#allocation5 + $0x2e0] sm:$0xff]
    %v322 = vld [vmem:[#allocation5 + $0x2e8] sm:$0xff]
    %v323 = vld [vmem:[#allocation5 + $0x2f0] sm:$0xff]
    %v324 = vld [vmem:[#allocation5 + $0x2f8] sm:$0xff]
    %v325 = vld [vmem:[#allocation5 + $0x300] sm:$0xff]
    %v326 = vld [vmem:[#allocation5 + $0x308] sm:$0xff]
    %v327 = vld [vmem:[#allocation5 + $0x310] sm:$0xff]
    %v328 = vld [vmem:[#allocation5 + $0x318] sm:$0xff]
    %v329 = vld [vmem:[#allocation5 + $0x320] sm:$0xff]
    %v330 = vld [vmem:[#allocation5 + $0x328] sm:$0xff]
    %v331 = vld [vmem:[#allocation5 + $0x330] sm:$0xff]
    %v332 = vld [vmem:[#allocation5 + $0x338] sm:$0xff]
    %v333 = vld [vmem:[#allocation5 + $0x340] sm:$0xff]
    %v334 = vld [vmem:[#allocation5 + $0x348] sm:$0xff]
    %v335 = vld [vmem:[#allocation5 + $0x350] sm:$0xff]
    %v336 = vld [vmem:[#allocation5 + $0x358] sm:$0xff]
    %v337 = vld [vmem:[#allocation5 + $0x360] sm:$0xff]
    %v338 = vld [vmem:[#allocation5 + $0x368] sm:$0xff]
    %v339 = vld [vmem:[#allocation5 + $0x370] sm:$0xff]
    %v340 = vld [vmem:[#allocation5 + $0x378] sm:$0xff]
    %v341 = vld [vmem:[#allocation5 + $0x380] sm:$0xff]
    %v342 = vld [vmem:[#allocation5 + $0x388] sm:$0xff]
    %v343 = vld [vmem:[#allocation5 + $0x390] sm:$0xff]
    %v344 = vld [vmem:[#allocation5 + $0x398] sm:$0xff]
    %v345 = vld [vmem:[#allocation5 + $0x3a0] sm:$0xff]
    %v346 = vld [vmem:[#allocation5 + $0x3a8] sm:$0xff]
    %v347 = vld [vmem:[#allocation5 + $0x3b0] sm:$0xff]
    %v348 = vld [vmem:[#allocation5 + $0x3b8] sm:$0xff]
    %v349 = vld [vmem:[#allocation5 + $0x3c0] sm:$0xff]
    %v350 = vld [vmem:[#allocation5 + $0x3c8] sm:$0xff]
    %v351 = vld [vmem:[#allocation5 + $0x3d0] sm:$0xff]
    %v352 = vld [vmem:[#allocation5 + $0x3d8] sm:$0xff]
    %v353 = vld [vmem:[#allocation5 + $0x3e0] sm:$0xff]
    %v354 = vld [vmem:[#allocation5 + $0x3e8] sm:$0xff]
    %v355 = vld [vmem:[#allocation5 + $0x3f0] sm:$0xff]
    %v356 = vld [vmem:[#allocation5 + $0x3f8] sm:$0xff]
    %v357 = vld [vmem:[#allocation5 + $0x400] sm:$0xff]
    %v358 = vld [vmem:[#allocation5 + $0x408] sm:$0xff]
    %v359 = vld [vmem:[#allocation5 + $0x410] sm:$0xff]
    %v360 = vld [vmem:[#allocation5 + $0x418] sm:$0xff]
    %v361 = vld [vmem:[#allocation5 + $0x420] sm:$0xff]
    %v362 = vld [vmem:[#allocation5 + $0x428] sm:$0xff]
    %v363 = vld [vmem:[#allocation5 + $0x430] sm:$0xff]
    %v364 = vld [vmem:[#allocation5 + $0x438] sm:$0xff]
    %v365 = vld [vmem:[#allocation5 + $0x440] sm:$0xff]
    %v366 = vld [vmem:[#allocation5 + $0x448] sm:$0xff]
    %v367 = vld [vmem:[#allocation5 + $0x450] sm:$0xff]
    %v368 = vld [vmem:[#allocation5 + $0x458] sm:$0xff]
    %v369 = vld [vmem:[#allocation5 + $0x460] sm:$0xff]
    %v370 = vld [vmem:[#allocation5 + $0x468] sm:$0xff]
    %v371 = vld [vmem:[#allocation5 + $0x470] sm:$0xff]
    %v372 = vld [vmem:[#allocation5 + $0x478] sm:$0xff]
    %v373 = vld [vmem:[#allocation5 + $0x480] sm:$0xff]
    %v374 = vld [vmem:[#allocation5 + $0x488] sm:$0xff]
    %v375 = vld [vmem:[#allocation5 + $0x490] sm:$0xff]
    %v376 = vld [vmem:[#allocation5 + $0x498] sm:$0xff]
    %v377 = vld [vmem:[#allocation5 + $0x4a0] sm:$0xff]
    %v378 = vld [vmem:[#allocation5 + $0x4a8] sm:$0xff]
    %v379 = vld [vmem:[#allocation5 + $0x4b0] sm:$0xff]
    %v380 = vld [vmem:[#allocation5 + $0x4b8] sm:$0xff]
    %v381 = vld [vmem:[#allocation5 + $0x4c0] sm:$0xff]
    %v382 = vld [vmem:[#allocation5 + $0x4c8] sm:$0xff]
    %v383 = vld [vmem:[#allocation5 + $0x4d0] sm:$0xff]
    %v384 = vld [vmem:[#allocation5 + $0x4d8] sm:$0xff]
    %v385 = vld [vmem:[#allocation5 + $0x4e0] sm:$0xff]
    %v386 = vld [vmem:[#allocation5 + $0x4e8] sm:$0xff]
    %v387 = vld [vmem:[#allocation5 + $0x4f0] sm:$0xff]
    %v388 = vld [vmem:[#allocation5 + $0x4f8] sm:$0xff]
    %v389 = vld [vmem:[#allocation5 + $0x500] sm:$0xff]
    %v390 = vld [vmem:[#allocation5 + $0x508] sm:$0xff]
    %v391 = vld [vmem:[#allocation5 + $0x510] sm:$0xff]
    %v392 = vld [vmem:[#allocation5 + $0x518] sm:$0xff]
    %v393 = vld [vmem:[#allocation5 + $0x520] sm:$0xff]
    %v394 = vld [vmem:[#allocation5 + $0x528] sm:$0xff]
    %v395 = vld [vmem:[#allocation5 + $0x530] sm:$0xff]
    %v396 = vld [vmem:[#allocation5 + $0x538] sm:$0xff]
    %v397 = vld [vmem:[#allocation5 + $0x540] sm:$0xff]
    %v398 = vld [vmem:[#allocation5 + $0x548] sm:$0xff]
    %v399 = vld [vmem:[#allocation5 + $0x550] sm:$0xff]
    %v400 = vld [vmem:[#allocation5 + $0x558] sm:$0xff]
    %v401 = vld [vmem:[#allocation5 + $0x560] sm:$0xff]
    %v402 = vld [vmem:[#allocation5 + $0x568] sm:$0xff]
    %v403 = vld [vmem:[#allocation5 + $0x570] sm:$0xff]
    %v404 = vld [vmem:[#allocation5 + $0x578] sm:$0xff]
    %v405 = vld [vmem:[#allocation5 + $0x580] sm:$0xff]
    %v406 = vld [vmem:[#allocation5 + $0x588] sm:$0xff]
    %v407 = vld [vmem:[#allocation5 + $0x590] sm:$0xff]
    %v408 = vld [vmem:[#allocation5 + $0x598] sm:$0xff]
    %v409 = vld [vmem:[#allocation5 + $0x5a0] sm:$0xff]
    %v410 = vld [vmem:[#allocation5 + $0x5a8] sm:$0xff]
    %v411 = vld [vmem:[#allocation5 + $0x5b0] sm:$0xff]
    %v412 = vld [vmem:[#allocation5 + $0x5b8] sm:$0xff]
    %v413 = vld [vmem:[#allocation5 + $0x5c0] sm:$0xff]
    %v414 = vld [vmem:[#allocation5 + $0x5c8] sm:$0xff]
    %v415 = vld [vmem:[#allocation5 + $0x5d0] sm:$0xff]
    %v416 = vld [vmem:[#allocation5 + $0x5d8] sm:$0xff]
    %v417 = vld [vmem:[#allocation5 + $0x5e0] sm:$0xff]
    %v418 = vld [vmem:[#allocation5 + $0x5e8] sm:$0xff]
    %v419 = vld [vmem:[#allocation5 + $0x5f0] sm:$0xff]
    %v420 = vld [vmem:[#allocation5 + $0x5f8] sm:$0xff]
    %v421 = vld [vmem:[#allocation5 + $0x600] sm:$0xff]
    %v422 = vld [vmem:[#allocation5 + $0x608] sm:$0xff]
    %v423 = vld [vmem:[#allocation5 + $0x610] sm:$0xff]
    %v424 = vld [vmem:[#allocation5 + $0x618] sm:$0xff]
    %v425 = vld [vmem:[#allocation5 + $0x620] sm:$0xff]
    %v426 = vld [vmem:[#allocation5 + $0x628] sm:$0xff]
    %v427 = vld [vmem:[#allocation5 + $0x630] sm:$0xff]
    %v428 = vld [vmem:[#allocation5 + $0x638] sm:$0xff]
    %v429 = vld [vmem:[#allocation5 + $0x640] sm:$0xff]
    %v430 = vld [vmem:[#allocation5 + $0x648] sm:$0xff]
    %v431 = vld [vmem:[#allocation5 + $0x650] sm:$0xff]
    %v432 = vld [vmem:[#allocation5 + $0x658] sm:$0xff]
    %v433 = vld [vmem:[#allocation5 + $0x660] sm:$0xff]
    %v434 = vld [vmem:[#allocation5 + $0x668] sm:$0xff]
    %v435 = vld [vmem:[#allocation5 + $0x670] sm:$0xff]
    %v436 = vld [vmem:[#allocation5 + $0x678] sm:$0xff]
    %v437 = vld [vmem:[#allocation5 + $0x680] sm:$0xff]
    %v438 = vld [vmem:[#allocation5 + $0x688] sm:$0xff]
    %v439 = vld [vmem:[#allocation5 + $0x690] sm:$0xff]
    %v440 = vld [vmem:[#allocation5 + $0x698] sm:$0xff]
    %v441 = vld [vmem:[#allocation5 + $0x6a0] sm:$0xff]
    %v442 = vld [vmem:[#allocation5 + $0x6a8] sm:$0xff]
    %v443 = vld [vmem:[#allocation5 + $0x6b0] sm:$0xff]
    %v444 = vld [vmem:[#allocation5 + $0x6b8] sm:$0xff]
    %v445 = vld [vmem:[#allocation5 + $0x6c0] sm:$0xff]
    %v446 = vld [vmem:[#allocation5 + $0x6c8] sm:$0xff]
    %v447 = vld [vmem:[#allocation5 + $0x6d0] sm:$0xff]
    %v448 = vld [vmem:[#allocation5 + $0x6d8] sm:$0xff]
    %v449 = vld [vmem:[#allocation5 + $0x6e0] sm:$0xff]
    %v450 = vld [vmem:[#allocation5 + $0x6e8] sm:$0xff]
    %v451 = vld [vmem:[#allocation5 + $0x6f0] sm:$0xff]
    %v452 = vld [vmem:[#allocation5 + $0x6f8] sm:$0xff]
    %v453 = vld [vmem:[#allocation5 + $0x700] sm:$0xff]
    %v454 = vld [vmem:[#allocation5 + $0x708] sm:$0xff]
    %v455 = vld [vmem:[#allocation5 + $0x710] sm:$0xff]
    %v456 = vld [vmem:[#allocation5 + $0x718] sm:$0xff]
    %v457 = vld [vmem:[#allocation5 + $0x720] sm:$0xff]
    %v458 = vld [vmem:[#allocation5 + $0x728] sm:$0xff]
    %v459 = vld [vmem:[#allocation5 + $0x730] sm:$0xff]
    %v460 = vld [vmem:[#allocation5 + $0x738] sm:$0xff]
    %v461 = vld [vmem:[#allocation5 + $0x740] sm:$0xff]
    %v462 = vld [vmem:[#allocation5 + $0x748] sm:$0xff]
    %v463 = vld [vmem:[#allocation5 + $0x750] sm:$0xff]
    %v464 = vld [vmem:[#allocation5 + $0x758] sm:$0xff]
    %v465 = vld [vmem:[#allocation5 + $0x760] sm:$0xff]
    %v466 = vld [vmem:[#allocation5 + $0x768] sm:$0xff]
    %v467 = vld [vmem:[#allocation5 + $0x770] sm:$0xff]
    %v468 = vld [vmem:[#allocation5 + $0x778] sm:$0xff]
    %v469 = vld [vmem:[#allocation5 + $0x780] sm:$0xff]
    %v470 = vld [vmem:[#allocation5 + $0x788] sm:$0xff]
    %v471 = vld [vmem:[#allocation5 + $0x790] sm:$0xff]
    %v472 = vld [vmem:[#allocation5 + $0x798] sm:$0xff]
    %v473 = vld [vmem:[#allocation5 + $0x7a0] sm:$0xff]
    %v474 = vld [vmem:[#allocation5 + $0x7a8] sm:$0xff]
    %v475 = vld [vmem:[#allocation5 + $0x7b0] sm:$0xff]
    %v476 = vld [vmem:[#allocation5 + $0x7b8] sm:$0xff]
    %v477 = vld [vmem:[#allocation5 + $0x7c0] sm:$0xff]
    %v478 = vld [vmem:[#allocation5 + $0x7c8] sm:$0xff]
    %v479 = vld [vmem:[#allocation5 + $0x7d0] sm:$0xff]
    %v480 = vld [vmem:[#allocation5 + $0x7d8] sm:$0xff]
    %v481 = vld [vmem:[#allocation5 + $0x7e0] sm:$0xff]
    %v482 = vld [vmem:[#allocation5 + $0x7e8] sm:$0xff]
    %v483 = vld [vmem:[#allocation5 + $0x7f0] sm:$0xff]
    %v484 = vld [vmem:[#allocation5 + $0x7f8] sm:$0xff]
    %v485 = vld [vmem:[#allocation5 + $0x800] sm:$0xff]
    %v486 = vld [vmem:[#allocation5 + $0x808] sm:$0xff]
    %v487 = vld [vmem:[#allocation5 + $0x810] sm:$0xff]
    %v488 = vld [vmem:[#allocation5 + $0x818] sm:$0xff]
    %v489 = vld [vmem:[#allocation5 + $0x820] sm:$0xff]
    %v490 = vld [vmem:[#allocation5 + $0x828] sm:$0xff]
    %v491 = vld [vmem:[#allocation5 + $0x830] sm:$0xff]
    %v492 = vld [vmem:[#allocation5 + $0x838] sm:$0xff]
    %v493 = vld [vmem:[#allocation5 + $0x840] sm:$0xff]
    %v494 = vld [vmem:[#allocation5 + $0x848] sm:$0xff]
    %v495 = vld [vmem:[#allocation5 + $0x850] sm:$0xff]
    %v496 = vld [vmem:[#allocation5 + $0x858] sm:$0xff]
    %v497 = vld [vmem:[#allocation5 + $0x860] sm:$0xff]
    %v498 = vld [vmem:[#allocation5 + $0x868] sm:$0xff]
    %v499 = vld [vmem:[#allocation5 + $0x870] sm:$0xff]
    %v500 = vld [vmem:[#allocation5 + $0x878] sm:$0xff]
    %v501 = vld [vmem:[#allocation5 + $0x880] sm:$0xff]
    %v502 = vld [vmem:[#allocation5 + $0x888] sm:$0xff]
    %v503 = vld [vmem:[#allocation5 + $0x890] sm:$0xff]
    %v504 = vld [vmem:[#allocation5 + $0x898] sm:$0xff]
    %v505 = vld [vmem:[#allocation5 + $0x8a0] sm:$0xff]
    %v506 = vld [vmem:[#allocation5 + $0x8a8] sm:$0xff]
    %v507 = vld [vmem:[#allocation5 + $0x8b0] sm:$0xff]
    %v508 = vld [vmem:[#allocation5 + $0x8b8] sm:$0xff]
    %v509 = vld [vmem:[#allocation5 + $0x8c0] sm:$0xff]
    %v510 = vld [vmem:[#allocation5 + $0x8c8] sm:$0xff]
    %v511 = vld [vmem:[#allocation5 + $0x8d0] sm:$0xff]
    %v512 = vld [vmem:[#allocation5 + $0x8d8] sm:$0xff]
    %v513 = vld [vmem:[#allocation5 + $0x8e0] sm:$0xff]
    %v514 = vld [vmem:[#allocation5 + $0x8e8] sm:$0xff]
    %v515 = vld [vmem:[#allocation5 + $0x8f0] sm:$0xff]
    %v516 = vld [vmem:[#allocation5 + $0x8f8] sm:$0xff]
    %v517 = vld [vmem:[#allocation5 + $0x900] sm:$0xff]
    %v518 = vld [vmem:[#allocation5 + $0x908] sm:$0xff]
    %v519 = vld [vmem:[#allocation5 + $0x910] sm:$0xff]
    %v520 = vld [vmem:[#allocation5 + $0x918] sm:$0xff]
    %v521 = vld [vmem:[#allocation5 + $0x920] sm:$0xff]
    %v522 = vld [vmem:[#allocation5 + $0x928] sm:$0xff]
    %v523 = vld [vmem:[#allocation5 + $0x930] sm:$0xff]
    %v524 = vld [vmem:[#allocation5 + $0x938] sm:$0xff]
    %v525 = vld [vmem:[#allocation5 + $0x940] sm:$0xff]
    %v526 = vld [vmem:[#allocation5 + $0x948] sm:$0xff]
    %v527 = vld [vmem:[#allocation5 + $0x950] sm:$0xff]
    %v528 = vld [vmem:[#allocation5 + $0x958] sm:$0xff]
    %v529 = vld [vmem:[#allocation5 + $0x960] sm:$0xff]
    %v530 = vld [vmem:[#allocation5 + $0x968] sm:$0xff]
    %v531 = vld [vmem:[#allocation5 + $0x970] sm:$0xff]
    %v532 = vld [vmem:[#allocation5 + $0x978] sm:$0xff]
    %v533 = vld [vmem:[#allocation5 + $0x980] sm:$0xff]
    %v534 = vld [vmem:[#allocation5 + $0x988] sm:$0xff]
    %v535 = vld [vmem:[#allocation5 + $0x990] sm:$0xff]
    %v536 = vld [vmem:[#allocation5 + $0x998] sm:$0xff]
    %v537 = vld [vmem:[#allocation5 + $0x9a0] sm:$0xff]
    %v538 = vld [vmem:[#allocation5 + $0x9a8] sm:$0xff]
    %v539 = vld [vmem:[#allocation5 + $0x9b0] sm:$0xff]
    %v540 = vld [vmem:[#allocation5 + $0x9b8] sm:$0xff]
    %v541 = vld [vmem:[#allocation5 + $0x9c0] sm:$0xff]
    %v542 = vld [vmem:[#allocation5 + $0x9c8] sm:$0xff]
    %v543 = vld [vmem:[#allocation5 + $0x9d0] sm:$0xff]
    %v544 = vld [vmem:[#allocation5 + $0x9d8] sm:$0xff]
    %v545 = vld [vmem:[#allocation5 + $0x9e0] sm:$0xff]
    %v546 = vld [vmem:[#allocation5 + $0x9e8] sm:$0xff]
    %v547 = vld [vmem:[#allocation5 + $0x9f0] sm:$0xff]
    %v548 = vld [vmem:[#allocation5 + $0x9f8] sm:$0xff]
    %v549 = vld [vmem:[#allocation5 + $0xa00] sm:$0xff]
    %v550 = vld [vmem:[#allocation5 + $0xa08] sm:$0xff]
    %v551 = vld [vmem:[#allocation5 + $0xa10] sm:$0xff]
    %v552 = vld [vmem:[#allocation5 + $0xa18] sm:$0xff]
    %v553 = vld [vmem:[#allocation5 + $0xa20] sm:$0xff]
    %v554 = vld [vmem:[#allocation5 + $0xa28] sm:$0xff]
    %v555 = vld [vmem:[#allocation5 + $0xa30] sm:$0xff]
    %v556 = vld [vmem:[#allocation5 + $0xa38] sm:$0xff]
    %v557 = vld [vmem:[#allocation5 + $0xa40] sm:$0xff]
    %v558 = vld [vmem:[#allocation5 + $0xa48] sm:$0xff]
    %v559 = vld [vmem:[#allocation5 + $0xa50] sm:$0xff]
    %v560 = vld [vmem:[#allocation5 + $0xa58] sm:$0xff]
    %v561 = vld [vmem:[#allocation5 + $0xa60] sm:$0xff]
    %v562 = vld [vmem:[#allocation5 + $0xa68] sm:$0xff]
    %v563 = vld [vmem:[#allocation5 + $0xa70] sm:$0xff]
    %v564 = vld [vmem:[#allocation5 + $0xa78] sm:$0xff]
    %v565 = vld [vmem:[#allocation5 + $0xa80] sm:$0xff]
    %v566 = vld [vmem:[#allocation5 + $0xa88] sm:$0xff]
    %v567 = vld [vmem:[#allocation5 + $0xa90] sm:$0xff]
    %v568 = vld [vmem:[#allocation5 + $0xa98] sm:$0xff]
    %v569 = vld [vmem:[#allocation5 + $0xaa0] sm:$0xff]
    %v570 = vld [vmem:[#allocation5 + $0xaa8] sm:$0xff]
    %v571 = vld [vmem:[#allocation5 + $0xab0] sm:$0xff]
    %v572 = vld [vmem:[#allocation5 + $0xab8] sm:$0xff]
    %v573 = vld [vmem:[#allocation5 + $0xac0] sm:$0xff]
    %v574 = vld [vmem:[#allocation5 + $0xac8] sm:$0xff]
    %v575 = vld [vmem:[#allocation5 + $0xad0] sm:$0xff]
    %v576 = vld [vmem:[#allocation5 + $0xad8] sm:$0xff]
    %v577 = vld [vmem:[#allocation5 + $0xae0] sm:$0xff]
    %v578 = vld [vmem:[#allocation5 + $0xae8] sm:$0xff]
    %v579 = vld [vmem:[#allocation5 + $0xaf0] sm:$0xff]
    %v580 = vld [vmem:[#allocation5 + $0xaf8] sm:$0xff]
    %v581 = vld [vmem:[#allocation5 + $0xb00] sm:$0xff]
    %v582 = vld [vmem:[#allocation5 + $0xb08] sm:$0xff]
    %v583 = vld [vmem:[#allocation5 + $0xb10] sm:$0xff]
    %v584 = vld [vmem:[#allocation5 + $0xb18] sm:$0xff]
    %v585 = vld [vmem:[#allocation5 + $0xb20] sm:$0xff]
    %v586 = vld [vmem:[#allocation5 + $0xb28] sm:$0xff]
    %v587 = vld [vmem:[#allocation5 + $0xb30] sm:$0xff]
    %v588 = vld [vmem:[#allocation5 + $0xb38] sm:$0xff]
    %v589 = vld [vmem:[#allocation5 + $0xb40] sm:$0xff]
    %v590 = vld [vmem:[#allocation5 + $0xb48] sm:$0xff]
    %v591 = vld [vmem:[#allocation5 + $0xb50] sm:$0xff]
    %v592 = vld [vmem:[#allocation5 + $0xb58] sm:$0xff]
    %v593 = vld [vmem:[#allocation5 + $0xb60] sm:$0xff]
    %v594 = vld [vmem:[#allocation5 + $0xb68] sm:$0xff]
    %v595 = vld [vmem:[#allocation5 + $0xb70] sm:$0xff]
    %v596 = vld [vmem:[#allocation5 + $0xb78] sm:$0xff]
    %v597 = vld [vmem:[#allocation5 + $0xb80] sm:$0xff]
    %v598 = vld [vmem:[#allocation5 + $0xb88] sm:$0xff]
    %v599 = vld [vmem:[#allocation5 + $0xb90] sm:$0xff]
    %v600 = vld [vmem:[#allocation5 + $0xb98] sm:$0xff]
    %v601 = vld [vmem:[#allocation5 + $0xba0] sm:$0xff]
    %v602 = vld [vmem:[#allocation5 + $0xba8] sm:$0xff]
    %v603 = vld [vmem:[#allocation5 + $0xbb0] sm:$0xff]
    %v604 = vld [vmem:[#allocation5 + $0xbb8] sm:$0xff]
    %v605 = vld [vmem:[#allocation5 + $0xbc0] sm:$0xff]
    %v606 = vld [vmem:[#allocation5 + $0xbc8] sm:$0xff]
    %v607 = vld [vmem:[#allocation5 + $0xbd0] sm:$0xff]
    %v608 = vld [vmem:[#allocation5 + $0xbd8] sm:$0xff]
    %v609 = vld [vmem:[#allocation5 + $0xbe0] sm:$0xff]
    %v610 = vld [vmem:[#allocation5 + $0xbe8] sm:$0xff]
    %v611 = vld [vmem:[#allocation5 + $0xbf0] sm:$0xff]
    %v612 = vld [vmem:[#allocation5 + $0xbf8] sm:$0xff]
    %v613 = vld [vmem:[#allocation5 + $0xc00] sm:$0xff]
    %v614 = vld [vmem:[#allocation5 + $0xc08] sm:$0xff]
    %v615 = vld [vmem:[#allocation5 + $0xc10] sm:$0xff]
    %v616 = vld [vmem:[#allocation5 + $0xc18] sm:$0xff]
    %v617 = vld [vmem:[#allocation5 + $0xc20] sm:$0xff]
    %v618 = vld [vmem:[#allocation5 + $0xc28] sm:$0xff]
    %v619 = vld [vmem:[#allocation5 + $0xc30] sm:$0xff]
    %v620 = vld [vmem:[#allocation5 + $0xc38] sm:$0xff]
    %v621 = vld [vmem:[#allocation5 + $0xc40] sm:$0xff]
    %v622 = vld [vmem:[#allocation5 + $0xc48] sm:$0xff]
    %v623 = vld [vmem:[#allocation5 + $0xc50] sm:$0xff]
    %v624 = vld [vmem:[#allocation5 + $0xc58] sm:$0xff]
    %v625 = vld [vmem:[#allocation5 + $0xc60] sm:$0xff]
    %v626 = vld [vmem:[#allocation5 + $0xc68] sm:$0xff]
    %v627 = vld [vmem:[#allocation5 + $0xc70] sm:$0xff]
    %v628 = vld [vmem:[#allocation5 + $0xc78] sm:$0xff]
    %v629 = vld [vmem:[#allocation5 + $0xc80] sm:$0xff]
    %v630 = vld [vmem:[#allocation5 + $0xc88] sm:$0xff]
    %v631 = vld [vmem:[#allocation5 + $0xc90] sm:$0xff]
    %v632 = vld [vmem:[#allocation5 + $0xc98] sm:$0xff]
    %v633 = vld [vmem:[#allocation5 + $0xca0] sm:$0xff]
    %v634 = vld [vmem:[#allocation5 + $0xca8] sm:$0xff]
    %v635 = vld [vmem:[#allocation5 + $0xcb0] sm:$0xff]
    %v636 = vld [vmem:[#allocation5 + $0xcb8] sm:$0xff]
    %v637 = vld [vmem:[#allocation5 + $0xcc0] sm:$0xff]
    %v638 = vld [vmem:[#allocation5 + $0xcc8] sm:$0xff]
    %v639 = vld [vmem:[#allocation5 + $0xcd0] sm:$0xff]
    %v640 = vld [vmem:[#allocation5 + $0xcd8] sm:$0xff]
    %v641 = vld [vmem:[#allocation5 + $0xce0] sm:$0xff]
    %v642 = vld [vmem:[#allocation5 + $0xce8] sm:$0xff]
    %v643 = vld [vmem:[#allocation5 + $0xcf0] sm:$0xff]
    %v644 = vld [vmem:[#allocation5 + $0xcf8] sm:$0xff]
    %v645 = vld [vmem:[#allocation5 + $0xd00] sm:$0xff]
    %v646 = vld [vmem:[#allocation5 + $0xd08] sm:$0xff]
    %v647 = vld [vmem:[#allocation5 + $0xd10] sm:$0xff]
    %v648 = vld [vmem:[#allocation5 + $0xd18] sm:$0xff]
    %v649 = vld [vmem:[#allocation5 + $0xd20] sm:$0xff]
    %v650 = vld [vmem:[#allocation5 + $0xd28] sm:$0xff]
    %v651 = vld [vmem:[#allocation5 + $0xd30] sm:$0xff]
    %v652 = vld [vmem:[#allocation5 + $0xd38] sm:$0xff]
    %v653 = vld [vmem:[#allocation5 + $0xd40] sm:$0xff]
    %v654 = vld [vmem:[#allocation5 + $0xd48] sm:$0xff]
    %v655 = vld [vmem:[#allocation5 + $0xd50] sm:$0xff]
    %v656 = vld [vmem:[#allocation5 + $0xd58] sm:$0xff]
    %v657 = vld [vmem:[#allocation5 + $0xd60] sm:$0xff]
    %v658 = vld [vmem:[#allocation5 + $0xd68] sm:$0xff]
    %v659 = vld [vmem:[#allocation5 + $0xd70] sm:$0xff]
    %v660 = vld [vmem:[#allocation5 + $0xd78] sm:$0xff]
    %v661 = vld [vmem:[#allocation5 + $0xd80] sm:$0xff]
    %v662 = vld [vmem:[#allocation5 + $0xd88] sm:$0xff]
    %v663 = vld [vmem:[#allocation5 + $0xd90] sm:$0xff]
    %v664 = vld [vmem:[#allocation5 + $0xd98] sm:$0xff]
    %v665 = vld [vmem:[#allocation5 + $0xda0] sm:$0xff]
    %v666 = vld [vmem:[#allocation5 + $0xda8] sm:$0xff]
    %v667 = vld [vmem:[#allocation5 + $0xdb0] sm:$0xff]
    %v668 = vld [vmem:[#allocation5 + $0xdb8] sm:$0xff]
    %v669 = vld [vmem:[#allocation5 + $0xdc0] sm:$0xff]
    %v670 = vld [vmem:[#allocation5 + $0xdc8] sm:$0xff]
    %v671 = vld [vmem:[#allocation5 + $0xdd0] sm:$0xff]
    %v672 = vld [vmem:[#allocation5 + $0xdd8] sm:$0xff]
    %v673 = vld [vmem:[#allocation5 + $0xde0] sm:$0xff]
    %v674 = vld [vmem:[#allocation5 + $0xde8] sm:$0xff]
    %v675 = vld [vmem:[#allocation5 + $0xdf0] sm:$0xff]
    %v676 = vld [vmem:[#allocation5 + $0xdf8] sm:$0xff]
    %v677 = vld [vmem:[#allocation5 + $0xe00] sm:$0xff]
    %v678 = vld [vmem:[#allocation5 + $0xe08] sm:$0xff]
    %v679 = vld [vmem:[#allocation5 + $0xe10] sm:$0xff]
    %v680 = vld [vmem:[#allocation5 + $0xe18] sm:$0xff]
    %v681 = vld [vmem:[#allocation5 + $0xe20] sm:$0xff]
    %v682 = vld [vmem:[#allocation5 + $0xe28] sm:$0xff]
    %v683 = vld [vmem:[#allocation5 + $0xe30] sm:$0xff]
    %v684 = vld [vmem:[#allocation5 + $0xe38] sm:$0xff]
    %v685 = vld [vmem:[#allocation5 + $0xe40] sm:$0xff]
    %v686 = vld [vmem:[#allocation5 + $0xe48] sm:$0xff]
    %v687 = vld [vmem:[#allocation5 + $0xe50] sm:$0xff]
    %v688 = vld [vmem:[#allocation5 + $0xe58] sm:$0xff]
    %v689 = vld [vmem:[#allocation5 + $0xe60] sm:$0xff]
    %v690 = vld [vmem:[#allocation5 + $0xe68] sm:$0xff]
    %v691 = vld [vmem:[#allocation5 + $0xe70] sm:$0xff]
    %v692 = vld [vmem:[#allocation5 + $0xe78] sm:$0xff]
    %v693 = vld [vmem:[#allocation5 + $0xe80] sm:$0xff]
    %v694 = vld [vmem:[#allocation5 + $0xe88] sm:$0xff]
    %v695 = vld [vmem:[#allocation5 + $0xe90] sm:$0xff]
    %v696 = vld [vmem:[#allocation5 + $0xe98] sm:$0xff]
    %v697 = vld [vmem:[#allocation5 + $0xea0] sm:$0xff]
    %v698 = vld [vmem:[#allocation5 + $0xea8] sm:$0xff]
    %v699 = vld [vmem:[#allocation5 + $0xeb0] sm:$0xff]
    %v700 = vld [vmem:[#allocation5 + $0xeb8] sm:$0xff]
    %v701 = vld [vmem:[#allocation5 + $0xec0] sm:$0xff]
    %v702 = vld [vmem:[#allocation5 + $0xec8] sm:$0xff]
    %v703 = vld [vmem:[#allocation5 + $0xed0] sm:$0xff]
    %v704 = vld [vmem:[#allocation5 + $0xed8] sm:$0xff]
    %v705 = vld [vmem:[#allocation5 + $0xee0] sm:$0xff]
    %v706 = vld [vmem:[#allocation5 + $0xee8] sm:$0xff]
    %v707 = vld [vmem:[#allocation5 + $0xef0] sm:$0xff]
    %v708 = vld [vmem:[#allocation5 + $0xef8] sm:$0xff]
    %v709 = vld [vmem:[#allocation5 + $0xf00] sm:$0xff]
    %v710 = vld [vmem:[#allocation5 + $0xf08] sm:$0xff]
    %v711 = vld [vmem:[#allocation5 + $0xf10] sm:$0xff]
    %v712 = vld [vmem:[#allocation5 + $0xf18] sm:$0xff]
    %v713 = vld [vmem:[#allocation5 + $0xf20] sm:$0xff]
    %v714 = vld [vmem:[#allocation5 + $0xf28] sm:$0xff]
    %v715 = vld [vmem:[#allocation5 + $0xf30] sm:$0xff]
    %v716 = vld [vmem:[#allocation5 + $0xf38] sm:$0xff]
    %v717 = vld [vmem:[#allocation5 + $0xf40] sm:$0xff]
    %v718 = vld [vmem:[#allocation5 + $0xf48] sm:$0xff]
    %v719 = vld [vmem:[#allocation5 + $0xf50] sm:$0xff]
    %v720 = vld [vmem:[#allocation5 + $0xf58] sm:$0xff]
    %v721 = vld [vmem:[#allocation5 + $0xf60] sm:$0xff]
    %v722 = vld [vmem:[#allocation5 + $0xf68] sm:$0xff]
    %v723 = vld [vmem:[#allocation5 + $0xf70] sm:$0xff]
    %v724 = vld [vmem:[#allocation5 + $0xf78] sm:$0xff]
    %v725 = vld [vmem:[#allocation5 + $0xf80] sm:$0xff]
    %v726 = vld [vmem:[#allocation5 + $0xf88] sm:$0xff]
    %v727 = vld [vmem:[#allocation5 + $0xf90] sm:$0xff]
    %v728 = vld [vmem:[#allocation5 + $0xf98] sm:$0xff]
    %v729 = vld [vmem:[#allocation5 + $0xfa0] sm:$0xff]
    %v730 = vld [vmem:[#allocation5 + $0xfa8] sm:$0xff]
    %v731 = vld [vmem:[#allocation5 + $0xfb0] sm:$0xff]
    %v732 = vld [vmem:[#allocation5 + $0xfb8] sm:$0xff]
    %v733 = vld [vmem:[#allocation5 + $0xfc0] sm:$0xff]
    %v734 = vld [vmem:[#allocation5 + $0xfc8] sm:$0xff]
    %v735 = vld [vmem:[#allocation5 + $0xfd0] sm:$0xff]
    %v736 = vld [vmem:[#allocation5 + $0xfd8] sm:$0xff]
    %v737 = vld [vmem:[#allocation5 + $0xfe0] sm:$0xff]
    %v738 = vld [vmem:[#allocation5 + $0xfe8] sm:$0xff]
    %v739 = vld [vmem:[#allocation5 + $0xff0] sm:$0xff]
    %v740 = vld [vmem:[#allocation5 + $0xff8] sm:$0xff]
    %v741 = vld [vmem:[#allocation7] sm:$0xf]
    %v743 = vlaneseq
    %v744 = vshrl.u32 %v743, 7
    %v745 = vsub.s32 0, %v744
    %v746 = vrot.slane %v741, %v745
    %v747 = vlaneseq
    %v748 = vshrl.u32 %v747, 7
    %v749 = vsub.s32 1, %v748
    %v750 = vrot.slane %v741, %v749
    %v751 = vlaneseq
    %v752 = vshrl.u32 %v751, 7
    %v753 = vsub.s32 2, %v752
    %v754 = vrot.slane %v741, %v753
    %v755 = vlaneseq
    %v756 = vshrl.u32 %v755, 7
    %v757 = vsub.s32 3, %v756
    %v758 = vrot.slane %v741, %v757
    %v1275 = vunpack.c.l.b16 %v229
    %v1276 = vunpack.c.h.b16 %v229
    %v1277 = vunpack.c.l.b16 %v230
    %v1278 = vunpack.c.h.b16 %v230
    %v1279 = vunpack.c.l.b16 %v231
    %v1280 = vunpack.c.h.b16 %v231
    %v1281 = vunpack.c.l.b16 %v232
    %v1282 = vunpack.c.h.b16 %v232
    %v1283 = vunpack.c.l.b16 %v233
    %v1284 = vunpack.c.h.b16 %v233
    %v1285 = vunpack.c.l.b16 %v234
    %v1286 = vunpack.c.h.b16 %v234
    %v1287 = vunpack.c.l.b16 %v235
    %v1288 = vunpack.c.h.b16 %v235
    %v1289 = vunpack.c.l.b16 %v236
    %v1290 = vunpack.c.h.b16 %v236
    %v1291 = vunpack.c.l.b16 %v237
    %v1292 = vunpack.c.h.b16 %v237
    %v1293 = vunpack.c.l.b16 %v238
    %v1294 = vunpack.c.h.b16 %v238
    %v1295 = vunpack.c.l.b16 %v239
    %v1296 = vunpack.c.h.b16 %v239
    %v1297 = vunpack.c.l.b16 %v240
    %v1298 = vunpack.c.h.b16 %v240
    %v1299 = vunpack.c.l.b16 %v241
    %v1300 = vunpack.c.h.b16 %v241
    %v1301 = vunpack.c.l.b16 %v242
    %v1302 = vunpack.c.h.b16 %v242
    %v1303 = vunpack.c.l.b16 %v243
    %v1304 = vunpack.c.h.b16 %v243
    %v1305 = vunpack.c.l.b16 %v244
    %v1306 = vunpack.c.h.b16 %v244
    %v1307 = vunpack.c.l.b16 %v245
    %v1308 = vunpack.c.h.b16 %v245
    %v1309 = vunpack.c.l.b16 %v246
    %v1310 = vunpack.c.h.b16 %v246
    %v1311 = vunpack.c.l.b16 %v247
    %v1312 = vunpack.c.h.b16 %v247
    %v1313 = vunpack.c.l.b16 %v248
    %v1314 = vunpack.c.h.b16 %v248
    %v1315 = vunpack.c.l.b16 %v249
    %v1316 = vunpack.c.h.b16 %v249
    %v1317 = vunpack.c.l.b16 %v250
    %v1318 = vunpack.c.h.b16 %v250
    %v1319 = vunpack.c.l.b16 %v251
    %v1320 = vunpack.c.h.b16 %v251
    %v1321 = vunpack.c.l.b16 %v252
    %v1322 = vunpack.c.h.b16 %v252
    %v1323 = vunpack.c.l.b16 %v253
    %v1324 = vunpack.c.h.b16 %v253
    %v1325 = vunpack.c.l.b16 %v254
    %v1326 = vunpack.c.h.b16 %v254
    %v1327 = vunpack.c.l.b16 %v255
    %v1328 = vunpack.c.h.b16 %v255
    %v1329 = vunpack.c.l.b16 %v256
    %v1330 = vunpack.c.h.b16 %v256
    %v1331 = vunpack.c.l.b16 %v257
    %v1332 = vunpack.c.h.b16 %v257
    %v1333 = vunpack.c.l.b16 %v258
    %v1334 = vunpack.c.h.b16 %v258
    %v1335 = vunpack.c.l.b16 %v259
    %v1336 = vunpack.c.h.b16 %v259
    %v1337 = vunpack.c.l.b16 %v260
    %v1338 = vunpack.c.h.b16 %v260
    %v1339 = vunpack.c.l.b16 %v261
    %v1340 = vunpack.c.h.b16 %v261
    %v1341 = vunpack.c.l.b16 %v262
    %v1342 = vunpack.c.h.b16 %v262
    %v1343 = vunpack.c.l.b16 %v263
    %v1344 = vunpack.c.h.b16 %v263
    %v1345 = vunpack.c.l.b16 %v264
    %v1346 = vunpack.c.h.b16 %v264
    %v1347 = vunpack.c.l.b16 %v265
    %v1348 = vunpack.c.h.b16 %v265
    %v1349 = vunpack.c.l.b16 %v266
    %v1350 = vunpack.c.h.b16 %v266
    %v1351 = vunpack.c.l.b16 %v267
    %v1352 = vunpack.c.h.b16 %v267
    %v1353 = vunpack.c.l.b16 %v268
    %v1354 = vunpack.c.h.b16 %v268
    %v1355 = vunpack.c.l.b16 %v269
    %v1356 = vunpack.c.h.b16 %v269
    %v1357 = vunpack.c.l.b16 %v270
    %v1358 = vunpack.c.h.b16 %v270
    %v1359 = vunpack.c.l.b16 %v271
    %v1360 = vunpack.c.h.b16 %v271
    %v1361 = vunpack.c.l.b16 %v272
    %v1362 = vunpack.c.h.b16 %v272
    %v1363 = vunpack.c.l.b16 %v273
    %v1364 = vunpack.c.h.b16 %v273
    %v1365 = vunpack.c.l.b16 %v274
    %v1366 = vunpack.c.h.b16 %v274
    %v1367 = vunpack.c.l.b16 %v275
    %v1368 = vunpack.c.h.b16 %v275
    %v1369 = vunpack.c.l.b16 %v276
    %v1370 = vunpack.c.h.b16 %v276
    %v1371 = vunpack.c.l.b16 %v277
    %v1372 = vunpack.c.h.b16 %v277
    %v1373 = vunpack.c.l.b16 %v278
    %v1374 = vunpack.c.h.b16 %v278
    %v1375 = vunpack.c.l.b16 %v279
    %v1376 = vunpack.c.h.b16 %v279
    %v1377 = vunpack.c.l.b16 %v280
    %v1378 = vunpack.c.h.b16 %v280
    %v1379 = vunpack.c.l.b16 %v281
    %v1380 = vunpack.c.h.b16 %v281
    %v1381 = vunpack.c.l.b16 %v282
    %v1382 = vunpack.c.h.b16 %v282
    %v1383 = vunpack.c.l.b16 %v283
    %v1384 = vunpack.c.h.b16 %v283
    %v1385 = vunpack.c.l.b16 %v284
    %v1386 = vunpack.c.h.b16 %v284
    %v1387 = vunpack.c.l.b16 %v285
    %v1388 = vunpack.c.h.b16 %v285
    %v1389 = vunpack.c.l.b16 %v286
    %v1390 = vunpack.c.h.b16 %v286
    %v1391 = vunpack.c.l.b16 %v287
    %v1392 = vunpack.c.h.b16 %v287
    %v1393 = vunpack.c.l.b16 %v288
    %v1394 = vunpack.c.h.b16 %v288
    %v1395 = vunpack.c.l.b16 %v289
    %v1396 = vunpack.c.h.b16 %v289
    %v1397 = vunpack.c.l.b16 %v290
    %v1398 = vunpack.c.h.b16 %v290
    %v1399 = vunpack.c.l.b16 %v291
    %v1400 = vunpack.c.h.b16 %v291
    %v1401 = vunpack.c.l.b16 %v292
    %v1402 = vunpack.c.h.b16 %v292
    %v1403 = vunpack.c.l.b16 %v293
    %v1404 = vunpack.c.h.b16 %v293
    %v1405 = vunpack.c.l.b16 %v294
    %v1406 = vunpack.c.h.b16 %v294
    %v1407 = vunpack.c.l.b16 %v295
    %v1408 = vunpack.c.h.b16 %v295
    %v1409 = vunpack.c.l.b16 %v296
    %v1410 = vunpack.c.h.b16 %v296
    %v1411 = vunpack.c.l.b16 %v297
    %v1412 = vunpack.c.h.b16 %v297
    %v1413 = vunpack.c.l.b16 %v298
    %v1414 = vunpack.c.h.b16 %v298
    %v1415 = vunpack.c.l.b16 %v299
    %v1416 = vunpack.c.h.b16 %v299
    %v1417 = vunpack.c.l.b16 %v300
    %v1418 = vunpack.c.h.b16 %v300
    %v1419 = vunpack.c.l.b16 %v301
    %v1420 = vunpack.c.h.b16 %v301
    %v1421 = vunpack.c.l.b16 %v302
    %v1422 = vunpack.c.h.b16 %v302
    %v1423 = vunpack.c.l.b16 %v303
    %v1424 = vunpack.c.h.b16 %v303
    %v1425 = vunpack.c.l.b16 %v304
    %v1426 = vunpack.c.h.b16 %v304
    %v1427 = vunpack.c.l.b16 %v305
    %v1428 = vunpack.c.h.b16 %v305
    %v1429 = vunpack.c.l.b16 %v306
    %v1430 = vunpack.c.h.b16 %v306
    %v1431 = vunpack.c.l.b16 %v307
    %v1432 = vunpack.c.h.b16 %v307
    %v1433 = vunpack.c.l.b16 %v308
    %v1434 = vunpack.c.h.b16 %v308
    %v1435 = vunpack.c.l.b16 %v309
    %v1436 = vunpack.c.h.b16 %v309
    %v1437 = vunpack.c.l.b16 %v310
    %v1438 = vunpack.c.h.b16 %v310
    %v1439 = vunpack.c.l.b16 %v311
    %v1440 = vunpack.c.h.b16 %v311
    %v1441 = vunpack.c.l.b16 %v312
    %v1442 = vunpack.c.h.b16 %v312
    %v1443 = vunpack.c.l.b16 %v313
    %v1444 = vunpack.c.h.b16 %v313
    %v1445 = vunpack.c.l.b16 %v314
    %v1446 = vunpack.c.h.b16 %v314
    %v1447 = vunpack.c.l.b16 %v315
    %v1448 = vunpack.c.h.b16 %v315
    %v1449 = vunpack.c.l.b16 %v316
    %v1450 = vunpack.c.h.b16 %v316
    %v1451 = vunpack.c.l.b16 %v317
    %v1452 = vunpack.c.h.b16 %v317
    %v1453 = vunpack.c.l.b16 %v318
    %v1454 = vunpack.c.h.b16 %v318
    %v1455 = vunpack.c.l.b16 %v319
    %v1456 = vunpack.c.h.b16 %v319
    %v1457 = vunpack.c.l.b16 %v320
    %v1458 = vunpack.c.h.b16 %v320
    %v1459 = vunpack.c.l.b16 %v321
    %v1460 = vunpack.c.h.b16 %v321
    %v1461 = vunpack.c.l.b16 %v322
    %v1462 = vunpack.c.h.b16 %v322
    %v1463 = vunpack.c.l.b16 %v323
    %v1464 = vunpack.c.h.b16 %v323
    %v1465 = vunpack.c.l.b16 %v324
    %v1466 = vunpack.c.h.b16 %v324
    %v1467 = vunpack.c.l.b16 %v325
    %v1468 = vunpack.c.h.b16 %v325
    %v1469 = vunpack.c.l.b16 %v326
    %v1470 = vunpack.c.h.b16 %v326
    %v1471 = vunpack.c.l.b16 %v327
    %v1472 = vunpack.c.h.b16 %v327
    %v1473 = vunpack.c.l.b16 %v328
    %v1474 = vunpack.c.h.b16 %v328
    %v1475 = vunpack.c.l.b16 %v329
    %v1476 = vunpack.c.h.b16 %v329
    %v1477 = vunpack.c.l.b16 %v330
    %v1478 = vunpack.c.h.b16 %v330
    %v1479 = vunpack.c.l.b16 %v331
    %v1480 = vunpack.c.h.b16 %v331
    %v1481 = vunpack.c.l.b16 %v332
    %v1482 = vunpack.c.h.b16 %v332
    %v1483 = vunpack.c.l.b16 %v333
    %v1484 = vunpack.c.h.b16 %v333
    %v1485 = vunpack.c.l.b16 %v334
    %v1486 = vunpack.c.h.b16 %v334
    %v1487 = vunpack.c.l.b16 %v335
    %v1488 = vunpack.c.h.b16 %v335
    %v1489 = vunpack.c.l.b16 %v336
    %v1490 = vunpack.c.h.b16 %v336
    %v1491 = vunpack.c.l.b16 %v337
    %v1492 = vunpack.c.h.b16 %v337
    %v1493 = vunpack.c.l.b16 %v338
    %v1494 = vunpack.c.h.b16 %v338
    %v1495 = vunpack.c.l.b16 %v339
    %v1496 = vunpack.c.h.b16 %v339
    %v1497 = vunpack.c.l.b16 %v340
    %v1498 = vunpack.c.h.b16 %v340
    %v1499 = vunpack.c.l.b16 %v341
    %v1500 = vunpack.c.h.b16 %v341
    %v1501 = vunpack.c.l.b16 %v342
    %v1502 = vunpack.c.h.b16 %v342
    %v1503 = vunpack.c.l.b16 %v343
    %v1504 = vunpack.c.h.b16 %v343
    %v1505 = vunpack.c.l.b16 %v344
    %v1506 = vunpack.c.h.b16 %v344
    %v1507 = vunpack.c.l.b16 %v345
    %v1508 = vunpack.c.h.b16 %v345
    %v1509 = vunpack.c.l.b16 %v346
    %v1510 = vunpack.c.h.b16 %v346
    %v1511 = vunpack.c.l.b16 %v347
    %v1512 = vunpack.c.h.b16 %v347
    %v1513 = vunpack.c.l.b16 %v348
    %v1514 = vunpack.c.h.b16 %v348
    %v1515 = vunpack.c.l.b16 %v349
    %v1516 = vunpack.c.h.b16 %v349
    %v1517 = vunpack.c.l.b16 %v350
    %v1518 = vunpack.c.h.b16 %v350
    %v1519 = vunpack.c.l.b16 %v351
    %v1520 = vunpack.c.h.b16 %v351
    %v1521 = vunpack.c.l.b16 %v352
    %v1522 = vunpack.c.h.b16 %v352
    %v1523 = vunpack.c.l.b16 %v353
    %v1524 = vunpack.c.h.b16 %v353
    %v1525 = vunpack.c.l.b16 %v354
    %v1526 = vunpack.c.h.b16 %v354
    %v1527 = vunpack.c.l.b16 %v355
    %v1528 = vunpack.c.h.b16 %v355
    %v1529 = vunpack.c.l.b16 %v356
    %v1530 = vunpack.c.h.b16 %v356
    %v1531 = vunpack.c.l.b16 %v357
    %v1532 = vunpack.c.h.b16 %v357
    %v1533 = vunpack.c.l.b16 %v358
    %v1534 = vunpack.c.h.b16 %v358
    %v1535 = vunpack.c.l.b16 %v359
    %v1536 = vunpack.c.h.b16 %v359
    %v1537 = vunpack.c.l.b16 %v360
    %v1538 = vunpack.c.h.b16 %v360
    %v1539 = vunpack.c.l.b16 %v361
    %v1540 = vunpack.c.h.b16 %v361
    %v1541 = vunpack.c.l.b16 %v362
    %v1542 = vunpack.c.h.b16 %v362
    %v1543 = vunpack.c.l.b16 %v363
    %v1544 = vunpack.c.h.b16 %v363
    %v1545 = vunpack.c.l.b16 %v364
    %v1546 = vunpack.c.h.b16 %v364
    %v1547 = vunpack.c.l.b16 %v365
    %v1548 = vunpack.c.h.b16 %v365
    %v1549 = vunpack.c.l.b16 %v366
    %v1550 = vunpack.c.h.b16 %v366
    %v1551 = vunpack.c.l.b16 %v367
    %v1552 = vunpack.c.h.b16 %v367
    %v1553 = vunpack.c.l.b16 %v368
    %v1554 = vunpack.c.h.b16 %v368
    %v1555 = vunpack.c.l.b16 %v369
    %v1556 = vunpack.c.h.b16 %v369
    %v1557 = vunpack.c.l.b16 %v370
    %v1558 = vunpack.c.h.b16 %v370
    %v1559 = vunpack.c.l.b16 %v371
    %v1560 = vunpack.c.h.b16 %v371
    %v1561 = vunpack.c.l.b16 %v372
    %v1562 = vunpack.c.h.b16 %v372
    %v1563 = vunpack.c.l.b16 %v373
    %v1564 = vunpack.c.h.b16 %v373
    %v1565 = vunpack.c.l.b16 %v374
    %v1566 = vunpack.c.h.b16 %v374
    %v1567 = vunpack.c.l.b16 %v375
    %v1568 = vunpack.c.h.b16 %v375
    %v1569 = vunpack.c.l.b16 %v376
    %v1570 = vunpack.c.h.b16 %v376
    %v1571 = vunpack.c.l.b16 %v377
    %v1572 = vunpack.c.h.b16 %v377
    %v1573 = vunpack.c.l.b16 %v378
    %v1574 = vunpack.c.h.b16 %v378
    %v1575 = vunpack.c.l.b16 %v379
    %v1576 = vunpack.c.h.b16 %v379
    %v1577 = vunpack.c.l.b16 %v380
    %v1578 = vunpack.c.h.b16 %v380
    %v1579 = vunpack.c.l.b16 %v381
    %v1580 = vunpack.c.h.b16 %v381
    %v1581 = vunpack.c.l.b16 %v382
    %v1582 = vunpack.c.h.b16 %v382
    %v1583 = vunpack.c.l.b16 %v383
    %v1584 = vunpack.c.h.b16 %v383
    %v1585 = vunpack.c.l.b16 %v384
    %v1586 = vunpack.c.h.b16 %v384
    %v1587 = vunpack.c.l.b16 %v385
    %v1588 = vunpack.c.h.b16 %v385
    %v1589 = vunpack.c.l.b16 %v386
    %v1590 = vunpack.c.h.b16 %v386
    %v1591 = vunpack.c.l.b16 %v387
    %v1592 = vunpack.c.h.b16 %v387
    %v1593 = vunpack.c.l.b16 %v388
    %v1594 = vunpack.c.h.b16 %v388
    %v1595 = vunpack.c.l.b16 %v389
    %v1596 = vunpack.c.h.b16 %v389
    %v1597 = vunpack.c.l.b16 %v390
    %v1598 = vunpack.c.h.b16 %v390
    %v1599 = vunpack.c.l.b16 %v391
    %v1600 = vunpack.c.h.b16 %v391
    %v1601 = vunpack.c.l.b16 %v392
    %v1602 = vunpack.c.h.b16 %v392
    %v1603 = vunpack.c.l.b16 %v393
    %v1604 = vunpack.c.h.b16 %v393
    %v1605 = vunpack.c.l.b16 %v394
    %v1606 = vunpack.c.h.b16 %v394
    %v1607 = vunpack.c.l.b16 %v395
    %v1608 = vunpack.c.h.b16 %v395
    %v1609 = vunpack.c.l.b16 %v396
    %v1610 = vunpack.c.h.b16 %v396
    %v1611 = vunpack.c.l.b16 %v397
    %v1612 = vunpack.c.h.b16 %v397
    %v1613 = vunpack.c.l.b16 %v398
    %v1614 = vunpack.c.h.b16 %v398
    %v1615 = vunpack.c.l.b16 %v399
    %v1616 = vunpack.c.h.b16 %v399
    %v1617 = vunpack.c.l.b16 %v400
    %v1618 = vunpack.c.h.b16 %v400
    %v1619 = vunpack.c.l.b16 %v401
    %v1620 = vunpack.c.h.b16 %v401
    %v1621 = vunpack.c.l.b16 %v402
    %v1622 = vunpack.c.h.b16 %v402
    %v1623 = vunpack.c.l.b16 %v403
    %v1624 = vunpack.c.h.b16 %v403
    %v1625 = vunpack.c.l.b16 %v404
    %v1626 = vunpack.c.h.b16 %v404
    %v1627 = vunpack.c.l.b16 %v405
    %v1628 = vunpack.c.h.b16 %v405
    %v1629 = vunpack.c.l.b16 %v406
    %v1630 = vunpack.c.h.b16 %v406
    %v1631 = vunpack.c.l.b16 %v407
    %v1632 = vunpack.c.h.b16 %v407
    %v1633 = vunpack.c.l.b16 %v408
    %v1634 = vunpack.c.h.b16 %v408
    %v1635 = vunpack.c.l.b16 %v409
    %v1636 = vunpack.c.h.b16 %v409
    %v1637 = vunpack.c.l.b16 %v410
    %v1638 = vunpack.c.h.b16 %v410
    %v1639 = vunpack.c.l.b16 %v411
    %v1640 = vunpack.c.h.b16 %v411
    %v1641 = vunpack.c.l.b16 %v412
    %v1642 = vunpack.c.h.b16 %v412
    %v1643 = vunpack.c.l.b16 %v413
    %v1644 = vunpack.c.h.b16 %v413
    %v1645 = vunpack.c.l.b16 %v414
    %v1646 = vunpack.c.h.b16 %v414
    %v1647 = vunpack.c.l.b16 %v415
    %v1648 = vunpack.c.h.b16 %v415
    %v1649 = vunpack.c.l.b16 %v416
    %v1650 = vunpack.c.h.b16 %v416
    %v1651 = vunpack.c.l.b16 %v417
    %v1652 = vunpack.c.h.b16 %v417
    %v1653 = vunpack.c.l.b16 %v418
    %v1654 = vunpack.c.h.b16 %v418
    %v1655 = vunpack.c.l.b16 %v419
    %v1656 = vunpack.c.h.b16 %v419
    %v1657 = vunpack.c.l.b16 %v420
    %v1658 = vunpack.c.h.b16 %v420
    %v1659 = vunpack.c.l.b16 %v421
    %v1660 = vunpack.c.h.b16 %v421
    %v1661 = vunpack.c.l.b16 %v422
    %v1662 = vunpack.c.h.b16 %v422
    %v1663 = vunpack.c.l.b16 %v423
    %v1664 = vunpack.c.h.b16 %v423
    %v1665 = vunpack.c.l.b16 %v424
    %v1666 = vunpack.c.h.b16 %v424
    %v1667 = vunpack.c.l.b16 %v425
    %v1668 = vunpack.c.h.b16 %v425
    %v1669 = vunpack.c.l.b16 %v426
    %v1670 = vunpack.c.h.b16 %v426
    %v1671 = vunpack.c.l.b16 %v427
    %v1672 = vunpack.c.h.b16 %v427
    %v1673 = vunpack.c.l.b16 %v428
    %v1674 = vunpack.c.h.b16 %v428
    %v1675 = vunpack.c.l.b16 %v429
    %v1676 = vunpack.c.h.b16 %v429
    %v1677 = vunpack.c.l.b16 %v430
    %v1678 = vunpack.c.h.b16 %v430
    %v1679 = vunpack.c.l.b16 %v431
    %v1680 = vunpack.c.h.b16 %v431
    %v1681 = vunpack.c.l.b16 %v432
    %v1682 = vunpack.c.h.b16 %v432
    %v1683 = vunpack.c.l.b16 %v433
    %v1684 = vunpack.c.h.b16 %v433
    %v1685 = vunpack.c.l.b16 %v434
    %v1686 = vunpack.c.h.b16 %v434
    %v1687 = vunpack.c.l.b16 %v435
    %v1688 = vunpack.c.h.b16 %v435
    %v1689 = vunpack.c.l.b16 %v436
    %v1690 = vunpack.c.h.b16 %v436
    %v1691 = vunpack.c.l.b16 %v437
    %v1692 = vunpack.c.h.b16 %v437
    %v1693 = vunpack.c.l.b16 %v438
    %v1694 = vunpack.c.h.b16 %v438
    %v1695 = vunpack.c.l.b16 %v439
    %v1696 = vunpack.c.h.b16 %v439
    %v1697 = vunpack.c.l.b16 %v440
    %v1698 = vunpack.c.h.b16 %v440
    %v1699 = vunpack.c.l.b16 %v441
    %v1700 = vunpack.c.h.b16 %v441
    %v1701 = vunpack.c.l.b16 %v442
    %v1702 = vunpack.c.h.b16 %v442
    %v1703 = vunpack.c.l.b16 %v443
    %v1704 = vunpack.c.h.b16 %v443
    %v1705 = vunpack.c.l.b16 %v444
    %v1706 = vunpack.c.h.b16 %v444
    %v1707 = vunpack.c.l.b16 %v445
    %v1708 = vunpack.c.h.b16 %v445
    %v1709 = vunpack.c.l.b16 %v446
    %v1710 = vunpack.c.h.b16 %v446
    %v1711 = vunpack.c.l.b16 %v447
    %v1712 = vunpack.c.h.b16 %v447
    %v1713 = vunpack.c.l.b16 %v448
    %v1714 = vunpack.c.h.b16 %v448
    %v1715 = vunpack.c.l.b16 %v449
    %v1716 = vunpack.c.h.b16 %v449
    %v1717 = vunpack.c.l.b16 %v450
    %v1718 = vunpack.c.h.b16 %v450
    %v1719 = vunpack.c.l.b16 %v451
    %v1720 = vunpack.c.h.b16 %v451
    %v1721 = vunpack.c.l.b16 %v452
    %v1722 = vunpack.c.h.b16 %v452
    %v1723 = vunpack.c.l.b16 %v453
    %v1724 = vunpack.c.h.b16 %v453
    %v1725 = vunpack.c.l.b16 %v454
    %v1726 = vunpack.c.h.b16 %v454
    %v1727 = vunpack.c.l.b16 %v455
    %v1728 = vunpack.c.h.b16 %v455
    %v1729 = vunpack.c.l.b16 %v456
    %v1730 = vunpack.c.h.b16 %v456
    %v1731 = vunpack.c.l.b16 %v457
    %v1732 = vunpack.c.h.b16 %v457
    %v1733 = vunpack.c.l.b16 %v458
    %v1734 = vunpack.c.h.b16 %v458
    %v1735 = vunpack.c.l.b16 %v459
    %v1736 = vunpack.c.h.b16 %v459
    %v1737 = vunpack.c.l.b16 %v460
    %v1738 = vunpack.c.h.b16 %v460
    %v1739 = vunpack.c.l.b16 %v461
    %v1740 = vunpack.c.h.b16 %v461
    %v1741 = vunpack.c.l.b16 %v462
    %v1742 = vunpack.c.h.b16 %v462
    %v1743 = vunpack.c.l.b16 %v463
    %v1744 = vunpack.c.h.b16 %v463
    %v1745 = vunpack.c.l.b16 %v464
    %v1746 = vunpack.c.h.b16 %v464
    %v1747 = vunpack.c.l.b16 %v465
    %v1748 = vunpack.c.h.b16 %v465
    %v1749 = vunpack.c.l.b16 %v466
    %v1750 = vunpack.c.h.b16 %v466
    %v1751 = vunpack.c.l.b16 %v467
    %v1752 = vunpack.c.h.b16 %v467
    %v1753 = vunpack.c.l.b16 %v468
    %v1754 = vunpack.c.h.b16 %v468
    %v1755 = vunpack.c.l.b16 %v469
    %v1756 = vunpack.c.h.b16 %v469
    %v1757 = vunpack.c.l.b16 %v470
    %v1758 = vunpack.c.h.b16 %v470
    %v1759 = vunpack.c.l.b16 %v471
    %v1760 = vunpack.c.h.b16 %v471
    %v1761 = vunpack.c.l.b16 %v472
    %v1762 = vunpack.c.h.b16 %v472
    %v1763 = vunpack.c.l.b16 %v473
    %v1764 = vunpack.c.h.b16 %v473
    %v1765 = vunpack.c.l.b16 %v474
    %v1766 = vunpack.c.h.b16 %v474
    %v1767 = vunpack.c.l.b16 %v475
    %v1768 = vunpack.c.h.b16 %v475
    %v1769 = vunpack.c.l.b16 %v476
    %v1770 = vunpack.c.h.b16 %v476
    %v1771 = vunpack.c.l.b16 %v477
    %v1772 = vunpack.c.h.b16 %v477
    %v1773 = vunpack.c.l.b16 %v478
    %v1774 = vunpack.c.h.b16 %v478
    %v1775 = vunpack.c.l.b16 %v479
    %v1776 = vunpack.c.h.b16 %v479
    %v1777 = vunpack.c.l.b16 %v480
    %v1778 = vunpack.c.h.b16 %v480
    %v1779 = vunpack.c.l.b16 %v481
    %v1780 = vunpack.c.h.b16 %v481
    %v1781 = vunpack.c.l.b16 %v482
    %v1782 = vunpack.c.h.b16 %v482
    %v1783 = vunpack.c.l.b16 %v483
    %v1784 = vunpack.c.h.b16 %v483
    %v1785 = vunpack.c.l.b16 %v484
    %v1786 = vunpack.c.h.b16 %v484
    %v1787 = vunpack.c.l.b16 %v485
    %v1788 = vunpack.c.h.b16 %v485
    %v1789 = vunpack.c.l.b16 %v486
    %v1790 = vunpack.c.h.b16 %v486
    %v1791 = vunpack.c.l.b16 %v487
    %v1792 = vunpack.c.h.b16 %v487
    %v1793 = vunpack.c.l.b16 %v488
    %v1794 = vunpack.c.h.b16 %v488
    %v1795 = vunpack.c.l.b16 %v489
    %v1796 = vunpack.c.h.b16 %v489
    %v1797 = vunpack.c.l.b16 %v490
    %v1798 = vunpack.c.h.b16 %v490
    %v1799 = vunpack.c.l.b16 %v491
    %v1800 = vunpack.c.h.b16 %v491
    %v1801 = vunpack.c.l.b16 %v492
    %v1802 = vunpack.c.h.b16 %v492
    %v1803 = vunpack.c.l.b16 %v493
    %v1804 = vunpack.c.h.b16 %v493
    %v1805 = vunpack.c.l.b16 %v494
    %v1806 = vunpack.c.h.b16 %v494
    %v1807 = vunpack.c.l.b16 %v495
    %v1808 = vunpack.c.h.b16 %v495
    %v1809 = vunpack.c.l.b16 %v496
    %v1810 = vunpack.c.h.b16 %v496
    %v1811 = vunpack.c.l.b16 %v497
    %v1812 = vunpack.c.h.b16 %v497
    %v1813 = vunpack.c.l.b16 %v498
    %v1814 = vunpack.c.h.b16 %v498
    %v1815 = vunpack.c.l.b16 %v499
    %v1816 = vunpack.c.h.b16 %v499
    %v1817 = vunpack.c.l.b16 %v500
    %v1818 = vunpack.c.h.b16 %v500
    %v1819 = vunpack.c.l.b16 %v501
    %v1820 = vunpack.c.h.b16 %v501
    %v1821 = vunpack.c.l.b16 %v502
    %v1822 = vunpack.c.h.b16 %v502
    %v1823 = vunpack.c.l.b16 %v503
    %v1824 = vunpack.c.h.b16 %v503
    %v1825 = vunpack.c.l.b16 %v504
    %v1826 = vunpack.c.h.b16 %v504
    %v1827 = vunpack.c.l.b16 %v505
    %v1828 = vunpack.c.h.b16 %v505
    %v1829 = vunpack.c.l.b16 %v506
    %v1830 = vunpack.c.h.b16 %v506
    %v1831 = vunpack.c.l.b16 %v507
    %v1832 = vunpack.c.h.b16 %v507
    %v1833 = vunpack.c.l.b16 %v508
    %v1834 = vunpack.c.h.b16 %v508
    %v1835 = vunpack.c.l.b16 %v509
    %v1836 = vunpack.c.h.b16 %v509
    %v1837 = vunpack.c.l.b16 %v510
    %v1838 = vunpack.c.h.b16 %v510
    %v1839 = vunpack.c.l.b16 %v511
    %v1840 = vunpack.c.h.b16 %v511
    %v1841 = vunpack.c.l.b16 %v512
    %v1842 = vunpack.c.h.b16 %v512
    %v1843 = vunpack.c.l.b16 %v513
    %v1844 = vunpack.c.h.b16 %v513
    %v1845 = vunpack.c.l.b16 %v514
    %v1846 = vunpack.c.h.b16 %v514
    %v1847 = vunpack.c.l.b16 %v515
    %v1848 = vunpack.c.h.b16 %v515
    %v1849 = vunpack.c.l.b16 %v516
    %v1850 = vunpack.c.h.b16 %v516
    %v1851 = vunpack.c.l.b16 %v517
    %v1852 = vunpack.c.h.b16 %v517
    %v1853 = vunpack.c.l.b16 %v518
    %v1854 = vunpack.c.h.b16 %v518
    %v1855 = vunpack.c.l.b16 %v519
    %v1856 = vunpack.c.h.b16 %v519
    %v1857 = vunpack.c.l.b16 %v520
    %v1858 = vunpack.c.h.b16 %v520
    %v1859 = vunpack.c.l.b16 %v521
    %v1860 = vunpack.c.h.b16 %v521
    %v1861 = vunpack.c.l.b16 %v522
    %v1862 = vunpack.c.h.b16 %v522
    %v1863 = vunpack.c.l.b16 %v523
    %v1864 = vunpack.c.h.b16 %v523
    %v1865 = vunpack.c.l.b16 %v524
    %v1866 = vunpack.c.h.b16 %v524
    %v1867 = vunpack.c.l.b16 %v525
    %v1868 = vunpack.c.h.b16 %v525
    %v1869 = vunpack.c.l.b16 %v526
    %v1870 = vunpack.c.h.b16 %v526
    %v1871 = vunpack.c.l.b16 %v527
    %v1872 = vunpack.c.h.b16 %v527
    %v1873 = vunpack.c.l.b16 %v528
    %v1874 = vunpack.c.h.b16 %v528
    %v1875 = vunpack.c.l.b16 %v529
    %v1876 = vunpack.c.h.b16 %v529
    %v1877 = vunpack.c.l.b16 %v530
    %v1878 = vunpack.c.h.b16 %v530
    %v1879 = vunpack.c.l.b16 %v531
    %v1880 = vunpack.c.h.b16 %v531
    %v1881 = vunpack.c.l.b16 %v532
    %v1882 = vunpack.c.h.b16 %v532
    %v1883 = vunpack.c.l.b16 %v533
    %v1884 = vunpack.c.h.b16 %v533
    %v1885 = vunpack.c.l.b16 %v534
    %v1886 = vunpack.c.h.b16 %v534
    %v1887 = vunpack.c.l.b16 %v535
    %v1888 = vunpack.c.h.b16 %v535
    %v1889 = vunpack.c.l.b16 %v536
    %v1890 = vunpack.c.h.b16 %v536
    %v1891 = vunpack.c.l.b16 %v537
    %v1892 = vunpack.c.h.b16 %v537
    %v1893 = vunpack.c.l.b16 %v538
    %v1894 = vunpack.c.h.b16 %v538
    %v1895 = vunpack.c.l.b16 %v539
    %v1896 = vunpack.c.h.b16 %v539
    %v1897 = vunpack.c.l.b16 %v540
    %v1898 = vunpack.c.h.b16 %v540
    %v1899 = vunpack.c.l.b16 %v541
    %v1900 = vunpack.c.h.b16 %v541
    %v1901 = vunpack.c.l.b16 %v542
    %v1902 = vunpack.c.h.b16 %v542
    %v1903 = vunpack.c.l.b16 %v543
    %v1904 = vunpack.c.h.b16 %v543
    %v1905 = vunpack.c.l.b16 %v544
    %v1906 = vunpack.c.h.b16 %v544
    %v1907 = vunpack.c.l.b16 %v545
    %v1908 = vunpack.c.h.b16 %v545
    %v1909 = vunpack.c.l.b16 %v546
    %v1910 = vunpack.c.h.b16 %v546
    %v1911 = vunpack.c.l.b16 %v547
    %v1912 = vunpack.c.h.b16 %v547
    %v1913 = vunpack.c.l.b16 %v548
    %v1914 = vunpack.c.h.b16 %v548
    %v1915 = vunpack.c.l.b16 %v549
    %v1916 = vunpack.c.h.b16 %v549
    %v1917 = vunpack.c.l.b16 %v550
    %v1918 = vunpack.c.h.b16 %v550
    %v1919 = vunpack.c.l.b16 %v551
    %v1920 = vunpack.c.h.b16 %v551
    %v1921 = vunpack.c.l.b16 %v552
    %v1922 = vunpack.c.h.b16 %v552
    %v1923 = vunpack.c.l.b16 %v553
    %v1924 = vunpack.c.h.b16 %v553
    %v1925 = vunpack.c.l.b16 %v554
    %v1926 = vunpack.c.h.b16 %v554
    %v1927 = vunpack.c.l.b16 %v555
    %v1928 = vunpack.c.h.b16 %v555
    %v1929 = vunpack.c.l.b16 %v556
    %v1930 = vunpack.c.h.b16 %v556
    %v1931 = vunpack.c.l.b16 %v557
    %v1932 = vunpack.c.h.b16 %v557
    %v1933 = vunpack.c.l.b16 %v558
    %v1934 = vunpack.c.h.b16 %v558
    %v1935 = vunpack.c.l.b16 %v559
    %v1936 = vunpack.c.h.b16 %v559
    %v1937 = vunpack.c.l.b16 %v560
    %v1938 = vunpack.c.h.b16 %v560
    %v1939 = vunpack.c.l.b16 %v561
    %v1940 = vunpack.c.h.b16 %v561
    %v1941 = vunpack.c.l.b16 %v562
    %v1942 = vunpack.c.h.b16 %v562
    %v1943 = vunpack.c.l.b16 %v563
    %v1944 = vunpack.c.h.b16 %v563
    %v1945 = vunpack.c.l.b16 %v564
    %v1946 = vunpack.c.h.b16 %v564
    %v1947 = vunpack.c.l.b16 %v565
    %v1948 = vunpack.c.h.b16 %v565
    %v1949 = vunpack.c.l.b16 %v566
    %v1950 = vunpack.c.h.b16 %v566
    %v1951 = vunpack.c.l.b16 %v567
    %v1952 = vunpack.c.h.b16 %v567
    %v1953 = vunpack.c.l.b16 %v568
    %v1954 = vunpack.c.h.b16 %v568
    %v1955 = vunpack.c.l.b16 %v569
    %v1956 = vunpack.c.h.b16 %v569
    %v1957 = vunpack.c.l.b16 %v570
    %v1958 = vunpack.c.h.b16 %v570
    %v1959 = vunpack.c.l.b16 %v571
    %v1960 = vunpack.c.h.b16 %v571
    %v1961 = vunpack.c.l.b16 %v572
    %v1962 = vunpack.c.h.b16 %v572
    %v1963 = vunpack.c.l.b16 %v573
    %v1964 = vunpack.c.h.b16 %v573
    %v1965 = vunpack.c.l.b16 %v574
    %v1966 = vunpack.c.h.b16 %v574
    %v1967 = vunpack.c.l.b16 %v575
    %v1968 = vunpack.c.h.b16 %v575
    %v1969 = vunpack.c.l.b16 %v576
    %v1970 = vunpack.c.h.b16 %v576
    %v1971 = vunpack.c.l.b16 %v577
    %v1972 = vunpack.c.h.b16 %v577
    %v1973 = vunpack.c.l.b16 %v578
    %v1974 = vunpack.c.h.b16 %v578
    %v1975 = vunpack.c.l.b16 %v579
    %v1976 = vunpack.c.h.b16 %v579
    %v1977 = vunpack.c.l.b16 %v580
    %v1978 = vunpack.c.h.b16 %v580
    %v1979 = vunpack.c.l.b16 %v581
    %v1980 = vunpack.c.h.b16 %v581
    %v1981 = vunpack.c.l.b16 %v582
    %v1982 = vunpack.c.h.b16 %v582
    %v1983 = vunpack.c.l.b16 %v583
    %v1984 = vunpack.c.h.b16 %v583
    %v1985 = vunpack.c.l.b16 %v584
    %v1986 = vunpack.c.h.b16 %v584
    %v1987 = vunpack.c.l.b16 %v585
    %v1988 = vunpack.c.h.b16 %v585
    %v1989 = vunpack.c.l.b16 %v586
    %v1990 = vunpack.c.h.b16 %v586
    %v1991 = vunpack.c.l.b16 %v587
    %v1992 = vunpack.c.h.b16 %v587
    %v1993 = vunpack.c.l.b16 %v588
    %v1994 = vunpack.c.h.b16 %v588
    %v1995 = vunpack.c.l.b16 %v589
    %v1996 = vunpack.c.h.b16 %v589
    %v1997 = vunpack.c.l.b16 %v590
    %v1998 = vunpack.c.h.b16 %v590
    %v1999 = vunpack.c.l.b16 %v591
    %v2000 = vunpack.c.h.b16 %v591
    %v2001 = vunpack.c.l.b16 %v592
    %v2002 = vunpack.c.h.b16 %v592
    %v2003 = vunpack.c.l.b16 %v593
    %v2004 = vunpack.c.h.b16 %v593
    %v2005 = vunpack.c.l.b16 %v594
    %v2006 = vunpack.c.h.b16 %v594
    %v2007 = vunpack.c.l.b16 %v595
    %v2008 = vunpack.c.h.b16 %v595
    %v2009 = vunpack.c.l.b16 %v596
    %v2010 = vunpack.c.h.b16 %v596
    %v2011 = vunpack.c.l.b16 %v597
    %v2012 = vunpack.c.h.b16 %v597
    %v2013 = vunpack.c.l.b16 %v598
    %v2014 = vunpack.c.h.b16 %v598
    %v2015 = vunpack.c.l.b16 %v599
    %v2016 = vunpack.c.h.b16 %v599
    %v2017 = vunpack.c.l.b16 %v600
    %v2018 = vunpack.c.h.b16 %v600
    %v2019 = vunpack.c.l.b16 %v601
    %v2020 = vunpack.c.h.b16 %v601
    %v2021 = vunpack.c.l.b16 %v602
    %v2022 = vunpack.c.h.b16 %v602
    %v2023 = vunpack.c.l.b16 %v603
    %v2024 = vunpack.c.h.b16 %v603
    %v2025 = vunpack.c.l.b16 %v604
    %v2026 = vunpack.c.h.b16 %v604
    %v2027 = vunpack.c.l.b16 %v605
    %v2028 = vunpack.c.h.b16 %v605
    %v2029 = vunpack.c.l.b16 %v606
    %v2030 = vunpack.c.h.b16 %v606
    %v2031 = vunpack.c.l.b16 %v607
    %v2032 = vunpack.c.h.b16 %v607
    %v2033 = vunpack.c.l.b16 %v608
    %v2034 = vunpack.c.h.b16 %v608
    %v2035 = vunpack.c.l.b16 %v609
    %v2036 = vunpack.c.h.b16 %v609
    %v2037 = vunpack.c.l.b16 %v610
    %v2038 = vunpack.c.h.b16 %v610
    %v2039 = vunpack.c.l.b16 %v611
    %v2040 = vunpack.c.h.b16 %v611
    %v2041 = vunpack.c.l.b16 %v612
    %v2042 = vunpack.c.h.b16 %v612
    %v2043 = vunpack.c.l.b16 %v613
    %v2044 = vunpack.c.h.b16 %v613
    %v2045 = vunpack.c.l.b16 %v614
    %v2046 = vunpack.c.h.b16 %v614
    %v2047 = vunpack.c.l.b16 %v615
    %v2048 = vunpack.c.h.b16 %v615
    %v2049 = vunpack.c.l.b16 %v616
    %v2050 = vunpack.c.h.b16 %v616
    %v2051 = vunpack.c.l.b16 %v617
    %v2052 = vunpack.c.h.b16 %v617
    %v2053 = vunpack.c.l.b16 %v618
    %v2054 = vunpack.c.h.b16 %v618
    %v2055 = vunpack.c.l.b16 %v619
    %v2056 = vunpack.c.h.b16 %v619
    %v2057 = vunpack.c.l.b16 %v620
    %v2058 = vunpack.c.h.b16 %v620
    %v2059 = vunpack.c.l.b16 %v621
    %v2060 = vunpack.c.h.b16 %v621
    %v2061 = vunpack.c.l.b16 %v622
    %v2062 = vunpack.c.h.b16 %v622
    %v2063 = vunpack.c.l.b16 %v623
    %v2064 = vunpack.c.h.b16 %v623
    %v2065 = vunpack.c.l.b16 %v624
    %v2066 = vunpack.c.h.b16 %v624
    %v2067 = vunpack.c.l.b16 %v625
    %v2068 = vunpack.c.h.b16 %v625
    %v2069 = vunpack.c.l.b16 %v626
    %v2070 = vunpack.c.h.b16 %v626
    %v2071 = vunpack.c.l.b16 %v627
    %v2072 = vunpack.c.h.b16 %v627
    %v2073 = vunpack.c.l.b16 %v628
    %v2074 = vunpack.c.h.b16 %v628
    %v2075 = vunpack.c.l.b16 %v629
    %v2076 = vunpack.c.h.b16 %v629
    %v2077 = vunpack.c.l.b16 %v630
    %v2078 = vunpack.c.h.b16 %v630
    %v2079 = vunpack.c.l.b16 %v631
    %v2080 = vunpack.c.h.b16 %v631
    %v2081 = vunpack.c.l.b16 %v632
    %v2082 = vunpack.c.h.b16 %v632
    %v2083 = vunpack.c.l.b16 %v633
    %v2084 = vunpack.c.h.b16 %v633
    %v2085 = vunpack.c.l.b16 %v634
    %v2086 = vunpack.c.h.b16 %v634
    %v2087 = vunpack.c.l.b16 %v635
    %v2088 = vunpack.c.h.b16 %v635
    %v2089 = vunpack.c.l.b16 %v636
    %v2090 = vunpack.c.h.b16 %v636
    %v2091 = vunpack.c.l.b16 %v637
    %v2092 = vunpack.c.h.b16 %v637
    %v2093 = vunpack.c.l.b16 %v638
    %v2094 = vunpack.c.h.b16 %v638
    %v2095 = vunpack.c.l.b16 %v639
    %v2096 = vunpack.c.h.b16 %v639
    %v2097 = vunpack.c.l.b16 %v640
    %v2098 = vunpack.c.h.b16 %v640
    %v2099 = vunpack.c.l.b16 %v641
    %v2100 = vunpack.c.h.b16 %v641
    %v2101 = vunpack.c.l.b16 %v642
    %v2102 = vunpack.c.h.b16 %v642
    %v2103 = vunpack.c.l.b16 %v643
    %v2104 = vunpack.c.h.b16 %v643
    %v2105 = vunpack.c.l.b16 %v644
    %v2106 = vunpack.c.h.b16 %v644
    %v2107 = vunpack.c.l.b16 %v645
    %v2108 = vunpack.c.h.b16 %v645
    %v2109 = vunpack.c.l.b16 %v646
    %v2110 = vunpack.c.h.b16 %v646
    %v2111 = vunpack.c.l.b16 %v647
    %v2112 = vunpack.c.h.b16 %v647
    %v2113 = vunpack.c.l.b16 %v648
    %v2114 = vunpack.c.h.b16 %v648
    %v2115 = vunpack.c.l.b16 %v649
    %v2116 = vunpack.c.h.b16 %v649
    %v2117 = vunpack.c.l.b16 %v650
    %v2118 = vunpack.c.h.b16 %v650
    %v2119 = vunpack.c.l.b16 %v651
    %v2120 = vunpack.c.h.b16 %v651
    %v2121 = vunpack.c.l.b16 %v652
    %v2122 = vunpack.c.h.b16 %v652
    %v2123 = vunpack.c.l.b16 %v653
    %v2124 = vunpack.c.h.b16 %v653
    %v2125 = vunpack.c.l.b16 %v654
    %v2126 = vunpack.c.h.b16 %v654
    %v2127 = vunpack.c.l.b16 %v655
    %v2128 = vunpack.c.h.b16 %v655
    %v2129 = vunpack.c.l.b16 %v656
    %v2130 = vunpack.c.h.b16 %v656
    %v2131 = vunpack.c.l.b16 %v657
    %v2132 = vunpack.c.h.b16 %v657
    %v2133 = vunpack.c.l.b16 %v658
    %v2134 = vunpack.c.h.b16 %v658
    %v2135 = vunpack.c.l.b16 %v659
    %v2136 = vunpack.c.h.b16 %v659
    %v2137 = vunpack.c.l.b16 %v660
    %v2138 = vunpack.c.h.b16 %v660
    %v2139 = vunpack.c.l.b16 %v661
    %v2140 = vunpack.c.h.b16 %v661
    %v2141 = vunpack.c.l.b16 %v662
    %v2142 = vunpack.c.h.b16 %v662
    %v2143 = vunpack.c.l.b16 %v663
    %v2144 = vunpack.c.h.b16 %v663
    %v2145 = vunpack.c.l.b16 %v664
    %v2146 = vunpack.c.h.b16 %v664
    %v2147 = vunpack.c.l.b16 %v665
    %v2148 = vunpack.c.h.b16 %v665
    %v2149 = vunpack.c.l.b16 %v666
    %v2150 = vunpack.c.h.b16 %v666
    %v2151 = vunpack.c.l.b16 %v667
    %v2152 = vunpack.c.h.b16 %v667
    %v2153 = vunpack.c.l.b16 %v668
    %v2154 = vunpack.c.h.b16 %v668
    %v2155 = vunpack.c.l.b16 %v669
    %v2156 = vunpack.c.h.b16 %v669
    %v2157 = vunpack.c.l.b16 %v670
    %v2158 = vunpack.c.h.b16 %v670
    %v2159 = vunpack.c.l.b16 %v671
    %v2160 = vunpack.c.h.b16 %v671
    %v2161 = vunpack.c.l.b16 %v672
    %v2162 = vunpack.c.h.b16 %v672
    %v2163 = vunpack.c.l.b16 %v673
    %v2164 = vunpack.c.h.b16 %v673
    %v2165 = vunpack.c.l.b16 %v674
    %v2166 = vunpack.c.h.b16 %v674
    %v2167 = vunpack.c.l.b16 %v675
    %v2168 = vunpack.c.h.b16 %v675
    %v2169 = vunpack.c.l.b16 %v676
    %v2170 = vunpack.c.h.b16 %v676
    %v2171 = vunpack.c.l.b16 %v677
    %v2172 = vunpack.c.h.b16 %v677
    %v2173 = vunpack.c.l.b16 %v678
    %v2174 = vunpack.c.h.b16 %v678
    %v2175 = vunpack.c.l.b16 %v679
    %v2176 = vunpack.c.h.b16 %v679
    %v2177 = vunpack.c.l.b16 %v680
    %v2178 = vunpack.c.h.b16 %v680
    %v2179 = vunpack.c.l.b16 %v681
    %v2180 = vunpack.c.h.b16 %v681
    %v2181 = vunpack.c.l.b16 %v682
    %v2182 = vunpack.c.h.b16 %v682
    %v2183 = vunpack.c.l.b16 %v683
    %v2184 = vunpack.c.h.b16 %v683
    %v2185 = vunpack.c.l.b16 %v684
    %v2186 = vunpack.c.h.b16 %v684
    %v2187 = vunpack.c.l.b16 %v685
    %v2188 = vunpack.c.h.b16 %v685
    %v2189 = vunpack.c.l.b16 %v686
    %v2190 = vunpack.c.h.b16 %v686
    %v2191 = vunpack.c.l.b16 %v687
    %v2192 = vunpack.c.h.b16 %v687
    %v2193 = vunpack.c.l.b16 %v688
    %v2194 = vunpack.c.h.b16 %v688
    %v2195 = vunpack.c.l.b16 %v689
    %v2196 = vunpack.c.h.b16 %v689
    %v2197 = vunpack.c.l.b16 %v690
    %v2198 = vunpack.c.h.b16 %v690
    %v2199 = vunpack.c.l.b16 %v691
    %v2200 = vunpack.c.h.b16 %v691
    %v2201 = vunpack.c.l.b16 %v692
    %v2202 = vunpack.c.h.b16 %v692
    %v2203 = vunpack.c.l.b16 %v693
    %v2204 = vunpack.c.h.b16 %v693
    %v2205 = vunpack.c.l.b16 %v694
    %v2206 = vunpack.c.h.b16 %v694
    %v2207 = vunpack.c.l.b16 %v695
    %v2208 = vunpack.c.h.b16 %v695
    %v2209 = vunpack.c.l.b16 %v696
    %v2210 = vunpack.c.h.b16 %v696
    %v2211 = vunpack.c.l.b16 %v697
    %v2212 = vunpack.c.h.b16 %v697
    %v2213 = vunpack.c.l.b16 %v698
    %v2214 = vunpack.c.h.b16 %v698
    %v2215 = vunpack.c.l.b16 %v699
    %v2216 = vunpack.c.h.b16 %v699
    %v2217 = vunpack.c.l.b16 %v700
    %v2218 = vunpack.c.h.b16 %v700
    %v2219 = vunpack.c.l.b16 %v701
    %v2220 = vunpack.c.h.b16 %v701
    %v2221 = vunpack.c.l.b16 %v702
    %v2222 = vunpack.c.h.b16 %v702
    %v2223 = vunpack.c.l.b16 %v703
    %v2224 = vunpack.c.h.b16 %v703
    %v2225 = vunpack.c.l.b16 %v704
    %v2226 = vunpack.c.h.b16 %v704
    %v2227 = vunpack.c.l.b16 %v705
    %v2228 = vunpack.c.h.b16 %v705
    %v2229 = vunpack.c.l.b16 %v706
    %v2230 = vunpack.c.h.b16 %v706
    %v2231 = vunpack.c.l.b16 %v707
    %v2232 = vunpack.c.h.b16 %v707
    %v2233 = vunpack.c.l.b16 %v708
    %v2234 = vunpack.c.h.b16 %v708
    %v2235 = vunpack.c.l.b16 %v709
    %v2236 = vunpack.c.h.b16 %v709
    %v2237 = vunpack.c.l.b16 %v710
    %v2238 = vunpack.c.h.b16 %v710
    %v2239 = vunpack.c.l.b16 %v711
    %v2240 = vunpack.c.h.b16 %v711
    %v2241 = vunpack.c.l.b16 %v712
    %v2242 = vunpack.c.h.b16 %v712
    %v2243 = vunpack.c.l.b16 %v713
    %v2244 = vunpack.c.h.b16 %v713
    %v2245 = vunpack.c.l.b16 %v714
    %v2246 = vunpack.c.h.b16 %v714
    %v2247 = vunpack.c.l.b16 %v715
    %v2248 = vunpack.c.h.b16 %v715
    %v2249 = vunpack.c.l.b16 %v716
    %v2250 = vunpack.c.h.b16 %v716
    %v2251 = vunpack.c.l.b16 %v717
    %v2252 = vunpack.c.h.b16 %v717
    %v2253 = vunpack.c.l.b16 %v718
    %v2254 = vunpack.c.h.b16 %v718
    %v2255 = vunpack.c.l.b16 %v719
    %v2256 = vunpack.c.h.b16 %v719
    %v2257 = vunpack.c.l.b16 %v720
    %v2258 = vunpack.c.h.b16 %v720
    %v2259 = vunpack.c.l.b16 %v721
    %v2260 = vunpack.c.h.b16 %v721
    %v2261 = vunpack.c.l.b16 %v722
    %v2262 = vunpack.c.h.b16 %v722
    %v2263 = vunpack.c.l.b16 %v723
    %v2264 = vunpack.c.h.b16 %v723
    %v2265 = vunpack.c.l.b16 %v724
    %v2266 = vunpack.c.h.b16 %v724
    %v2267 = vunpack.c.l.b16 %v725
    %v2268 = vunpack.c.h.b16 %v725
    %v2269 = vunpack.c.l.b16 %v726
    %v2270 = vunpack.c.h.b16 %v726
    %v2271 = vunpack.c.l.b16 %v727
    %v2272 = vunpack.c.h.b16 %v727
    %v2273 = vunpack.c.l.b16 %v728
    %v2274 = vunpack.c.h.b16 %v728
    %v2275 = vunpack.c.l.b16 %v729
    %v2276 = vunpack.c.h.b16 %v729
    %v2277 = vunpack.c.l.b16 %v730
    %v2278 = vunpack.c.h.b16 %v730
    %v2279 = vunpack.c.l.b16 %v731
    %v2280 = vunpack.c.h.b16 %v731
    %v2281 = vunpack.c.l.b16 %v732
    %v2282 = vunpack.c.h.b16 %v732
    %v2283 = vunpack.c.l.b16 %v733
    %v2284 = vunpack.c.h.b16 %v733
    %v2285 = vunpack.c.l.b16 %v734
    %v2286 = vunpack.c.h.b16 %v734
    %v2287 = vunpack.c.l.b16 %v735
    %v2288 = vunpack.c.h.b16 %v735
    %v2289 = vunpack.c.l.b16 %v736
    %v2290 = vunpack.c.h.b16 %v736
    %v2291 = vunpack.c.l.b16 %v737
    %v2292 = vunpack.c.h.b16 %v737
    %v2293 = vunpack.c.l.b16 %v738
    %v2294 = vunpack.c.h.b16 %v738
    %v2295 = vunpack.c.l.b16 %v739
    %v2296 = vunpack.c.h.b16 %v739
    %v2297 = vunpack.c.l.b16 %v740
    %v2298 = vunpack.c.h.b16 %v740
    %v2299 = vpack.c.b16 %v1279, %v1275
    %v2300 = vpack.c.b16 %v1280, %v1276
    %v2301 = vpack.c.b16 %v1281, %v1277
    %v2302 = vpack.c.b16 %v1282, %v1278
    %v2303 = vpack.c.b16 %v1287, %v1283
    %v2304 = vpack.c.b16 %v1288, %v1284
    %v2305 = vpack.c.b16 %v1289, %v1285
    %v2306 = vpack.c.b16 %v1290, %v1286
    %v2307 = vpack.c.b16 %v1295, %v1291
    %v2308 = vpack.c.b16 %v1296, %v1292
    %v2309 = vpack.c.b16 %v1297, %v1293
    %v2310 = vpack.c.b16 %v1298, %v1294
    %v2311 = vpack.c.b16 %v1303, %v1299
    %v2312 = vpack.c.b16 %v1304, %v1300
    %v2313 = vpack.c.b16 %v1305, %v1301
    %v2314 = vpack.c.b16 %v1306, %v1302
    %v2315 = vpack.c.b16 %v1311, %v1307
    %v2316 = vpack.c.b16 %v1312, %v1308
    %v2317 = vpack.c.b16 %v1313, %v1309
    %v2318 = vpack.c.b16 %v1314, %v1310
    %v2319 = vpack.c.b16 %v1319, %v1315
    %v2320 = vpack.c.b16 %v1320, %v1316
    %v2321 = vpack.c.b16 %v1321, %v1317
    %v2322 = vpack.c.b16 %v1322, %v1318
    %v2323 = vpack.c.b16 %v1327, %v1323
    %v2324 = vpack.c.b16 %v1328, %v1324
    %v2325 = vpack.c.b16 %v1329, %v1325
    %v2326 = vpack.c.b16 %v1330, %v1326
    %v2327 = vpack.c.b16 %v1335, %v1331
    %v2328 = vpack.c.b16 %v1336, %v1332
    %v2329 = vpack.c.b16 %v1337, %v1333
    %v2330 = vpack.c.b16 %v1338, %v1334
    %v2331 = vpack.c.b16 %v1343, %v1339
    %v2332 = vpack.c.b16 %v1344, %v1340
    %v2333 = vpack.c.b16 %v1345, %v1341
    %v2334 = vpack.c.b16 %v1346, %v1342
    %v2335 = vpack.c.b16 %v1351, %v1347
    %v2336 = vpack.c.b16 %v1352, %v1348
    %v2337 = vpack.c.b16 %v1353, %v1349
    %v2338 = vpack.c.b16 %v1354, %v1350
    %v2339 = vpack.c.b16 %v1359, %v1355
    %v2340 = vpack.c.b16 %v1360, %v1356
    %v2341 = vpack.c.b16 %v1361, %v1357
    %v2342 = vpack.c.b16 %v1362, %v1358
    %v2343 = vpack.c.b16 %v1367, %v1363
    %v2344 = vpack.c.b16 %v1368, %v1364
    %v2345 = vpack.c.b16 %v1369, %v1365
    %v2346 = vpack.c.b16 %v1370, %v1366
    %v2347 = vpack.c.b16 %v1375, %v1371
    %v2348 = vpack.c.b16 %v1376, %v1372
    %v2349 = vpack.c.b16 %v1377, %v1373
    %v2350 = vpack.c.b16 %v1378, %v1374
    %v2351 = vpack.c.b16 %v1383, %v1379
    %v2352 = vpack.c.b16 %v1384, %v1380
    %v2353 = vpack.c.b16 %v1385, %v1381
    %v2354 = vpack.c.b16 %v1386, %v1382
    %v2355 = vpack.c.b16 %v1391, %v1387
    %v2356 = vpack.c.b16 %v1392, %v1388
    %v2357 = vpack.c.b16 %v1393, %v1389
    %v2358 = vpack.c.b16 %v1394, %v1390
    %v2359 = vpack.c.b16 %v1399, %v1395
    %v2360 = vpack.c.b16 %v1400, %v1396
    %v2361 = vpack.c.b16 %v1401, %v1397
    %v2362 = vpack.c.b16 %v1402, %v1398
    %v2363 = vpack.c.b16 %v1407, %v1403
    %v2364 = vpack.c.b16 %v1408, %v1404
    %v2365 = vpack.c.b16 %v1409, %v1405
    %v2366 = vpack.c.b16 %v1410, %v1406
    %v2367 = vpack.c.b16 %v1415, %v1411
    %v2368 = vpack.c.b16 %v1416, %v1412
    %v2369 = vpack.c.b16 %v1417, %v1413
    %v2370 = vpack.c.b16 %v1418, %v1414
    %v2371 = vpack.c.b16 %v1423, %v1419
    %v2372 = vpack.c.b16 %v1424, %v1420
    %v2373 = vpack.c.b16 %v1425, %v1421
    %v2374 = vpack.c.b16 %v1426, %v1422
    %v2375 = vpack.c.b16 %v1431, %v1427
    %v2376 = vpack.c.b16 %v1432, %v1428
    %v2377 = vpack.c.b16 %v1433, %v1429
    %v2378 = vpack.c.b16 %v1434, %v1430
    %v2379 = vpack.c.b16 %v1439, %v1435
    %v2380 = vpack.c.b16 %v1440, %v1436
    %v2381 = vpack.c.b16 %v1441, %v1437
    %v2382 = vpack.c.b16 %v1442, %v1438
    %v2383 = vpack.c.b16 %v1447, %v1443
    %v2384 = vpack.c.b16 %v1448, %v1444
    %v2385 = vpack.c.b16 %v1449, %v1445
    %v2386 = vpack.c.b16 %v1450, %v1446
    %v2387 = vpack.c.b16 %v1455, %v1451
    %v2388 = vpack.c.b16 %v1456, %v1452
    %v2389 = vpack.c.b16 %v1457, %v1453
    %v2390 = vpack.c.b16 %v1458, %v1454
    %v2391 = vpack.c.b16 %v1463, %v1459
    %v2392 = vpack.c.b16 %v1464, %v1460
    %v2393 = vpack.c.b16 %v1465, %v1461
    %v2394 = vpack.c.b16 %v1466, %v1462
    %v2395 = vpack.c.b16 %v1471, %v1467
    %v2396 = vpack.c.b16 %v1472, %v1468
    %v2397 = vpack.c.b16 %v1473, %v1469
    %v2398 = vpack.c.b16 %v1474, %v1470
    %v2399 = vpack.c.b16 %v1479, %v1475
    %v2400 = vpack.c.b16 %v1480, %v1476
    %v2401 = vpack.c.b16 %v1481, %v1477
    %v2402 = vpack.c.b16 %v1482, %v1478
    %v2403 = vpack.c.b16 %v1487, %v1483
    %v2404 = vpack.c.b16 %v1488, %v1484
    %v2405 = vpack.c.b16 %v1489, %v1485
    %v2406 = vpack.c.b16 %v1490, %v1486
    %v2407 = vpack.c.b16 %v1495, %v1491
    %v2408 = vpack.c.b16 %v1496, %v1492
    %v2409 = vpack.c.b16 %v1497, %v1493
    %v2410 = vpack.c.b16 %v1498, %v1494
    %v2411 = vpack.c.b16 %v1503, %v1499
    %v2412 = vpack.c.b16 %v1504, %v1500
    %v2413 = vpack.c.b16 %v1505, %v1501
    %v2414 = vpack.c.b16 %v1506, %v1502
    %v2415 = vpack.c.b16 %v1511, %v1507
    %v2416 = vpack.c.b16 %v1512, %v1508
    %v2417 = vpack.c.b16 %v1513, %v1509
    %v2418 = vpack.c.b16 %v1514, %v1510
    %v2419 = vpack.c.b16 %v1519, %v1515
    %v2420 = vpack.c.b16 %v1520, %v1516
    %v2421 = vpack.c.b16 %v1521, %v1517
    %v2422 = vpack.c.b16 %v1522, %v1518
    %v2423 = vpack.c.b16 %v1527, %v1523
    %v2424 = vpack.c.b16 %v1528, %v1524
    %v2425 = vpack.c.b16 %v1529, %v1525
    %v2426 = vpack.c.b16 %v1530, %v1526
    %v2427 = vpack.c.b16 %v1535, %v1531
    %v2428 = vpack.c.b16 %v1536, %v1532
    %v2429 = vpack.c.b16 %v1537, %v1533
    %v2430 = vpack.c.b16 %v1538, %v1534
    %v2431 = vpack.c.b16 %v1543, %v1539
    %v2432 = vpack.c.b16 %v1544, %v1540
    %v2433 = vpack.c.b16 %v1545, %v1541
    %v2434 = vpack.c.b16 %v1546, %v1542
    %v2435 = vpack.c.b16 %v1551, %v1547
    %v2436 = vpack.c.b16 %v1552, %v1548
    %v2437 = vpack.c.b16 %v1553, %v1549
    %v2438 = vpack.c.b16 %v1554, %v1550
    %v2439 = vpack.c.b16 %v1559, %v1555
    %v2440 = vpack.c.b16 %v1560, %v1556
    %v2441 = vpack.c.b16 %v1561, %v1557
    %v2442 = vpack.c.b16 %v1562, %v1558
    %v2443 = vpack.c.b16 %v1567, %v1563
    %v2444 = vpack.c.b16 %v1568, %v1564
    %v2445 = vpack.c.b16 %v1569, %v1565
    %v2446 = vpack.c.b16 %v1570, %v1566
    %v2447 = vpack.c.b16 %v1575, %v1571
    %v2448 = vpack.c.b16 %v1576, %v1572
    %v2449 = vpack.c.b16 %v1577, %v1573
    %v2450 = vpack.c.b16 %v1578, %v1574
    %v2451 = vpack.c.b16 %v1583, %v1579
    %v2452 = vpack.c.b16 %v1584, %v1580
    %v2453 = vpack.c.b16 %v1585, %v1581
    %v2454 = vpack.c.b16 %v1586, %v1582
    %v2455 = vpack.c.b16 %v1591, %v1587
    %v2456 = vpack.c.b16 %v1592, %v1588
    %v2457 = vpack.c.b16 %v1593, %v1589
    %v2458 = vpack.c.b16 %v1594, %v1590
    %v2459 = vpack.c.b16 %v1599, %v1595
    %v2460 = vpack.c.b16 %v1600, %v1596
    %v2461 = vpack.c.b16 %v1601, %v1597
    %v2462 = vpack.c.b16 %v1602, %v1598
    %v2463 = vpack.c.b16 %v1607, %v1603
    %v2464 = vpack.c.b16 %v1608, %v1604
    %v2465 = vpack.c.b16 %v1609, %v1605
    %v2466 = vpack.c.b16 %v1610, %v1606
    %v2467 = vpack.c.b16 %v1615, %v1611
    %v2468 = vpack.c.b16 %v1616, %v1612
    %v2469 = vpack.c.b16 %v1617, %v1613
    %v2470 = vpack.c.b16 %v1618, %v1614
    %v2471 = vpack.c.b16 %v1623, %v1619
    %v2472 = vpack.c.b16 %v1624, %v1620
    %v2473 = vpack.c.b16 %v1625, %v1621
    %v2474 = vpack.c.b16 %v1626, %v1622
    %v2475 = vpack.c.b16 %v1631, %v1627
    %v2476 = vpack.c.b16 %v1632, %v1628
    %v2477 = vpack.c.b16 %v1633, %v1629
    %v2478 = vpack.c.b16 %v1634, %v1630
    %v2479 = vpack.c.b16 %v1639, %v1635
    %v2480 = vpack.c.b16 %v1640, %v1636
    %v2481 = vpack.c.b16 %v1641, %v1637
    %v2482 = vpack.c.b16 %v1642, %v1638
    %v2483 = vpack.c.b16 %v1647, %v1643
    %v2484 = vpack.c.b16 %v1648, %v1644
    %v2485 = vpack.c.b16 %v1649, %v1645
    %v2486 = vpack.c.b16 %v1650, %v1646
    %v2487 = vpack.c.b16 %v1655, %v1651
    %v2488 = vpack.c.b16 %v1656, %v1652
    %v2489 = vpack.c.b16 %v1657, %v1653
    %v2490 = vpack.c.b16 %v1658, %v1654
    %v2491 = vpack.c.b16 %v1663, %v1659
    %v2492 = vpack.c.b16 %v1664, %v1660
    %v2493 = vpack.c.b16 %v1665, %v1661
    %v2494 = vpack.c.b16 %v1666, %v1662
    %v2495 = vpack.c.b16 %v1671, %v1667
    %v2496 = vpack.c.b16 %v1672, %v1668
    %v2497 = vpack.c.b16 %v1673, %v1669
    %v2498 = vpack.c.b16 %v1674, %v1670
    %v2499 = vpack.c.b16 %v1679, %v1675
    %v2500 = vpack.c.b16 %v1680, %v1676
    %v2501 = vpack.c.b16 %v1681, %v1677
    %v2502 = vpack.c.b16 %v1682, %v1678
    %v2503 = vpack.c.b16 %v1687, %v1683
    %v2504 = vpack.c.b16 %v1688, %v1684
    %v2505 = vpack.c.b16 %v1689, %v1685
    %v2506 = vpack.c.b16 %v1690, %v1686
    %v2507 = vpack.c.b16 %v1695, %v1691
    %v2508 = vpack.c.b16 %v1696, %v1692
    %v2509 = vpack.c.b16 %v1697, %v1693
    %v2510 = vpack.c.b16 %v1698, %v1694
    %v2511 = vpack.c.b16 %v1703, %v1699
    %v2512 = vpack.c.b16 %v1704, %v1700
    %v2513 = vpack.c.b16 %v1705, %v1701
    %v2514 = vpack.c.b16 %v1706, %v1702
    %v2515 = vpack.c.b16 %v1711, %v1707
    %v2516 = vpack.c.b16 %v1712, %v1708
    %v2517 = vpack.c.b16 %v1713, %v1709
    %v2518 = vpack.c.b16 %v1714, %v1710
    %v2519 = vpack.c.b16 %v1719, %v1715
    %v2520 = vpack.c.b16 %v1720, %v1716
    %v2521 = vpack.c.b16 %v1721, %v1717
    %v2522 = vpack.c.b16 %v1722, %v1718
    %v2523 = vpack.c.b16 %v1727, %v1723
    %v2524 = vpack.c.b16 %v1728, %v1724
    %v2525 = vpack.c.b16 %v1729, %v1725
    %v2526 = vpack.c.b16 %v1730, %v1726
    %v2527 = vpack.c.b16 %v1735, %v1731
    %v2528 = vpack.c.b16 %v1736, %v1732
    %v2529 = vpack.c.b16 %v1737, %v1733
    %v2530 = vpack.c.b16 %v1738, %v1734
    %v2531 = vpack.c.b16 %v1743, %v1739
    %v2532 = vpack.c.b16 %v1744, %v1740
    %v2533 = vpack.c.b16 %v1745, %v1741
    %v2534 = vpack.c.b16 %v1746, %v1742
    %v2535 = vpack.c.b16 %v1751, %v1747
    %v2536 = vpack.c.b16 %v1752, %v1748
    %v2537 = vpack.c.b16 %v1753, %v1749
    %v2538 = vpack.c.b16 %v1754, %v1750
    %v2539 = vpack.c.b16 %v1759, %v1755
    %v2540 = vpack.c.b16 %v1760, %v1756
    %v2541 = vpack.c.b16 %v1761, %v1757
    %v2542 = vpack.c.b16 %v1762, %v1758
    %v2543 = vpack.c.b16 %v1767, %v1763
    %v2544 = vpack.c.b16 %v1768, %v1764
    %v2545 = vpack.c.b16 %v1769, %v1765
    %v2546 = vpack.c.b16 %v1770, %v1766
    %v2547 = vpack.c.b16 %v1775, %v1771
    %v2548 = vpack.c.b16 %v1776, %v1772
    %v2549 = vpack.c.b16 %v1777, %v1773
    %v2550 = vpack.c.b16 %v1778, %v1774
    %v2551 = vpack.c.b16 %v1783, %v1779
    %v2552 = vpack.c.b16 %v1784, %v1780
    %v2553 = vpack.c.b16 %v1785, %v1781
    %v2554 = vpack.c.b16 %v1786, %v1782
    %v2555 = vpack.c.b16 %v1791, %v1787
    %v2556 = vpack.c.b16 %v1792, %v1788
    %v2557 = vpack.c.b16 %v1793, %v1789
    %v2558 = vpack.c.b16 %v1794, %v1790
    %v2559 = vpack.c.b16 %v1799, %v1795
    %v2560 = vpack.c.b16 %v1800, %v1796
    %v2561 = vpack.c.b16 %v1801, %v1797
    %v2562 = vpack.c.b16 %v1802, %v1798
    %v2563 = vpack.c.b16 %v1807, %v1803
    %v2564 = vpack.c.b16 %v1808, %v1804
    %v2565 = vpack.c.b16 %v1809, %v1805
    %v2566 = vpack.c.b16 %v1810, %v1806
    %v2567 = vpack.c.b16 %v1815, %v1811
    %v2568 = vpack.c.b16 %v1816, %v1812
    %v2569 = vpack.c.b16 %v1817, %v1813
    %v2570 = vpack.c.b16 %v1818, %v1814
    %v2571 = vpack.c.b16 %v1823, %v1819
    %v2572 = vpack.c.b16 %v1824, %v1820
    %v2573 = vpack.c.b16 %v1825, %v1821
    %v2574 = vpack.c.b16 %v1826, %v1822
    %v2575 = vpack.c.b16 %v1831, %v1827
    %v2576 = vpack.c.b16 %v1832, %v1828
    %v2577 = vpack.c.b16 %v1833, %v1829
    %v2578 = vpack.c.b16 %v1834, %v1830
    %v2579 = vpack.c.b16 %v1839, %v1835
    %v2580 = vpack.c.b16 %v1840, %v1836
    %v2581 = vpack.c.b16 %v1841, %v1837
    %v2582 = vpack.c.b16 %v1842, %v1838
    %v2583 = vpack.c.b16 %v1847, %v1843
    %v2584 = vpack.c.b16 %v1848, %v1844
    %v2585 = vpack.c.b16 %v1849, %v1845
    %v2586 = vpack.c.b16 %v1850, %v1846
    %v2587 = vpack.c.b16 %v1855, %v1851
    %v2588 = vpack.c.b16 %v1856, %v1852
    %v2589 = vpack.c.b16 %v1857, %v1853
    %v2590 = vpack.c.b16 %v1858, %v1854
    %v2591 = vpack.c.b16 %v1863, %v1859
    %v2592 = vpack.c.b16 %v1864, %v1860
    %v2593 = vpack.c.b16 %v1865, %v1861
    %v2594 = vpack.c.b16 %v1866, %v1862
    %v2595 = vpack.c.b16 %v1871, %v1867
    %v2596 = vpack.c.b16 %v1872, %v1868
    %v2597 = vpack.c.b16 %v1873, %v1869
    %v2598 = vpack.c.b16 %v1874, %v1870
    %v2599 = vpack.c.b16 %v1879, %v1875
    %v2600 = vpack.c.b16 %v1880, %v1876
    %v2601 = vpack.c.b16 %v1881, %v1877
    %v2602 = vpack.c.b16 %v1882, %v1878
    %v2603 = vpack.c.b16 %v1887, %v1883
    %v2604 = vpack.c.b16 %v1888, %v1884
    %v2605 = vpack.c.b16 %v1889, %v1885
    %v2606 = vpack.c.b16 %v1890, %v1886
    %v2607 = vpack.c.b16 %v1895, %v1891
    %v2608 = vpack.c.b16 %v1896, %v1892
    %v2609 = vpack.c.b16 %v1897, %v1893
    %v2610 = vpack.c.b16 %v1898, %v1894
    %v2611 = vpack.c.b16 %v1903, %v1899
    %v2612 = vpack.c.b16 %v1904, %v1900
    %v2613 = vpack.c.b16 %v1905, %v1901
    %v2614 = vpack.c.b16 %v1906, %v1902
    %v2615 = vpack.c.b16 %v1911, %v1907
    %v2616 = vpack.c.b16 %v1912, %v1908
    %v2617 = vpack.c.b16 %v1913, %v1909
    %v2618 = vpack.c.b16 %v1914, %v1910
    %v2619 = vpack.c.b16 %v1919, %v1915
    %v2620 = vpack.c.b16 %v1920, %v1916
    %v2621 = vpack.c.b16 %v1921, %v1917
    %v2622 = vpack.c.b16 %v1922, %v1918
    %v2623 = vpack.c.b16 %v1927, %v1923
    %v2624 = vpack.c.b16 %v1928, %v1924
    %v2625 = vpack.c.b16 %v1929, %v1925
    %v2626 = vpack.c.b16 %v1930, %v1926
    %v2627 = vpack.c.b16 %v1935, %v1931
    %v2628 = vpack.c.b16 %v1936, %v1932
    %v2629 = vpack.c.b16 %v1937, %v1933
    %v2630 = vpack.c.b16 %v1938, %v1934
    %v2631 = vpack.c.b16 %v1943, %v1939
    %v2632 = vpack.c.b16 %v1944, %v1940
    %v2633 = vpack.c.b16 %v1945, %v1941
    %v2634 = vpack.c.b16 %v1946, %v1942
    %v2635 = vpack.c.b16 %v1951, %v1947
    %v2636 = vpack.c.b16 %v1952, %v1948
    %v2637 = vpack.c.b16 %v1953, %v1949
    %v2638 = vpack.c.b16 %v1954, %v1950
    %v2639 = vpack.c.b16 %v1959, %v1955
    %v2640 = vpack.c.b16 %v1960, %v1956
    %v2641 = vpack.c.b16 %v1961, %v1957
    %v2642 = vpack.c.b16 %v1962, %v1958
    %v2643 = vpack.c.b16 %v1967, %v1963
    %v2644 = vpack.c.b16 %v1968, %v1964
    %v2645 = vpack.c.b16 %v1969, %v1965
    %v2646 = vpack.c.b16 %v1970, %v1966
    %v2647 = vpack.c.b16 %v1975, %v1971
    %v2648 = vpack.c.b16 %v1976, %v1972
    %v2649 = vpack.c.b16 %v1977, %v1973
    %v2650 = vpack.c.b16 %v1978, %v1974
    %v2651 = vpack.c.b16 %v1983, %v1979
    %v2652 = vpack.c.b16 %v1984, %v1980
    %v2653 = vpack.c.b16 %v1985, %v1981
    %v2654 = vpack.c.b16 %v1986, %v1982
    %v2655 = vpack.c.b16 %v1991, %v1987
    %v2656 = vpack.c.b16 %v1992, %v1988
    %v2657 = vpack.c.b16 %v1993, %v1989
    %v2658 = vpack.c.b16 %v1994, %v1990
    %v2659 = vpack.c.b16 %v1999, %v1995
    %v2660 = vpack.c.b16 %v2000, %v1996
    %v2661 = vpack.c.b16 %v2001, %v1997
    %v2662 = vpack.c.b16 %v2002, %v1998
    %v2663 = vpack.c.b16 %v2007, %v2003
    %v2664 = vpack.c.b16 %v2008, %v2004
    %v2665 = vpack.c.b16 %v2009, %v2005
    %v2666 = vpack.c.b16 %v2010, %v2006
    %v2667 = vpack.c.b16 %v2015, %v2011
    %v2668 = vpack.c.b16 %v2016, %v2012
    %v2669 = vpack.c.b16 %v2017, %v2013
    %v2670 = vpack.c.b16 %v2018, %v2014
    %v2671 = vpack.c.b16 %v2023, %v2019
    %v2672 = vpack.c.b16 %v2024, %v2020
    %v2673 = vpack.c.b16 %v2025, %v2021
    %v2674 = vpack.c.b16 %v2026, %v2022
    %v2675 = vpack.c.b16 %v2031, %v2027
    %v2676 = vpack.c.b16 %v2032, %v2028
    %v2677 = vpack.c.b16 %v2033, %v2029
    %v2678 = vpack.c.b16 %v2034, %v2030
    %v2679 = vpack.c.b16 %v2039, %v2035
    %v2680 = vpack.c.b16 %v2040, %v2036
    %v2681 = vpack.c.b16 %v2041, %v2037
    %v2682 = vpack.c.b16 %v2042, %v2038
    %v2683 = vpack.c.b16 %v2047, %v2043
    %v2684 = vpack.c.b16 %v2048, %v2044
    %v2685 = vpack.c.b16 %v2049, %v2045
    %v2686 = vpack.c.b16 %v2050, %v2046
    %v2687 = vpack.c.b16 %v2055, %v2051
    %v2688 = vpack.c.b16 %v2056, %v2052
    %v2689 = vpack.c.b16 %v2057, %v2053
    %v2690 = vpack.c.b16 %v2058, %v2054
    %v2691 = vpack.c.b16 %v2063, %v2059
    %v2692 = vpack.c.b16 %v2064, %v2060
    %v2693 = vpack.c.b16 %v2065, %v2061
    %v2694 = vpack.c.b16 %v2066, %v2062
    %v2695 = vpack.c.b16 %v2071, %v2067
    %v2696 = vpack.c.b16 %v2072, %v2068
    %v2697 = vpack.c.b16 %v2073, %v2069
    %v2698 = vpack.c.b16 %v2074, %v2070
    %v2699 = vpack.c.b16 %v2079, %v2075
    %v2700 = vpack.c.b16 %v2080, %v2076
    %v2701 = vpack.c.b16 %v2081, %v2077
    %v2702 = vpack.c.b16 %v2082, %v2078
    %v2703 = vpack.c.b16 %v2087, %v2083
    %v2704 = vpack.c.b16 %v2088, %v2084
    %v2705 = vpack.c.b16 %v2089, %v2085
    %v2706 = vpack.c.b16 %v2090, %v2086
    %v2707 = vpack.c.b16 %v2095, %v2091
    %v2708 = vpack.c.b16 %v2096, %v2092
    %v2709 = vpack.c.b16 %v2097, %v2093
    %v2710 = vpack.c.b16 %v2098, %v2094
    %v2711 = vpack.c.b16 %v2103, %v2099
    %v2712 = vpack.c.b16 %v2104, %v2100
    %v2713 = vpack.c.b16 %v2105, %v2101
    %v2714 = vpack.c.b16 %v2106, %v2102
    %v2715 = vpack.c.b16 %v2111, %v2107
    %v2716 = vpack.c.b16 %v2112, %v2108
    %v2717 = vpack.c.b16 %v2113, %v2109
    %v2718 = vpack.c.b16 %v2114, %v2110
    %v2719 = vpack.c.b16 %v2119, %v2115
    %v2720 = vpack.c.b16 %v2120, %v2116
    %v2721 = vpack.c.b16 %v2121, %v2117
    %v2722 = vpack.c.b16 %v2122, %v2118
    %v2723 = vpack.c.b16 %v2127, %v2123
    %v2724 = vpack.c.b16 %v2128, %v2124
    %v2725 = vpack.c.b16 %v2129, %v2125
    %v2726 = vpack.c.b16 %v2130, %v2126
    %v2727 = vpack.c.b16 %v2135, %v2131
    %v2728 = vpack.c.b16 %v2136, %v2132
    %v2729 = vpack.c.b16 %v2137, %v2133
    %v2730 = vpack.c.b16 %v2138, %v2134
    %v2731 = vpack.c.b16 %v2143, %v2139
    %v2732 = vpack.c.b16 %v2144, %v2140
    %v2733 = vpack.c.b16 %v2145, %v2141
    %v2734 = vpack.c.b16 %v2146, %v2142
    %v2735 = vpack.c.b16 %v2151, %v2147
    %v2736 = vpack.c.b16 %v2152, %v2148
    %v2737 = vpack.c.b16 %v2153, %v2149
    %v2738 = vpack.c.b16 %v2154, %v2150
    %v2739 = vpack.c.b16 %v2159, %v2155
    %v2740 = vpack.c.b16 %v2160, %v2156
    %v2741 = vpack.c.b16 %v2161, %v2157
    %v2742 = vpack.c.b16 %v2162, %v2158
    %v2743 = vpack.c.b16 %v2167, %v2163
    %v2744 = vpack.c.b16 %v2168, %v2164
    %v2745 = vpack.c.b16 %v2169, %v2165
    %v2746 = vpack.c.b16 %v2170, %v2166
    %v2747 = vpack.c.b16 %v2175, %v2171
    %v2748 = vpack.c.b16 %v2176, %v2172
    %v2749 = vpack.c.b16 %v2177, %v2173
    %v2750 = vpack.c.b16 %v2178, %v2174
    %v2751 = vpack.c.b16 %v2183, %v2179
    %v2752 = vpack.c.b16 %v2184, %v2180
    %v2753 = vpack.c.b16 %v2185, %v2181
    %v2754 = vpack.c.b16 %v2186, %v2182
    %v2755 = vpack.c.b16 %v2191, %v2187
    %v2756 = vpack.c.b16 %v2192, %v2188
    %v2757 = vpack.c.b16 %v2193, %v2189
    %v2758 = vpack.c.b16 %v2194, %v2190
    %v2759 = vpack.c.b16 %v2199, %v2195
    %v2760 = vpack.c.b16 %v2200, %v2196
    %v2761 = vpack.c.b16 %v2201, %v2197
    %v2762 = vpack.c.b16 %v2202, %v2198
    %v2763 = vpack.c.b16 %v2207, %v2203
    %v2764 = vpack.c.b16 %v2208, %v2204
    %v2765 = vpack.c.b16 %v2209, %v2205
    %v2766 = vpack.c.b16 %v2210, %v2206
    %v2767 = vpack.c.b16 %v2215, %v2211
    %v2768 = vpack.c.b16 %v2216, %v2212
    %v2769 = vpack.c.b16 %v2217, %v2213
    %v2770 = vpack.c.b16 %v2218, %v2214
    %v2771 = vpack.c.b16 %v2223, %v2219
    %v2772 = vpack.c.b16 %v2224, %v2220
    %v2773 = vpack.c.b16 %v2225, %v2221
    %v2774 = vpack.c.b16 %v2226, %v2222
    %v2775 = vpack.c.b16 %v2231, %v2227
    %v2776 = vpack.c.b16 %v2232, %v2228
    %v2777 = vpack.c.b16 %v2233, %v2229
    %v2778 = vpack.c.b16 %v2234, %v2230
    %v2779 = vpack.c.b16 %v2239, %v2235
    %v2780 = vpack.c.b16 %v2240, %v2236
    %v2781 = vpack.c.b16 %v2241, %v2237
    %v2782 = vpack.c.b16 %v2242, %v2238
    %v2783 = vpack.c.b16 %v2247, %v2243
    %v2784 = vpack.c.b16 %v2248, %v2244
    %v2785 = vpack.c.b16 %v2249, %v2245
    %v2786 = vpack.c.b16 %v2250, %v2246
    %v2787 = vpack.c.b16 %v2255, %v2251
    %v2788 = vpack.c.b16 %v2256, %v2252
    %v2789 = vpack.c.b16 %v2257, %v2253
    %v2790 = vpack.c.b16 %v2258, %v2254
    %v2791 = vpack.c.b16 %v2263, %v2259
    %v2792 = vpack.c.b16 %v2264, %v2260
    %v2793 = vpack.c.b16 %v2265, %v2261
    %v2794 = vpack.c.b16 %v2266, %v2262
    %v2795 = vpack.c.b16 %v2271, %v2267
    %v2796 = vpack.c.b16 %v2272, %v2268
    %v2797 = vpack.c.b16 %v2273, %v2269
    %v2798 = vpack.c.b16 %v2274, %v2270
    %v2799 = vpack.c.b16 %v2279, %v2275
    %v2800 = vpack.c.b16 %v2280, %v2276
    %v2801 = vpack.c.b16 %v2281, %v2277
    %v2802 = vpack.c.b16 %v2282, %v2278
    %v2803 = vpack.c.b16 %v2287, %v2283
    %v2804 = vpack.c.b16 %v2288, %v2284
    %v2805 = vpack.c.b16 %v2289, %v2285
    %v2806 = vpack.c.b16 %v2290, %v2286
    %v2807 = vpack.c.b16 %v2295, %v2291
    %v2808 = vpack.c.b16 %v2296, %v2292
    %v2809 = vpack.c.b16 %v2297, %v2293
    %v2810 = vpack.c.b16 %v2298, %v2294
    %3323 = vmatprep.subr.bf16.mxu0 %v2300
    %3324 = vmatpush1.bf16.msra.mxu0 %v2299
    %3325 = vmatprep.subr.bf16.mxu0 %v2304
    %3326 = vmatpush1.bf16.msra.mxu0 %v2303
    %3327 = vmatprep.subr.bf16.mxu0 %v2308
    %3328 = vmatpush1.bf16.msra.mxu0 %v2307
    %3329 = vmatprep.subr.bf16.mxu0 %v2312
    %3330 = vmatpush1.bf16.msra.mxu0 %v2311
    %3331 = vmatprep.subr.bf16.mxu0 %v2316
    %3332 = vmatpush1.bf16.msra.mxu0 %v2315
    %3333 = vmatprep.subr.bf16.mxu0 %v2320
    %3334 = vmatpush1.bf16.msra.mxu0 %v2319
    %3335 = vmatprep.subr.bf16.mxu0 %v2324
    %3336 = vmatpush1.bf16.msra.mxu0 %v2323
    %3337 = vmatprep.subr.bf16.mxu0 %v2328
    %3338 = vmatpush1.bf16.msra.mxu0 %v2327
    %3339 = vmatprep.subr.bf16.mxu0 %v2332
    %3340 = vmatpush1.bf16.msra.mxu0 %v2331
    %3341 = vmatprep.subr.bf16.mxu0 %v2336
    %3342 = vmatpush1.bf16.msra.mxu0 %v2335
    %3343 = vmatprep.subr.bf16.mxu0 %v2340
    %3344 = vmatpush1.bf16.msra.mxu0 %v2339
    %3345 = vmatprep.subr.bf16.mxu0 %v2344
    %3346 = vmatpush1.bf16.msra.mxu0 %v2343
    %3347 = vmatprep.subr.bf16.mxu0 %v2348
    %3348 = vmatpush1.bf16.msra.mxu0 %v2347
    %3349 = vmatprep.subr.bf16.mxu0 %v2352
    %3350 = vmatpush1.bf16.msra.mxu0 %v2351
    %3351 = vmatprep.subr.bf16.mxu0 %v2356
    %3352 = vmatpush1.bf16.msra.mxu0 %v2355
    %3353 = vmatprep.subr.bf16.mxu0 %v2360
    %3354 = vmatpush1.bf16.msra.mxu0 %v2359
    %3355 = vmatprep.mubr.bf16.mxu0 %v214
    %3356 = vmatmul.mubr.bf16.gmra.mrb[0].mxu0 %v213
    %v3357 = vpop.f32.mrb[0].mxu0
    %v3358 = vadd.f32 %v746, %v3357
    %v3359 = vpop.f32.mrb[0].mxu0
    %v3360 = vadd.f32 %v750, %v3359
    %v3361 = vpop.f32.mrb[0].mxu0
    %v3362 = vpop.f32.mrb[0].mxu0
    %3363 = vdwg.mxu0
    %3364 = vmatprep.subr.bf16.mxu0 %v2364
    %3365 = vmatpush1.bf16.msra.mxu0 %v2363
    %3366 = vmatprep.subr.bf16.mxu0 %v2368
    %3367 = vmatpush1.bf16.msra.mxu0 %v2367
    %3368 = vmatprep.subr.bf16.mxu0 %v2372
    %3369 = vmatpush1.bf16.msra.mxu0 %v2371
    %3370 = vmatprep.subr.bf16.mxu0 %v2376
    %3371 = vmatpush1.bf16.msra.mxu0 %v2375
    %3372 = vmatprep.subr.bf16.mxu0 %v2380
    %3373 = vmatpush1.bf16.msra.mxu0 %v2379
    %3374 = vmatprep.subr.bf16.mxu0 %v2384
    %3375 = vmatpush1.bf16.msra.mxu0 %v2383
    %3376 = vmatprep.subr.bf16.mxu0 %v2388
    %3377 = vmatpush1.bf16.msra.mxu0 %v2387
    %3378 = vmatprep.subr.bf16.mxu0 %v2392
    %3379 = vmatpush1.bf16.msra.mxu0 %v2391
    %3380 = vmatprep.subr.bf16.mxu0 %v2396
    %3381 = vmatpush1.bf16.msra.mxu0 %v2395
    %3382 = vmatprep.subr.bf16.mxu0 %v2400
    %3383 = vmatpush1.bf16.msra.mxu0 %v2399
    %3384 = vmatprep.subr.bf16.mxu0 %v2404
    %3385 = vmatpush1.bf16.msra.mxu0 %v2403
    %3386 = vmatprep.subr.bf16.mxu0 %v2408
    %3387 = vmatpush1.bf16.msra.mxu0 %v2407
    %3388 = vmatprep.subr.bf16.mxu0 %v2412
    %3389 = vmatpush1.bf16.msra.mxu0 %v2411
    %3390 = vmatprep.subr.bf16.mxu0 %v2416
    %3391 = vmatpush1.bf16.msra.mxu0 %v2415
    %3392 = vmatprep.subr.bf16.mxu0 %v2420
    %3393 = vmatpush1.bf16.msra.mxu0 %v2419
    %3394 = vmatprep.subr.bf16.mxu0 %v2424
    %3395 = vmatpush1.bf16.msra.mxu0 %v2423
    %3396 = vmatprep.mubr.bf16.mxu0 %v216
    %3397 = vmatmul.mubr.bf16.gmra.mrb[0].mxu0 %v215
    %v3398 = vpop.f32.mrb[0].mxu0
    %v3399 = vadd.f32 %v3358, %v3398
    %v3400 = vpop.f32.mrb[0].mxu0
    %v3401 = vadd.f32 %v3360, %v3400
    %v3402 = vpop.f32.mrb[0].mxu0
    %v3403 = vpop.f32.mrb[0].mxu0
    %3404 = vdwg.mxu0
    %3405 = vmatprep.subr.bf16.mxu0 %v2428
    %3406 = vmatpush1.bf16.msra.mxu0 %v2427
    %3407 = vmatprep.subr.bf16.mxu0 %v2432
    %3408 = vmatpush1.bf16.msra.mxu0 %v2431
    %3409 = vmatprep.subr.bf16.mxu0 %v2436
    %3410 = vmatpush1.bf16.msra.mxu0 %v2435
    %3411 = vmatprep.subr.bf16.mxu0 %v2440
    %3412 = vmatpush1.bf16.msra.mxu0 %v2439
    %3413 = vmatprep.subr.bf16.mxu0 %v2444
    %3414 = vmatpush1.bf16.msra.mxu0 %v2443
    %3415 = vmatprep.subr.bf16.mxu0 %v2448
    %3416 = vmatpush1.bf16.msra.mxu0 %v2447
    %3417 = vmatprep.subr.bf16.mxu0 %v2452
    %3418 = vmatpush1.bf16.msra.mxu0 %v2451
    %3419 = vmatprep.subr.bf16.mxu0 %v2456
    %3420 = vmatpush1.bf16.msra.mxu0 %v2455
    %3421 = vmatprep.subr.bf16.mxu0 %v2460
    %3422 = vmatpush1.bf16.msra.mxu0 %v2459
    %3423 = vmatprep.subr.bf16.mxu0 %v2464
    %3424 = vmatpush1.bf16.msra.mxu0 %v2463
    %3425 = vmatprep.subr.bf16.mxu0 %v2468
    %3426 = vmatpush1.bf16.msra.mxu0 %v2467
    %3427 = vmatprep.subr.bf16.mxu0 %v2472
    %3428 = vmatpush1.bf16.msra.mxu0 %v2471
    %3429 = vmatprep.subr.bf16.mxu0 %v2476
    %3430 = vmatpush1.bf16.msra.mxu0 %v2475
    %3431 = vmatprep.subr.bf16.mxu0 %v2480
    %3432 = vmatpush1.bf16.msra.mxu0 %v2479
    %3433 = vmatprep.subr.bf16.mxu0 %v2484
    %3434 = vmatpush1.bf16.msra.mxu0 %v2483
    %3435 = vmatprep.subr.bf16.mxu0 %v2488
    %3436 = vmatpush1.bf16.msra.mxu0 %v2487
    %3437 = vmatprep.mubr.bf16.mxu0 %v218
    %3438 = vmatmul.mubr.bf16.gmra.mrb[0].mxu0 %v217
    %v3439 = vpop.f32.mrb[0].mxu0
    %v3440 = vadd.f32 %v3399, %v3439
    %v3441 = vpop.f32.mrb[0].mxu0
    %v3442 = vadd.f32 %v3401, %v3441
    %v3443 = vpop.f32.mrb[0].mxu0
    %v3444 = vpop.f32.mrb[0].mxu0
    %3445 = vdwg.mxu0
    %3446 = vmatprep.subr.bf16.mxu0 %v2492
    %3447 = vmatpush1.bf16.msra.mxu0 %v2491
    %3448 = vmatprep.subr.bf16.mxu0 %v2496
    %3449 = vmatpush1.bf16.msra.mxu0 %v2495
    %3450 = vmatprep.subr.bf16.mxu0 %v2500
    %3451 = vmatpush1.bf16.msra.mxu0 %v2499
    %3452 = vmatprep.subr.bf16.mxu0 %v2504
    %3453 = vmatpush1.bf16.msra.mxu0 %v2503
    %3454 = vmatprep.subr.bf16.mxu0 %v2508
    %3455 = vmatpush1.bf16.msra.mxu0 %v2507
    %3456 = vmatprep.subr.bf16.mxu0 %v2512
    %3457 = vmatpush1.bf16.msra.mxu0 %v2511
    %3458 = vmatprep.subr.bf16.mxu0 %v2516
    %3459 = vmatpush1.bf16.msra.mxu0 %v2515
    %3460 = vmatprep.subr.bf16.mxu0 %v2520
    %3461 = vmatpush1.bf16.msra.mxu0 %v2519
    %3462 = vmatprep.subr.bf16.mxu0 %v2524
    %3463 = vmatpush1.bf16.msra.mxu0 %v2523
    %3464 = vmatprep.subr.bf16.mxu0 %v2528
    %3465 = vmatpush1.bf16.msra.mxu0 %v2527
    %3466 = vmatprep.subr.bf16.mxu0 %v2532
    %3467 = vmatpush1.bf16.msra.mxu0 %v2531
    %3468 = vmatprep.subr.bf16.mxu0 %v2536
    %3469 = vmatpush1.bf16.msra.mxu0 %v2535
    %3470 = vmatprep.subr.bf16.mxu0 %v2540
    %3471 = vmatpush1.bf16.msra.mxu0 %v2539
    %3472 = vmatprep.subr.bf16.mxu0 %v2544
    %3473 = vmatpush1.bf16.msra.mxu0 %v2543
    %3474 = vmatprep.subr.bf16.mxu0 %v2548
    %3475 = vmatpush1.bf16.msra.mxu0 %v2547
    %3476 = vmatprep.subr.bf16.mxu0 %v2552
    %3477 = vmatpush1.bf16.msra.mxu0 %v2551
    %3478 = vmatprep.mubr.bf16.mxu0 %v220
    %3479 = vmatmul.mubr.bf16.gmra.mrb[0].mxu0 %v219
    %v3480 = vpop.f32.mrb[0].mxu0
    %v3481 = vadd.f32 %v3440, %v3480
    %v3482 = vpop.f32.mrb[0].mxu0
    %v3483 = vadd.f32 %v3442, %v3482
    %v3484 = vpop.f32.mrb[0].mxu0
    %v3485 = vpop.f32.mrb[0].mxu0
    %3486 = vdwg.mxu0
    %3487 = vmatprep.subr.bf16.mxu0 %v2556
    %3488 = vmatpush1.bf16.msra.mxu0 %v2555
    %3489 = vmatprep.subr.bf16.mxu0 %v2560
    %3490 = vmatpush1.bf16.msra.mxu0 %v2559
    %3491 = vmatprep.subr.bf16.mxu0 %v2564
    %3492 = vmatpush1.bf16.msra.mxu0 %v2563
    %3493 = vmatprep.subr.bf16.mxu0 %v2568
    %3494 = vmatpush1.bf16.msra.mxu0 %v2567
    %3495 = vmatprep.subr.bf16.mxu0 %v2572
    %3496 = vmatpush1.bf16.msra.mxu0 %v2571
    %3497 = vmatprep.subr.bf16.mxu0 %v2576
    %3498 = vmatpush1.bf16.msra.mxu0 %v2575
    %3499 = vmatprep.subr.bf16.mxu0 %v2580
    %3500 = vmatpush1.bf16.msra.mxu0 %v2579
    %3501 = vmatprep.subr.bf16.mxu0 %v2584
    %3502 = vmatpush1.bf16.msra.mxu0 %v2583
    %3503 = vmatprep.subr.bf16.mxu0 %v2588
    %3504 = vmatpush1.bf16.msra.mxu0 %v2587
    %3505 = vmatprep.subr.bf16.mxu0 %v2592
    %3506 = vmatpush1.bf16.msra.mxu0 %v2591
    %3507 = vmatprep.subr.bf16.mxu0 %v2596
    %3508 = vmatpush1.bf16.msra.mxu0 %v2595
    %3509 = vmatprep.subr.bf16.mxu0 %v2600
    %3510 = vmatpush1.bf16.msra.mxu0 %v2599
    %3511 = vmatprep.subr.bf16.mxu0 %v2604
    %3512 = vmatpush1.bf16.msra.mxu0 %v2603
    %3513 = vmatprep.subr.bf16.mxu0 %v2608
    %3514 = vmatpush1.bf16.msra.mxu0 %v2607
    %3515 = vmatprep.subr.bf16.mxu0 %v2612
    %3516 = vmatpush1.bf16.msra.mxu0 %v2611
    %3517 = vmatprep.subr.bf16.mxu0 %v2616
    %3518 = vmatpush1.bf16.msra.mxu0 %v2615
    %3519 = vmatprep.mubr.bf16.mxu0 %v222
    %3520 = vmatmul.mubr.bf16.gmra.mrb[0].mxu0 %v221
    %v3521 = vpop.f32.mrb[0].mxu0
    %v3522 = vadd.f32 %v3481, %v3521
    %v3523 = vpop.f32.mrb[0].mxu0
    %v3524 = vadd.f32 %v3483, %v3523
    %v3525 = vpop.f32.mrb[0].mxu0
    %v3526 = vpop.f32.mrb[0].mxu0
    %3527 = vdwg.mxu0
    %3528 = vmatprep.subr.bf16.mxu0 %v2620
    %3529 = vmatpush1.bf16.msra.mxu0 %v2619
    %3530 = vmatprep.subr.bf16.mxu0 %v2624
    %3531 = vmatpush1.bf16.msra.mxu0 %v2623
    %3532 = vmatprep.subr.bf16.mxu0 %v2628
    %3533 = vmatpush1.bf16.msra.mxu0 %v2627
    %3534 = vmatprep.subr.bf16.mxu0 %v2632
    %3535 = vmatpush1.bf16.msra.mxu0 %v2631
    %3536 = vmatprep.subr.bf16.mxu0 %v2636
    %3537 = vmatpush1.bf16.msra.mxu0 %v2635
    %3538 = vmatprep.subr.bf16.mxu0 %v2640
    %3539 = vmatpush1.bf16.msra.mxu0 %v2639
    %3540 = vmatprep.subr.bf16.mxu0 %v2644
    %3541 = vmatpush1.bf16.msra.mxu0 %v2643
    %3542 = vmatprep.subr.bf16.mxu0 %v2648
    %3543 = vmatpush1.bf16.msra.mxu0 %v2647
    %3544 = vmatprep.subr.bf16.mxu0 %v2652
    %3545 = vmatpush1.bf16.msra.mxu0 %v2651
    %3546 = vmatprep.subr.bf16.mxu0 %v2656
    %3547 = vmatpush1.bf16.msra.mxu0 %v2655
    %3548 = vmatprep.subr.bf16.mxu0 %v2660
    %3549 = vmatpush1.bf16.msra.mxu0 %v2659
    %3550 = vmatprep.subr.bf16.mxu0 %v2664
    %3551 = vmatpush1.bf16.msra.mxu0 %v2663
    %3552 = vmatprep.subr.bf16.mxu0 %v2668
    %3553 = vmatpush1.bf16.msra.mxu0 %v2667
    %3554 = vmatprep.subr.bf16.mxu0 %v2672
    %3555 = vmatpush1.bf16.msra.mxu0 %v2671
    %3556 = vmatprep.subr.bf16.mxu0 %v2676
    %3557 = vmatpush1.bf16.msra.mxu0 %v2675
    %3558 = vmatprep.subr.bf16.mxu0 %v2680
    %3559 = vmatpush1.bf16.msra.mxu0 %v2679
    %3560 = vmatprep.mubr.bf16.mxu0 %v224
    %3561 = vmatmul.mubr.bf16.gmra.mrb[0].mxu0 %v223
    %v3562 = vpop.f32.mrb[0].mxu0
    %v3563 = vadd.f32 %v3522, %v3562
    %v3564 = vpop.f32.mrb[0].mxu0
    %v3565 = vadd.f32 %v3524, %v3564
    %v3566 = vpop.f32.mrb[0].mxu0
    %v3567 = vpop.f32.mrb[0].mxu0
    %3568 = vdwg.mxu0
    %3569 = vmatprep.subr.bf16.mxu0 %v2684
    %3570 = vmatpush1.bf16.msra.mxu0 %v2683
    %3571 = vmatprep.subr.bf16.mxu0 %v2688
    %3572 = vmatpush1.bf16.msra.mxu0 %v2687
    %3573 = vmatprep.subr.bf16.mxu0 %v2692
    %3574 = vmatpush1.bf16.msra.mxu0 %v2691
    %3575 = vmatprep.subr.bf16.mxu0 %v2696
    %3576 = vmatpush1.bf16.msra.mxu0 %v2695
    %3577 = vmatprep.subr.bf16.mxu0 %v2700
    %3578 = vmatpush1.bf16.msra.mxu0 %v2699
    %3579 = vmatprep.subr.bf16.mxu0 %v2704
    %3580 = vmatpush1.bf16.msra.mxu0 %v2703
    %3581 = vmatprep.subr.bf16.mxu0 %v2708
    %3582 = vmatpush1.bf16.msra.mxu0 %v2707
    %3583 = vmatprep.subr.bf16.mxu0 %v2712
    %3584 = vmatpush1.bf16.msra.mxu0 %v2711
    %3585 = vmatprep.subr.bf16.mxu0 %v2716
    %3586 = vmatpush1.bf16.msra.mxu0 %v2715
    %3587 = vmatprep.subr.bf16.mxu0 %v2720
    %3588 = vmatpush1.bf16.msra.mxu0 %v2719
    %3589 = vmatprep.subr.bf16.mxu0 %v2724
    %3590 = vmatpush1.bf16.msra.mxu0 %v2723
    %3591 = vmatprep.subr.bf16.mxu0 %v2728
    %3592 = vmatpush1.bf16.msra.mxu0 %v2727
    %3593 = vmatprep.subr.bf16.mxu0 %v2732
    %3594 = vmatpush1.bf16.msra.mxu0 %v2731
    %3595 = vmatprep.subr.bf16.mxu0 %v2736
    %3596 = vmatpush1.bf16.msra.mxu0 %v2735
    %3597 = vmatprep.subr.bf16.mxu0 %v2740
    %3598 = vmatpush1.bf16.msra.mxu0 %v2739
    %3599 = vmatprep.subr.bf16.mxu0 %v2744
    %3600 = vmatpush1.bf16.msra.mxu0 %v2743
    %3601 = vmatprep.mubr.bf16.mxu0 %v226
    %3602 = vmatmul.mubr.bf16.gmra.mrb[0].mxu0 %v225
    %v3603 = vpop.f32.mrb[0].mxu0
    %v3604 = vadd.f32 %v3563, %v3603
    %v3605 = vpop.f32.mrb[0].mxu0
    %v3606 = vadd.f32 %v3565, %v3605
    %v3607 = vpop.f32.mrb[0].mxu0
    %v3608 = vpop.f32.mrb[0].mxu0
    %3609 = vdwg.mxu0
    %3610 = vmatprep.subr.bf16.mxu0 %v2748
    %3611 = vmatpush1.bf16.msra.mxu0 %v2747
    %3612 = vmatprep.subr.bf16.mxu0 %v2752
    %3613 = vmatpush1.bf16.msra.mxu0 %v2751
    %3614 = vmatprep.subr.bf16.mxu0 %v2756
    %3615 = vmatpush1.bf16.msra.mxu0 %v2755
    %3616 = vmatprep.subr.bf16.mxu0 %v2760
    %3617 = vmatpush1.bf16.msra.mxu0 %v2759
    %3618 = vmatprep.subr.bf16.mxu0 %v2764
    %3619 = vmatpush1.bf16.msra.mxu0 %v2763
    %3620 = vmatprep.subr.bf16.mxu0 %v2768
    %3621 = vmatpush1.bf16.msra.mxu0 %v2767
    %3622 = vmatprep.subr.bf16.mxu0 %v2772
    %3623 = vmatpush1.bf16.msra.mxu0 %v2771
    %3624 = vmatprep.subr.bf16.mxu0 %v2776
    %3625 = vmatpush1.bf16.msra.mxu0 %v2775
    %3626 = vmatprep.subr.bf16.mxu0 %v2780
    %3627 = vmatpush1.bf16.msra.mxu0 %v2779
    %3628 = vmatprep.subr.bf16.mxu0 %v2784
    %3629 = vmatpush1.bf16.msra.mxu0 %v2783
    %3630 = vmatprep.subr.bf16.mxu0 %v2788
    %3631 = vmatpush1.bf16.msra.mxu0 %v2787
    %3632 = vmatprep.subr.bf16.mxu0 %v2792
    %3633 = vmatpush1.bf16.msra.mxu0 %v2791
    %3634 = vmatprep.subr.bf16.mxu0 %v2796
    %3635 = vmatpush1.bf16.msra.mxu0 %v2795
    %3636 = vmatprep.subr.bf16.mxu0 %v2800
    %3637 = vmatpush1.bf16.msra.mxu0 %v2799
    %3638 = vmatprep.subr.bf16.mxu0 %v2804
    %3639 = vmatpush1.bf16.msra.mxu0 %v2803
    %3640 = vmatprep.subr.bf16.mxu0 %v2808
    %3641 = vmatpush1.bf16.msra.mxu0 %v2807
    %3642 = vmatprep.mubr.bf16.mxu0 %v228
    %3643 = vmatmul.mubr.bf16.gmra.mrb[0].mxu0 %v227
    %v3644 = vpop.f32.mrb[0].mxu0
    %v3645 = vadd.f32 %v3604, %v3644
    %v3646 = vpop.f32.mrb[0].mxu0
    %v3647 = vadd.f32 %v3606, %v3646
    %v3648 = vpop.f32.mrb[0].mxu0
    %v3649 = vpop.f32.mrb[0].mxu0
    %3650 = vdwg.mxu0
    %3651 = vmatprep.subr.bf16.mxu0 %v2302
    %3652 = vmatpush1.bf16.msra.mxu0 %v2301
    %3653 = vmatprep.subr.bf16.mxu0 %v2306
    %3654 = vmatpush1.bf16.msra.mxu0 %v2305
    %3655 = vmatprep.subr.bf16.mxu0 %v2310
    %3656 = vmatpush1.bf16.msra.mxu0 %v2309
    %3657 = vmatprep.subr.bf16.mxu0 %v2314
    %3658 = vmatpush1.bf16.msra.mxu0 %v2313
    %3659 = vmatprep.subr.bf16.mxu0 %v2318
    %3660 = vmatpush1.bf16.msra.mxu0 %v2317
    %3661 = vmatprep.subr.bf16.mxu0 %v2322
    %3662 = vmatpush1.bf16.msra.mxu0 %v2321
    %3663 = vmatprep.subr.bf16.mxu0 %v2326
    %3664 = vmatpush1.bf16.msra.mxu0 %v2325
    %3665 = vmatprep.subr.bf16.mxu0 %v2330
    %3666 = vmatpush1.bf16.msra.mxu0 %v2329
    %3667 = vmatprep.subr.bf16.mxu0 %v2334
    %3668 = vmatpush1.bf16.msra.mxu0 %v2333
    %3669 = vmatprep.subr.bf16.mxu0 %v2338
    %3670 = vmatpush1.bf16.msra.mxu0 %v2337
    %3671 = vmatprep.subr.bf16.mxu0 %v2342
    %3672 = vmatpush1.bf16.msra.mxu0 %v2341
    %3673 = vmatprep.subr.bf16.mxu0 %v2346
    %3674 = vmatpush1.bf16.msra.mxu0 %v2345
    %3675 = vmatprep.subr.bf16.mxu0 %v2350
    %3676 = vmatpush1.bf16.msra.mxu0 %v2349
    %3677 = vmatprep.subr.bf16.mxu0 %v2354
    %3678 = vmatpush1.bf16.msra.mxu0 %v2353
    %3679 = vmatprep.subr.bf16.mxu0 %v2358
    %3680 = vmatpush1.bf16.msra.mxu0 %v2357
    %3681 = vmatprep.subr.bf16.mxu0 %v2362
    %3682 = vmatpush1.bf16.msra.mxu0 %v2361
    %3683 = vmatprep.mubr.bf16.mxu0 %v214
    %3684 = vmatmul.mubr.bf16.gmra.mrb[0].mxu0 %v213
    %v3685 = vpop.f32.mrb[0].mxu0
    %v3686 = vadd.f32 %v754, %v3685
    %v3687 = vpop.f32.mrb[0].mxu0
    %v3688 = vadd.f32 %v758, %v3687
    %v3689 = vpop.f32.mrb[0].mxu0
    %v3690 = vpop.f32.mrb[0].mxu0
    %3691 = vdwg.mxu0
    %3692 = vmatprep.subr.bf16.mxu0 %v2366
    %3693 = vmatpush1.bf16.msra.mxu0 %v2365
    %3694 = vmatprep.subr.bf16.mxu0 %v2370
    %3695 = vmatpush1.bf16.msra.mxu0 %v2369
    %3696 = vmatprep.subr.bf16.mxu0 %v2374
    %3697 = vmatpush1.bf16.msra.mxu0 %v2373
    %3698 = vmatprep.subr.bf16.mxu0 %v2378
    %3699 = vmatpush1.bf16.msra.mxu0 %v2377
    %3700 = vmatprep.subr.bf16.mxu0 %v2382
    %3701 = vmatpush1.bf16.msra.mxu0 %v2381
    %3702 = vmatprep.subr.bf16.mxu0 %v2386
    %3703 = vmatpush1.bf16.msra.mxu0 %v2385
    %3704 = vmatprep.subr.bf16.mxu0 %v2390
    %3705 = vmatpush1.bf16.msra.mxu0 %v2389
    %3706 = vmatprep.subr.bf16.mxu0 %v2394
    %3707 = vmatpush1.bf16.msra.mxu0 %v2393
    %3708 = vmatprep.subr.bf16.mxu0 %v2398
    %3709 = vmatpush1.bf16.msra.mxu0 %v2397
    %3710 = vmatprep.subr.bf16.mxu0 %v2402
    %3711 = vmatpush1.bf16.msra.mxu0 %v2401
    %3712 = vmatprep.subr.bf16.mxu0 %v2406
    %3713 = vmatpush1.bf16.msra.mxu0 %v2405
    %3714 = vmatprep.subr.bf16.mxu0 %v2410
    %3715 = vmatpush1.bf16.msra.mxu0 %v2409
    %3716 = vmatprep.subr.bf16.mxu0 %v2414
    %3717 = vmatpush1.bf16.msra.mxu0 %v2413
    %3718 = vmatprep.subr.bf16.mxu0 %v2418
    %3719 = vmatpush1.bf16.msra.mxu0 %v2417
    %3720 = vmatprep.subr.bf16.mxu0 %v2422
    %3721 = vmatpush1.bf16.msra.mxu0 %v2421
    %3722 = vmatprep.subr.bf16.mxu0 %v2426
    %3723 = vmatpush1.bf16.msra.mxu0 %v2425
    %3724 = vmatprep.mubr.bf16.mxu0 %v216
    %3725 = vmatmul.mubr.bf16.gmra.mrb[0].mxu0 %v215
    %v3726 = vpop.f32.mrb[0].mxu0
    %v3727 = vadd.f32 %v3686, %v3726
    %v3728 = vpop.f32.mrb[0].mxu0
    %v3729 = vadd.f32 %v3688, %v3728
    %v3730 = vpop.f32.mrb[0].mxu0
    %v3731 = vpop.f32.mrb[0].mxu0
    %3732 = vdwg.mxu0
    %3733 = vmatprep.subr.bf16.mxu0 %v2430
    %3734 = vmatpush1.bf16.msra.mxu0 %v2429
    %3735 = vmatprep.subr.bf16.mxu0 %v2434
    %3736 = vmatpush1.bf16.msra.mxu0 %v2433
    %3737 = vmatprep.subr.bf16.mxu0 %v2438
    %3738 = vmatpush1.bf16.msra.mxu0 %v2437
    %3739 = vmatprep.subr.bf16.mxu0 %v2442
    %3740 = vmatpush1.bf16.msra.mxu0 %v2441
    %3741 = vmatprep.subr.bf16.mxu0 %v2446
    %3742 = vmatpush1.bf16.msra.mxu0 %v2445
    %3743 = vmatprep.subr.bf16.mxu0 %v2450
    %3744 = vmatpush1.bf16.msra.mxu0 %v2449
    %3745 = vmatprep.subr.bf16.mxu0 %v2454
    %3746 = vmatpush1.bf16.msra.mxu0 %v2453
    %3747 = vmatprep.subr.bf16.mxu0 %v2458
    %3748 = vmatpush1.bf16.msra.mxu0 %v2457
    %3749 = vmatprep.subr.bf16.mxu0 %v2462
    %3750 = vmatpush1.bf16.msra.mxu0 %v2461
    %3751 = vmatprep.subr.bf16.mxu0 %v2466
    %3752 = vmatpush1.bf16.msra.mxu0 %v2465
    %3753 = vmatprep.subr.bf16.mxu0 %v2470
    %3754 = vmatpush1.bf16.msra.mxu0 %v2469
    %3755 = vmatprep.subr.bf16.mxu0 %v2474
    %3756 = vmatpush1.bf16.msra.mxu0 %v2473
    %3757 = vmatprep.subr.bf16.mxu0 %v2478
    %3758 = vmatpush1.bf16.msra.mxu0 %v2477
    %3759 = vmatprep.subr.bf16.mxu0 %v2482
    %3760 = vmatpush1.bf16.msra.mxu0 %v2481
    %3761 = vmatprep.subr.bf16.mxu0 %v2486
    %3762 = vmatpush1.bf16.msra.mxu0 %v2485
    %3763 = vmatprep.subr.bf16.mxu0 %v2490
    %3764 = vmatpush1.bf16.msra.mxu0 %v2489
    %3765 = vmatprep.mubr.bf16.mxu0 %v218
    %3766 = vmatmul.mubr.bf16.gmra.mrb[0].mxu0 %v217
    %v3767 = vpop.f32.mrb[0].mxu0
    %v3768 = vadd.f32 %v3727, %v3767
    %v3769 = vpop.f32.mrb[0].mxu0
    %v3770 = vadd.f32 %v3729, %v3769
    %v3771 = vpop.f32.mrb[0].mxu0
    %v3772 = vpop.f32.mrb[0].mxu0
    %3773 = vdwg.mxu0
    %3774 = vmatprep.subr.bf16.mxu0 %v2494
    %3775 = vmatpush1.bf16.msra.mxu0 %v2493
    %3776 = vmatprep.subr.bf16.mxu0 %v2498
    %3777 = vmatpush1.bf16.msra.mxu0 %v2497
    %3778 = vmatprep.subr.bf16.mxu0 %v2502
    %3779 = vmatpush1.bf16.msra.mxu0 %v2501
    %3780 = vmatprep.subr.bf16.mxu0 %v2506
    %3781 = vmatpush1.bf16.msra.mxu0 %v2505
    %3782 = vmatprep.subr.bf16.mxu0 %v2510
    %3783 = vmatpush1.bf16.msra.mxu0 %v2509
    %3784 = vmatprep.subr.bf16.mxu0 %v2514
    %3785 = vmatpush1.bf16.msra.mxu0 %v2513
    %3786 = vmatprep.subr.bf16.mxu0 %v2518
    %3787 = vmatpush1.bf16.msra.mxu0 %v2517
    %3788 = vmatprep.subr.bf16.mxu0 %v2522
    %3789 = vmatpush1.bf16.msra.mxu0 %v2521
    %3790 = vmatprep.subr.bf16.mxu0 %v2526
    %3791 = vmatpush1.bf16.msra.mxu0 %v2525
    %3792 = vmatprep.subr.bf16.mxu0 %v2530
    %3793 = vmatpush1.bf16.msra.mxu0 %v2529
    %3794 = vmatprep.subr.bf16.mxu0 %v2534
    %3795 = vmatpush1.bf16.msra.mxu0 %v2533
    %3796 = vmatprep.subr.bf16.mxu0 %v2538
    %3797 = vmatpush1.bf16.msra.mxu0 %v2537
    %3798 = vmatprep.subr.bf16.mxu0 %v2542
    %3799 = vmatpush1.bf16.msra.mxu0 %v2541
    %3800 = vmatprep.subr.bf16.mxu0 %v2546
    %3801 = vmatpush1.bf16.msra.mxu0 %v2545
    %3802 = vmatprep.subr.bf16.mxu0 %v2550
    %3803 = vmatpush1.bf16.msra.mxu0 %v2549
    %3804 = vmatprep.subr.bf16.mxu0 %v2554
    %3805 = vmatpush1.bf16.msra.mxu0 %v2553
    %3806 = vmatprep.mubr.bf16.mxu0 %v220
    %3807 = vmatmul.mubr.bf16.gmra.mrb[0].mxu0 %v219
    %v3808 = vpop.f32.mrb[0].mxu0
    %v3809 = vadd.f32 %v3768, %v3808
    %v3810 = vpop.f32.mrb[0].mxu0
    %v3811 = vadd.f32 %v3770, %v3810
    %v3812 = vpop.f32.mrb[0].mxu0
    %v3813 = vpop.f32.mrb[0].mxu0
    %3814 = vdwg.mxu0
    %3815 = vmatprep.subr.bf16.mxu0 %v2558
    %3816 = vmatpush1.bf16.msra.mxu0 %v2557
    %3817 = vmatprep.subr.bf16.mxu0 %v2562
    %3818 = vmatpush1.bf16.msra.mxu0 %v2561
    %3819 = vmatprep.subr.bf16.mxu0 %v2566
    %3820 = vmatpush1.bf16.msra.mxu0 %v2565
    %3821 = vmatprep.subr.bf16.mxu0 %v2570
    %3822 = vmatpush1.bf16.msra.mxu0 %v2569
    %3823 = vmatprep.subr.bf16.mxu0 %v2574
    %3824 = vmatpush1.bf16.msra.mxu0 %v2573
    %3825 = vmatprep.subr.bf16.mxu0 %v2578
    %3826 = vmatpush1.bf16.msra.mxu0 %v2577
    %3827 = vmatprep.subr.bf16.mxu0 %v2582
    %3828 = vmatpush1.bf16.msra.mxu0 %v2581
    %3829 = vmatprep.subr.bf16.mxu0 %v2586
    %3830 = vmatpush1.bf16.msra.mxu0 %v2585
    %3831 = vmatprep.subr.bf16.mxu0 %v2590
    %3832 = vmatpush1.bf16.msra.mxu0 %v2589
    %3833 = vmatprep.subr.bf16.mxu0 %v2594
    %3834 = vmatpush1.bf16.msra.mxu0 %v2593
    %3835 = vmatprep.subr.bf16.mxu0 %v2598
    %3836 = vmatpush1.bf16.msra.mxu0 %v2597
    %3837 = vmatprep.subr.bf16.mxu0 %v2602
    %3838 = vmatpush1.bf16.msra.mxu0 %v2601
    %3839 = vmatprep.subr.bf16.mxu0 %v2606
    %3840 = vmatpush1.bf16.msra.mxu0 %v2605
    %3841 = vmatprep.subr.bf16.mxu0 %v2610
    %3842 = vmatpush1.bf16.msra.mxu0 %v2609
    %3843 = vmatprep.subr.bf16.mxu0 %v2614
    %3844 = vmatpush1.bf16.msra.mxu0 %v2613
    %3845 = vmatprep.subr.bf16.mxu0 %v2618
    %3846 = vmatpush1.bf16.msra.mxu0 %v2617
    %3847 = vmatprep.mubr.bf16.mxu0 %v222
    %3848 = vmatmul.mubr.bf16.gmra.mrb[0].mxu0 %v221
    %v3849 = vpop.f32.mrb[0].mxu0
    %v3850 = vadd.f32 %v3809, %v3849
    %v3851 = vpop.f32.mrb[0].mxu0
    %v3852 = vadd.f32 %v3811, %v3851
    %v3853 = vpop.f32.mrb[0].mxu0
    %v3854 = vpop.f32.mrb[0].mxu0
    %3855 = vdwg.mxu0
    %3856 = vmatprep.subr.bf16.mxu0 %v2622
    %3857 = vmatpush1.bf16.msra.mxu0 %v2621
    %3858 = vmatprep.subr.bf16.mxu0 %v2626
    %3859 = vmatpush1.bf16.msra.mxu0 %v2625
    %3860 = vmatprep.subr.bf16.mxu0 %v2630
    %3861 = vmatpush1.bf16.msra.mxu0 %v2629
    %3862 = vmatprep.subr.bf16.mxu0 %v2634
    %3863 = vmatpush1.bf16.msra.mxu0 %v2633
    %3864 = vmatprep.subr.bf16.mxu0 %v2638
    %3865 = vmatpush1.bf16.msra.mxu0 %v2637
    %3866 = vmatprep.subr.bf16.mxu0 %v2642
    %3867 = vmatpush1.bf16.msra.mxu0 %v2641
    %3868 = vmatprep.subr.bf16.mxu0 %v2646
    %3869 = vmatpush1.bf16.msra.mxu0 %v2645
    %3870 = vmatprep.subr.bf16.mxu0 %v2650
    %3871 = vmatpush1.bf16.msra.mxu0 %v2649
    %3872 = vmatprep.subr.bf16.mxu0 %v2654
    %3873 = vmatpush1.bf16.msra.mxu0 %v2653
    %3874 = vmatprep.subr.bf16.mxu0 %v2658
    %3875 = vmatpush1.bf16.msra.mxu0 %v2657
    %3876 = vmatprep.subr.bf16.mxu0 %v2662
    %3877 = vmatpush1.bf16.msra.mxu0 %v2661
    %3878 = vmatprep.subr.bf16.mxu0 %v2666
    %3879 = vmatpush1.bf16.msra.mxu0 %v2665
    %3880 = vmatprep.subr.bf16.mxu0 %v2670
    %3881 = vmatpush1.bf16.msra.mxu0 %v2669
    %3882 = vmatprep.subr.bf16.mxu0 %v2674
    %3883 = vmatpush1.bf16.msra.mxu0 %v2673
    %3884 = vmatprep.subr.bf16.mxu0 %v2678
    %3885 = vmatpush1.bf16.msra.mxu0 %v2677
    %3886 = vmatprep.subr.bf16.mxu0 %v2682
    %3887 = vmatpush1.bf16.msra.mxu0 %v2681
    %3888 = vmatprep.mubr.bf16.mxu0 %v224
    %3889 = vmatmul.mubr.bf16.gmra.mrb[0].mxu0 %v223
    %v3890 = vpop.f32.mrb[0].mxu0
    %v3891 = vadd.f32 %v3850, %v3890
    %v3892 = vpop.f32.mrb[0].mxu0
    %v3893 = vadd.f32 %v3852, %v3892
    %v3894 = vpop.f32.mrb[0].mxu0
    %v3895 = vpop.f32.mrb[0].mxu0
    %3896 = vdwg.mxu0
    %3897 = vmatprep.subr.bf16.mxu0 %v2686
    %3898 = vmatpush1.bf16.msra.mxu0 %v2685
    %3899 = vmatprep.subr.bf16.mxu0 %v2690
    %3900 = vmatpush1.bf16.msra.mxu0 %v2689
    %3901 = vmatprep.subr.bf16.mxu0 %v2694
    %3902 = vmatpush1.bf16.msra.mxu0 %v2693
    %3903 = vmatprep.subr.bf16.mxu0 %v2698
    %3904 = vmatpush1.bf16.msra.mxu0 %v2697
    %3905 = vmatprep.subr.bf16.mxu0 %v2702
    %3906 = vmatpush1.bf16.msra.mxu0 %v2701
    %3907 = vmatprep.subr.bf16.mxu0 %v2706
    %3908 = vmatpush1.bf16.msra.mxu0 %v2705
    %3909 = vmatprep.subr.bf16.mxu0 %v2710
    %3910 = vmatpush1.bf16.msra.mxu0 %v2709
    %3911 = vmatprep.subr.bf16.mxu0 %v2714
    %3912 = vmatpush1.bf16.msra.mxu0 %v2713
    %3913 = vmatprep.subr.bf16.mxu0 %v2718
    %3914 = vmatpush1.bf16.msra.mxu0 %v2717
    %3915 = vmatprep.subr.bf16.mxu0 %v2722
    %3916 = vmatpush1.bf16.msra.mxu0 %v2721
    %3917 = vmatprep.subr.bf16.mxu0 %v2726
    %3918 = vmatpush1.bf16.msra.mxu0 %v2725
    %3919 = vmatprep.subr.bf16.mxu0 %v2730
    %3920 = vmatpush1.bf16.msra.mxu0 %v2729
    %3921 = vmatprep.subr.bf16.mxu0 %v2734
    %3922 = vmatpush1.bf16.msra.mxu0 %v2733
    %3923 = vmatprep.subr.bf16.mxu0 %v2738
    %3924 = vmatpush1.bf16.msra.mxu0 %v2737
    %3925 = vmatprep.subr.bf16.mxu0 %v2742
    %3926 = vmatpush1.bf16.msra.mxu0 %v2741
    %3927 = vmatprep.subr.bf16.mxu0 %v2746
    %3928 = vmatpush1.bf16.msra.mxu0 %v2745
    %3929 = vmatprep.mubr.bf16.mxu0 %v226
    %3930 = vmatmul.mubr.bf16.gmra.mrb[0].mxu0 %v225
    %v3931 = vpop.f32.mrb[0].mxu0
    %v3932 = vadd.f32 %v3891, %v3931
    %v3933 = vpop.f32.mrb[0].mxu0
    %v3934 = vadd.f32 %v3893, %v3933
    %v3935 = vpop.f32.mrb[0].mxu0
    %v3936 = vpop.f32.mrb[0].mxu0
    %3937 = vdwg.mxu0
    %3938 = vmatprep.subr.bf16.mxu0 %v2750
    %3939 = vmatpush1.bf16.msra.mxu0 %v2749
    %3940 = vmatprep.subr.bf16.mxu0 %v2754
    %3941 = vmatpush1.bf16.msra.mxu0 %v2753
    %3942 = vmatprep.subr.bf16.mxu0 %v2758
    %3943 = vmatpush1.bf16.msra.mxu0 %v2757
    %3944 = vmatprep.subr.bf16.mxu0 %v2762
    %3945 = vmatpush1.bf16.msra.mxu0 %v2761
    %3946 = vmatprep.subr.bf16.mxu0 %v2766
    %3947 = vmatpush1.bf16.msra.mxu0 %v2765
    %3948 = vmatprep.subr.bf16.mxu0 %v2770
    %3949 = vmatpush1.bf16.msra.mxu0 %v2769
    %3950 = vmatprep.subr.bf16.mxu0 %v2774
    %3951 = vmatpush1.bf16.msra.mxu0 %v2773
    %3952 = vmatprep.subr.bf16.mxu0 %v2778
    %3953 = vmatpush1.bf16.msra.mxu0 %v2777
    %3954 = vmatprep.subr.bf16.mxu0 %v2782
    %3955 = vmatpush1.bf16.msra.mxu0 %v2781
    %3956 = vmatprep.subr.bf16.mxu0 %v2786
    %3957 = vmatpush1.bf16.msra.mxu0 %v2785
    %3958 = vmatprep.subr.bf16.mxu0 %v2790
    %3959 = vmatpush1.bf16.msra.mxu0 %v2789
    %3960 = vmatprep.subr.bf16.mxu0 %v2794
    %3961 = vmatpush1.bf16.msra.mxu0 %v2793
    %3962 = vmatprep.subr.bf16.mxu0 %v2798
    %3963 = vmatpush1.bf16.msra.mxu0 %v2797
    %3964 = vmatprep.subr.bf16.mxu0 %v2802
    %3965 = vmatpush1.bf16.msra.mxu0 %v2801
    %3966 = vmatprep.subr.bf16.mxu0 %v2806
    %3967 = vmatpush1.bf16.msra.mxu0 %v2805
    %3968 = vmatprep.subr.bf16.mxu0 %v2810
    %3969 = vmatpush1.bf16.msra.mxu0 %v2809
    %3970 = vmatprep.mubr.bf16.mxu0 %v228
    %3971 = vmatmul.mubr.bf16.gmra.mrb[0].mxu0 %v227
    %v3972 = vpop.f32.mrb[0].mxu0
    %v3973 = vadd.f32 %v3932, %v3972
    %v3974 = vpop.f32.mrb[0].mxu0
    %v3975 = vadd.f32 %v3934, %v3974
    %v3976 = vpop.f32.mrb[0].mxu0
    %v3977 = vpop.f32.mrb[0].mxu0
    %3978 = vdwg.mxu0
    %v3979 = vmax.f32 %v3645, 0.0
    %v3980 = vmax.f32 %v3647, 0.0
    %v3981 = vmax.f32 %v3973, 0.0
    %v3982 = vmax.f32 %v3975, 0.0
    %v3983 = vpack.c.bf16 %v3979, %v3979
    %v3984 = vpack.c.bf16 %v3980, %v3980
    %v3985 = vpack.c.bf16 %v3981, %v3981
    %v3986 = vpack.c.bf16 %v3982, %v3982
    %v3987 = vld [vmem:[#allocation8] sm:$0xf]
    %v3988 = vld [vmem:[#allocation8 + $0x4] sm:$0xf]
    %v3989 = vld [vmem:[#allocation8 + $0x8] sm:$0xf]
    %v3990 = vld [vmem:[#allocation8 + $0xc] sm:$0xf]
    %v3991 = vld [vmem:[#allocation8 + $0x10] sm:$0xf]
    %v3992 = vld [vmem:[#allocation8 + $0x14] sm:$0xf]
    %v3993 = vld [vmem:[#allocation8 + $0x18] sm:$0xf]
    %v3994 = vld [vmem:[#allocation8 + $0x1c] sm:$0xf]
    %v3995 = vld [vmem:[#allocation8 + $0x20] sm:$0xf]
    %v3996 = vld [vmem:[#allocation8 + $0x24] sm:$0xf]
    %v3997 = vld [vmem:[#allocation8 + $0x28] sm:$0xf]
    %v3998 = vld [vmem:[#allocation8 + $0x2c] sm:$0xf]
    %v3999 = vld [vmem:[#allocation8 + $0x30] sm:$0xf]
    %v4000 = vld [vmem:[#allocation8 + $0x34] sm:$0xf]
    %v4001 = vld [vmem:[#allocation8 + $0x38] sm:$0xf]
    %v4002 = vld [vmem:[#allocation8 + $0x3c] sm:$0xf]
    %v4003 = vld [vmem:[#allocation8 + $0x40] sm:$0xf]
    %v4004 = vld [vmem:[#allocation8 + $0x44] sm:$0xf]
    %v4005 = vld [vmem:[#allocation8 + $0x48] sm:$0xf]
    %v4006 = vld [vmem:[#allocation8 + $0x4c] sm:$0xf]
    %v4007 = vld [vmem:[#allocation8 + $0x50] sm:$0xf]
    %v4008 = vld [vmem:[#allocation8 + $0x54] sm:$0xf]
    %v4009 = vld [vmem:[#allocation8 + $0x58] sm:$0xf]
    %v4010 = vld [vmem:[#allocation8 + $0x5c] sm:$0xf]
    %v4011 = vld [vmem:[#allocation8 + $0x60] sm:$0xf]
    %v4012 = vld [vmem:[#allocation8 + $0x64] sm:$0xf]
    %v4013 = vld [vmem:[#allocation8 + $0x68] sm:$0xf]
    %v4014 = vld [vmem:[#allocation8 + $0x6c] sm:$0xf]
    %v4015 = vld [vmem:[#allocation8 + $0x70] sm:$0xf]
    %v4016 = vld [vmem:[#allocation8 + $0x74] sm:$0xf]
    %v4017 = vld [vmem:[#allocation8 + $0x78] sm:$0xf]
    %v4018 = vld [vmem:[#allocation8 + $0x7c] sm:$0xf]
    %v4019 = vld [vmem:[#allocation8 + $0x80] sm:$0xf]
    %v4020 = vld [vmem:[#allocation8 + $0x84] sm:$0xf]
    %v4021 = vld [vmem:[#allocation8 + $0x88] sm:$0xf]
    %v4022 = vld [vmem:[#allocation8 + $0x8c] sm:$0xf]
    %v4023 = vld [vmem:[#allocation8 + $0x90] sm:$0xf]
    %v4024 = vld [vmem:[#allocation8 + $0x94] sm:$0xf]
    %v4025 = vld [vmem:[#allocation8 + $0x98] sm:$0xf]
    %v4026 = vld [vmem:[#allocation8 + $0x9c] sm:$0xf]
    %v4027 = vld [vmem:[#allocation8 + $0xa0] sm:$0xf]
    %v4028 = vld [vmem:[#allocation8 + $0xa4] sm:$0xf]
    %v4029 = vld [vmem:[#allocation8 + $0xa8] sm:$0xf]
    %v4030 = vld [vmem:[#allocation8 + $0xac] sm:$0xf]
    %v4031 = vld [vmem:[#allocation8 + $0xb0] sm:$0xf]
    %v4032 = vld [vmem:[#allocation8 + $0xb4] sm:$0xf]
    %v4033 = vld [vmem:[#allocation8 + $0xb8] sm:$0xf]
    %v4034 = vld [vmem:[#allocation8 + $0xbc] sm:$0xf]
    %v4035 = vld [vmem:[#allocation8 + $0xc0] sm:$0xf]
    %v4036 = vld [vmem:[#allocation8 + $0xc4] sm:$0xf]
    %v4037 = vld [vmem:[#allocation8 + $0xc8] sm:$0xf]
    %v4038 = vld [vmem:[#allocation8 + $0xcc] sm:$0xf]
    %v4039 = vld [vmem:[#allocation8 + $0xd0] sm:$0xf]
    %v4040 = vld [vmem:[#allocation8 + $0xd4] sm:$0xf]
    %v4041 = vld [vmem:[#allocation8 + $0xd8] sm:$0xf]
    %v4042 = vld [vmem:[#allocation8 + $0xdc] sm:$0xf]
    %v4043 = vld [vmem:[#allocation8 + $0xe0] sm:$0xf]
    %v4044 = vld [vmem:[#allocation8 + $0xe4] sm:$0xf]
    %v4045 = vld [vmem:[#allocation8 + $0xe8] sm:$0xf]
    %v4046 = vld [vmem:[#allocation8 + $0xec] sm:$0xf]
    %v4047 = vld [vmem:[#allocation8 + $0xf0] sm:$0xf]
    %v4048 = vld [vmem:[#allocation8 + $0xf4] sm:$0xf]
    %v4049 = vld [vmem:[#allocation8 + $0xf8] sm:$0xf]
    %v4050 = vld [vmem:[#allocation8 + $0xfc] sm:$0xf]
    %v4051 = vld [vmem:[#allocation10] sm:$0x1]
    %v4053 = vlaneseq
    %v4054 = vshrl.u32 %v4053, 7
    %v4055 = vsub.s32 0, %v4054
    %v4056 = vrot.slane %v4051, %v4055
    %v4122 = vunpack.c.l.b16 %v3987
    %v4123 = vunpack.c.l.b16 %v3988
    %v4124 = vunpack.c.l.b16 %v3989
    %v4125 = vunpack.c.l.b16 %v3990
    %v4126 = vunpack.c.l.b16 %v3991
    %v4127 = vunpack.c.l.b16 %v3992
    %v4128 = vunpack.c.l.b16 %v3993
    %v4129 = vunpack.c.l.b16 %v3994
    %v4130 = vunpack.c.l.b16 %v3995
    %v4131 = vunpack.c.l.b16 %v3996
    %v4132 = vunpack.c.l.b16 %v3997
    %v4133 = vunpack.c.l.b16 %v3998
    %v4134 = vunpack.c.l.b16 %v3999
    %v4135 = vunpack.c.l.b16 %v4000
    %v4136 = vunpack.c.l.b16 %v4001
    %v4137 = vunpack.c.l.b16 %v4002
    %v4138 = vunpack.c.l.b16 %v4003
    %v4139 = vunpack.c.l.b16 %v4004
    %v4140 = vunpack.c.l.b16 %v4005
    %v4141 = vunpack.c.l.b16 %v4006
    %v4142 = vunpack.c.l.b16 %v4007
    %v4143 = vunpack.c.l.b16 %v4008
    %v4144 = vunpack.c.l.b16 %v4009
    %v4145 = vunpack.c.l.b16 %v4010
    %v4146 = vunpack.c.l.b16 %v4011
    %v4147 = vunpack.c.l.b16 %v4012
    %v4148 = vunpack.c.l.b16 %v4013
    %v4149 = vunpack.c.l.b16 %v4014
    %v4150 = vunpack.c.l.b16 %v4015
    %v4151 = vunpack.c.l.b16 %v4016
    %v4152 = vunpack.c.l.b16 %v4017
    %v4153 = vunpack.c.l.b16 %v4018
    %v4154 = vunpack.c.l.b16 %v4019
    %v4155 = vunpack.c.l.b16 %v4020
    %v4156 = vunpack.c.l.b16 %v4021
    %v4157 = vunpack.c.l.b16 %v4022
    %v4158 = vunpack.c.l.b16 %v4023
    %v4159 = vunpack.c.l.b16 %v4024
    %v4160 = vunpack.c.l.b16 %v4025
    %v4161 = vunpack.c.l.b16 %v4026
    %v4162 = vunpack.c.l.b16 %v4027
    %v4163 = vunpack.c.l.b16 %v4028
    %v4164 = vunpack.c.l.b16 %v4029
    %v4165 = vunpack.c.l.b16 %v4030
    %v4166 = vunpack.c.l.b16 %v4031
    %v4167 = vunpack.c.l.b16 %v4032
    %v4168 = vunpack.c.l.b16 %v4033
    %v4169 = vunpack.c.l.b16 %v4034
    %v4170 = vunpack.c.l.b16 %v4035
    %v4171 = vunpack.c.l.b16 %v4036
    %v4172 = vunpack.c.l.b16 %v4037
    %v4173 = vunpack.c.l.b16 %v4038
    %v4174 = vunpack.c.l.b16 %v4039
    %v4175 = vunpack.c.l.b16 %v4040
    %v4176 = vunpack.c.l.b16 %v4041
    %v4177 = vunpack.c.l.b16 %v4042
    %v4178 = vunpack.c.l.b16 %v4043
    %v4179 = vunpack.c.l.b16 %v4044
    %v4180 = vunpack.c.l.b16 %v4045
    %v4181 = vunpack.c.l.b16 %v4046
    %v4182 = vunpack.c.l.b16 %v4047
    %v4183 = vunpack.c.l.b16 %v4048
    %v4184 = vunpack.c.l.b16 %v4049
    %v4185 = vunpack.c.l.b16 %v4050
    %v4186 = vpack.c.b16 %v4123, %v4122
    %v4187 = vpack.c.b16 %v4125, %v4124
    %v4188 = vpack.c.b16 %v4127, %v4126
    %v4189 = vpack.c.b16 %v4129, %v4128
    %v4190 = vpack.c.b16 %v4131, %v4130
    %v4191 = vpack.c.b16 %v4133, %v4132
    %v4192 = vpack.c.b16 %v4135, %v4134
    %v4193 = vpack.c.b16 %v4137, %v4136
    %v4194 = vpack.c.b16 %v4139, %v4138
    %v4195 = vpack.c.b16 %v4141, %v4140
    %v4196 = vpack.c.b16 %v4143, %v4142
    %v4197 = vpack.c.b16 %v4145, %v4144
    %v4198 = vpack.c.b16 %v4147, %v4146
    %v4199 = vpack.c.b16 %v4149, %v4148
    %v4200 = vpack.c.b16 %v4151, %v4150
    %v4201 = vpack.c.b16 %v4153, %v4152
    %v4202 = vpack.c.b16 %v4155, %v4154
    %v4203 = vpack.c.b16 %v4157, %v4156
    %v4204 = vpack.c.b16 %v4159, %v4158
    %v4205 = vpack.c.b16 %v4161, %v4160
    %v4206 = vpack.c.b16 %v4163, %v4162
    %v4207 = vpack.c.b16 %v4165, %v4164
    %v4208 = vpack.c.b16 %v4167, %v4166
    %v4209 = vpack.c.b16 %v4169, %v4168
    %v4210 = vpack.c.b16 %v4171, %v4170
    %v4211 = vpack.c.b16 %v4173, %v4172
    %v4212 = vpack.c.b16 %v4175, %v4174
    %v4213 = vpack.c.b16 %v4177, %v4176
    %v4214 = vpack.c.b16 %v4179, %v4178
    %v4215 = vpack.c.b16 %v4181, %v4180
    %v4216 = vpack.c.b16 %v4183, %v4182
    %v4217 = vpack.c.b16 %v4185, %v4184
    %4250 = vmatprep.subr.bf16.mxu0 0
    %4251 = vmatpush1.bf16.msra.mxu0 %v4186
    %4252 = vmatprep.subr.bf16.mxu0 0
    %4253 = vmatpush1.bf16.msra.mxu0 %v4187
    %4254 = vmatprep.subr.bf16.mxu0 0
    %4255 = vmatpush1.bf16.msra.mxu0 %v4188
    %4256 = vmatprep.subr.bf16.mxu0 0
    %4257 = vmatpush1.bf16.msra.mxu0 %v4189
    %4258 = vmatprep.subr.bf16.mxu0 0
    %4259 = vmatpush1.bf16.msra.mxu0 %v4190
    %4260 = vmatprep.subr.bf16.mxu0 0
    %4261 = vmatpush1.bf16.msra.mxu0 %v4191
    %4262 = vmatprep.subr.bf16.mxu0 0
    %4263 = vmatpush1.bf16.msra.mxu0 %v4192
    %4264 = vmatprep.subr.bf16.mxu0 0
    %4265 = vmatpush1.bf16.msra.mxu0 %v4193
    %4266 = vmatprep.subr.bf16.mxu0 0
    %4267 = vmatpush1.bf16.msra.mxu0 %v4194
    %4268 = vmatprep.subr.bf16.mxu0 0
    %4269 = vmatpush1.bf16.msra.mxu0 %v4195
    %4270 = vmatprep.subr.bf16.mxu0 0
    %4271 = vmatpush1.bf16.msra.mxu0 %v4196
    %4272 = vmatprep.subr.bf16.mxu0 0
    %4273 = vmatpush1.bf16.msra.mxu0 %v4197
    %4274 = vmatprep.subr.bf16.mxu0 0
    %4275 = vmatpush1.bf16.msra.mxu0 %v4198
    %4276 = vmatprep.subr.bf16.mxu0 0
    %4277 = vmatpush1.bf16.msra.mxu0 %v4199
    %4278 = vmatprep.subr.bf16.mxu0 0
    %4279 = vmatpush1.bf16.msra.mxu0 %v4200
    %4280 = vmatprep.subr.bf16.mxu0 0
    %4281 = vmatpush1.bf16.msra.mxu0 %v4201
    %4282 = vmatprep.mubr.bf16.mxu0 %v3984
    %4283 = vmatmul.mubr.bf16.gmra.mrb[0].mxu0 %v3983
    %v4284 = vpop.f32.mrb[0].mxu0
    %v4285 = vadd.f32 %v4056, %v4284
    %v4286 = vpop.f32.mrb[0].mxu0
    %v4287 = vpop.f32.mrb[0].mxu0
    %v4288 = vpop.f32.mrb[0].mxu0
    %4289 = vdwg.mxu0
    %4290 = vmatprep.subr.bf16.mxu0 0
    %4291 = vmatpush1.bf16.msra.mxu0 %v4202
    %4292 = vmatprep.subr.bf16.mxu0 0
    %4293 = vmatpush1.bf16.msra.mxu0 %v4203
    %4294 = vmatprep.subr.bf16.mxu0 0
    %4295 = vmatpush1.bf16.msra.mxu0 %v4204
    %4296 = vmatprep.subr.bf16.mxu0 0
    %4297 = vmatpush1.bf16.msra.mxu0 %v4205
    %4298 = vmatprep.subr.bf16.mxu0 0
    %4299 = vmatpush1.bf16.msra.mxu0 %v4206
    %4300 = vmatprep.subr.bf16.mxu0 0
    %4301 = vmatpush1.bf16.msra.mxu0 %v4207
    %4302 = vmatprep.subr.bf16.mxu0 0
    %4303 = vmatpush1.bf16.msra.mxu0 %v4208
    %4304 = vmatprep.subr.bf16.mxu0 0
    %4305 = vmatpush1.bf16.msra.mxu0 %v4209
    %4306 = vmatprep.subr.bf16.mxu0 0
    %4307 = vmatpush1.bf16.msra.mxu0 %v4210
    %4308 = vmatprep.subr.bf16.mxu0 0
    %4309 = vmatpush1.bf16.msra.mxu0 %v4211
    %4310 = vmatprep.subr.bf16.mxu0 0
    %4311 = vmatpush1.bf16.msra.mxu0 %v4212
    %4312 = vmatprep.subr.bf16.mxu0 0
    %4313 = vmatpush1.bf16.msra.mxu0 %v4213
    %4314 = vmatprep.subr.bf16.mxu0 0
    %4315 = vmatpush1.bf16.msra.mxu0 %v4214
    %4316 = vmatprep.subr.bf16.mxu0 0
    %4317 = vmatpush1.bf16.msra.mxu0 %v4215
    %4318 = vmatprep.subr.bf16.mxu0 0
    %4319 = vmatpush1.bf16.msra.mxu0 %v4216
    %4320 = vmatprep.subr.bf16.mxu0 0
    %4321 = vmatpush1.bf16.msra.mxu0 %v4217
    %4322 = vmatprep.mubr.bf16.mxu0 %v3986
    %4323 = vmatmul.mubr.bf16.gmra.mrb[0].mxu0 %v3985
    %v4324 = vpop.f32.mrb[0].mxu0
    %v4325 = vadd.f32 %v4285, %v4324
    %v4326 = vpop.f32.mrb[0].mxu0
    %v4327 = vpop.f32.mrb[0].mxu0
    %v4328 = vpop.f32.mrb[0].mxu0
    %4329 = vdwg.mxu0
    %4330 = vst [vmem:[#allocation11] sm:$0x3] %v4325
    // Predicated region
    $region42: #{tpu_custom_call.1} parent=1 // pred_check
      _
    $region43: #{tpu_custom_call.1} parent=1 // pred_check_branch
      %4332 = sbr.rel (0) target = $region45
    $region44: #{tpu_custom_call.1} parent=1 // pred_region
      %s4334 = ssub.s32 32, 32
      %4335 = vsyncadd [#allocation4], %s4334
      %s4337 = sshll.u32 [#allocation11], 4
      %s4338 = int_to_ptr.vmem [resolvable:$true] %s4337
      %4340 = dma.vmem_to_hbm [thread:$0]  %s4338, 32, %s5, [#allocation4]
    $region45: #{tpu_custom_call.1} parent=1 // pred_fallthru
      _
    // Predicated region
    $region46: #{tpu_custom_call.1} parent=1 // pred_check
      _
    $region47: #{tpu_custom_call.1} parent=1 // pred_check_branch
      %4342 = sbr.rel (0) target = $region49
    $region48: #{tpu_custom_call.1} parent=1 // pred_region
      %4343 = dma.done [#allocation4], 32
    $region49: #{tpu_custom_call.1} parent=1 // pred_fallthru
      _
    %4344 = vsyncpa [#allocation3], 1
    %4345 = vsyncpa [#allocation6], 1
    %4346 = vsyncpa [#allocation9], 1
    %4347 = vsyncpa [#allocation4], 1

</llo_original>
